<compile_context>
chip_gen: v6e
topology: v6e:2x2x1
jax: 0.10.0
libtpu: 0.0.40
codegen_flags: <defaults>
</compile_context>

<pallas_src>
import functools

import jax
import jax.numpy as jnp
from jax.experimental import pallas as pl
from jax.experimental.pallas import tpu as pltpu


def _round_up(x, m):
    return (x + m - 1) // m * m


def _char_decoder_kernel(xw_ref, h0_ref, c0_ref, whh_ref, wproj_ref, bproj_ref,
                         scores_ref, h_out_ref, c_out_ref,
                         hs_sc,
                         *, seq_len, batch_tile, hidden_pad):
    T, TB, Hp = seq_len, batch_tile, hidden_pad
    bf16 = jnp.bfloat16

    # Serial recurrence: per step only h @ W_hh^T (bf16 MXU, f32 accumulate) + gate math.
    # h, c live in vregs (fori_loop carry); only the per-step hidden goes to VMEM scratch.
    def step(t, carry):
        h, c = carry                                                  # f32 (TB, Hp)
        row = pl.multiple_of(t * TB, TB)
        gates = (xw_ref[pl.ds(row, TB), :]                            # x_t@W_ih^T + bias (precomputed)
                 + jnp.dot(h.astype(bf16), whh_ref[...],
                           preferred_element_type=jnp.float32))       # (TB, 4Hp)
        # Each gate block is padded to Hp lanes -> 128-lane-aligned slices.
        i_g = jax.nn.sigmoid(gates[:, 0 * Hp:1 * Hp])
        f_g = jax.nn.sigmoid(gates[:, 1 * Hp:2 * Hp])
        g_g = jnp.tanh(gates[:, 2 * Hp:3 * Hp])
        o_g = jax.nn.sigmoid(gates[:, 3 * Hp:4 * Hp])
        c_new = f_g * c + i_g * g_g
        h_new = o_g * jnp.tanh(c_new)
        hs_sc[pl.ds(row, TB), :] = h_new
        return h_new, c_new

    if T <= 16:
        unroll = True                                  # small T: full unroll is cheap
    else:
        unroll = 4 if T % 4 == 0 else (2 if T % 2 == 0 else 1)
    h_T, c_T = jax.lax.fori_loop(0, T, step, (h0_ref[...], c0_ref[...]),
                                 unroll=unroll)

    # Hoisted, lane-dense vocab projection for ALL timesteps of this batch tile
    # (one big bf16 MXU op, f32 accumulate, unmasked lane-dense stores).
    scores_ref[...] = (jnp.dot(hs_sc[...].astype(bf16), wproj_ref[...],
                               preferred_element_type=jnp.float32)
                       + bproj_ref[...])

    # Final LSTM state, like nn.LSTM's (h_T, c_T).
    h_out_ref[...] = h_T
    c_out_ref[...] = c_T


def char_decoder_forward(input_ids, params, dec_hidden=None, *, batch_tile=None):
    """Pallas equivalent of CharDecoder.forward.

    input_ids : (T, B) int32
    params    : dict with emb (V,E), w_ih (4H,E), w_hh (4H,H), b_ih (4H,),
                b_hh (4H,), w_proj (V,H), b_proj (V,)
    dec_hidden: optional tuple of (1, B, H) tensors
    batch_tile: optional batch tile (multiple of 8).  None = one tile (v5e/v6e);
                set e.g. Bp//2 on v7x so the "parallel" grid axis feeds both cores.
    returns   : scores (T, B, V), (h_t (1,B,H), c_t (1,B,H))
    """
    f32, bf16 = jnp.float32, jnp.bfloat16
    T, B = input_ids.shape
    V, E = params["emb"].shape
    H = params["w_hh"].shape[1]

    LANE, SUB = 128, 8
    Hp = _round_up(H, LANE)          # each gate block padded to a full lane tile
    Vp = _round_up(V, LANE)          # lane-dense scores output
    Bp = _round_up(B, SUB)           # sublane-aligned batch rows
    if batch_tile is None:
        TB = Bp                      # single batch tile
    else:
        TB = _round_up(min(batch_tile, Bp), SUB)
        Bp = _round_up(Bp, TB)       # make Bp divisible by the tile
    NB = Bp // TB

    # Gate-blocked zero padding: gate k occupies rows [k*Hp, k*Hp + H); the rest are
    # zero, so padded state columns stay exactly zero through the recurrence
    # (sigmoid(0)=0.5 forget gate only ever decays a zero c; requires c0 padded cols = 0,
    # which the wrapper guarantees below).
    def gate_pad_rows(w):                                   # (4H, C) -> (4Hp, C)
        c = w.shape[1]
        return jnp.pad(w.reshape(4, H, c),
                       ((0, 0), (0, Hp - H), (0, 0))).reshape(4 * Hp, c)

    # ---- Fold embedding + W_ih + biases into one gather table (wrapper-side glue) ----
    wih_gp = gate_pad_rows(params["w_ih"].astype(f32))                         # (4Hp, E)
    bias_gp = jnp.pad((params["b_ih"] + params["b_hh"]).astype(f32).reshape(4, H),
                      ((0, 0), (0, Hp - H))).reshape(4 * Hp)                   # (4Hp,)
    xw_table = params["emb"].astype(f32) @ wih_gp.T + bias_gp                  # (V, 4Hp)

    xw = jnp.take(xw_table, input_ids, axis=0)                                 # (T, B, 4Hp)
    xw = jnp.pad(xw, ((0, 0), (0, Bp - B), (0, 0)))                            # (T, Bp, 4Hp)
    # Per-batch-tile, time-major rows: tile i holds rows [t*TB + tb].
    xw = xw.reshape(T, NB, TB, 4 * Hp).transpose(1, 0, 2, 3).reshape(NB, T * TB, 4 * Hp)

    if dec_hidden is None:
        h0 = jnp.zeros((Bp, Hp), f32)
        c0 = jnp.zeros((Bp, Hp), f32)
    else:
        h0 = jnp.zeros((Bp, Hp), f32).at[:B, :H].set(
            dec_hidden[0].reshape(B, H).astype(f32))
        c0 = jnp.zeros((Bp, Hp), f32).at[:B, :H].set(
            dec_hidden[1].reshape(B, H).astype(f32))
    h0 = h0.reshape(NB, TB, Hp)
    c0 = c0.reshape(NB, TB, Hp)

    # bf16 MXU operands (padding stays exactly zero under the cast); f32 accumulation
    # is requested in-kernel via preferred_element_type.
    whh_t = gate_pad_rows(
        jnp.pad(params["w_hh"].astype(f32), ((0, 0), (0, Hp - H)))).T.astype(bf16)   # (Hp, 4Hp)
    wproj_t = jnp.pad(params["w_proj"].astype(f32),
                      ((0, Vp - V), (0, Hp - H))).T.astype(bf16)                      # (Hp, Vp)
    bproj = jnp.pad(params["b_proj"].astype(f32), (0, Vp - V)).reshape(1, Vp)         # (1, Vp)

    # ---- Explicit VMEM budget: double-buffered I/O blocks + scratch + headroom ----
    b_xw = T * TB * 4 * Hp * 4
    b_scores = T * TB * Vp * 4
    b_state = TB * Hp * 4
    b_weights = Hp * 4 * Hp * 2 + Hp * Vp * 2 + Vp * 4
    est = 2 * (b_xw + b_scores + 4 * b_state + b_weights) + T * TB * Hp * 4
    try:
        phys_vmem = int(pltpu.get_tpu_info().vmem_capacity_bytes)
    except Exception:
        phys_vmem = 64 * 1024 * 1024
    vmem_limit = int(min(max(2 * est, 32 * 1024 * 1024), phys_vmem * 9 // 10))

    kernel = functools.partial(_char_decoder_kernel,
                               seq_len=T, batch_tile=TB, hidden_pad=Hp)

    scores_p, h_t, c_t = pl.pallas_call(
        kernel,
        out_shape=(
            jax.ShapeDtypeStruct((NB, T * TB, Vp), f32),
            jax.ShapeDtypeStruct((NB, TB, Hp), f32),
            jax.ShapeDtypeStruct((NB, TB, Hp), f32),
        ),
        grid_spec=pl.GridSpec(
            grid=(NB,),                                              # independent batch tiles
            in_specs=[
                pl.BlockSpec((None, T * TB, 4 * Hp), lambda i: (i, 0, 0)),   # xW+bias (folded)
                pl.BlockSpec((None, TB, Hp), lambda i: (i, 0, 0)),           # h0 tile
                pl.BlockSpec((None, TB, Hp), lambda i: (i, 0, 0)),           # c0 tile
                pl.BlockSpec((Hp, 4 * Hp), lambda i: (0, 0)),                # W_hh^T (bf16)
                pl.BlockSpec((Hp, Vp), lambda i: (0, 0)),                    # W_proj^T (bf16)
                pl.BlockSpec((1, Vp), lambda i: (0, 0)),                     # b_proj
            ],
            out_specs=[
                pl.BlockSpec((None, T * TB, Vp), lambda i: (i, 0, 0)),       # scores (lane-dense)
                pl.BlockSpec((None, TB, Hp), lambda i: (i, 0, 0)),           # h_T tile
                pl.BlockSpec((None, TB, Hp), lambda i: (i, 0, 0)),           # c_T tile
            ],
            scratch_shapes=[
                pltpu.VMEM((T * TB, Hp), jnp.float32),                       # per-step hiddens
            ],
        ),
        compiler_params=pltpu.CompilerParams(
            dimension_semantics=("parallel",),         # batch tiles -> megacore on v7x
            vmem_limit_bytes=vmem_limit,
        ),
    )(xw, h0, c0, whh_t, wproj_t, bproj)

    # Strip padding / undo batch tiling (keeps downstream softmax free of padded logits).
    scores = (scores_p.reshape(NB, T, TB, Vp)
              .transpose(1, 0, 2, 3)
              .reshape(T, Bp, Vp)[:, :B, :V])
    h_out = h_t.reshape(Bp, Hp)[:B, :H][None]
    c_out = c_t.reshape(Bp, Hp)[:B, :H][None]
    return scores, (h_out, c_out)


def _reference_forward(input_ids, params, dec_hidden=None):
    """Pure-JAX f32 reference of CharDecoder.forward (for correctness check)."""
    T, B = input_ids.shape
    H = params["w_hh"].shape[1]
    emb = jnp.take(params["emb"], input_ids, axis=0)
    if dec_hidden is None:
        h = jnp.zeros((B, H), jnp.float32)
        c = jnp.zeros((B, H), jnp.float32)
    else:
        h = dec_hidden[0].reshape(B, H)
        c = dec_hidden[1].reshape(B, H)

    def step(carry, x_t):
        h, c = carry
        gates = (x_t @ params["w_ih"].T + h @ params["w_hh"].T
                 + params["b_ih"] + params["b_hh"])
        i_g = jax.nn.sigmoid(gates[:, 0 * H:1 * H])
        f_g = jax.nn.sigmoid(gates[:, 1 * H:2 * H])
        g_g = jnp.tanh(gates[:, 2 * H:3 * H])
        o_g = jax.nn.sigmoid(gates[:, 3 * H:4 * H])
        c_new = f_g * c + i_g * g_g
        h_new = o_g * jnp.tanh(c_new)
        return (h_new, c_new), h_new

    (h_T, c_T), hs = jax.lax.scan(step, (h, c), emb)
    scores = hs @ params["w_proj"].T + params["b_proj"]
    return scores, (h_T[None], c_T[None])


if __name__ == "__main__":
    # Shapes consistent with CharDecoder.forward.
    H = 32                     # hidden_size
    E = 16                     # char_embedding_size
    V = 30                     # len(target_vocab.char2id)
    char_pad = 0               # padding_idx of the embedding
    ATOL = RTOL = 3e-2         # relaxed for bf16 MXU operands (f32 accumulation)

    key = jax.random.PRNGKey(0)
    ks = jax.random.split(key, 12)

    emb = 0.1 * jax.random.normal(ks[0], (V, E), jnp.float32)
    emb = emb.at[char_pad].set(0.0)          # nn.Embedding padding_idx row = 0
    params = dict(
        emb=emb,
        w_ih=0.1 * jax.random.normal(ks[1], (4 * H, E), jnp.float32),
        w_hh=0.1 * jax.random.normal(ks[2], (4 * H, H), jnp.float32),
        b_ih=0.1 * jax.random.normal(ks[3], (4 * H,), jnp.float32),
        b_hh=0.1 * jax.random.normal(ks[4], (4 * H,), jnp.float32),
        w_proj=0.1 * jax.random.normal(ks[5], (V, H), jnp.float32),
        b_proj=0.1 * jax.random.normal(ks[6], (V,), jnp.float32),
    )

    # --- Config 1: T=8, B=2, single batch tile (grid=(1,)), fully unrolled loop ---
    T, B = 8, 2
    input_ids = jax.random.randint(ks[7], (T, B), 0, V, dtype=jnp.int32)
    dec_hidden = (0.1 * jax.random.normal(ks[8], (1, B, H), jnp.float32),
                  0.1 * jax.random.normal(jax.random.fold_in(ks[8], 1),
                                          (1, B, H), jnp.float32))

    scores, (h_t, c_t) = char_decoder_forward(input_ids, params, dec_hidden)
    jax.block_until_ready((scores, h_t, c_t))
    ref_scores, (ref_h, ref_c) = _reference_forward(input_ids, params, dec_hidden)
    assert scores.shape == (T, B, V) and h_t.shape == (1, B, H) and c_t.shape == (1, B, H)
    assert jnp.allclose(scores, ref_scores, atol=ATOL, rtol=RTOL)
    assert jnp.allclose(h_t, ref_h, atol=ATOL, rtol=RTOL)
    assert jnp.allclose(c_t, ref_c, atol=ATOL, rtol=RTOL)

    # dec_hidden=None path.
    scores0, (h0_out, c0_out) = char_decoder_forward(input_ids, params, None)
    jax.block_until_ready((scores0, h0_out, c0_out))
    ref0, (rh0, rc0) = _reference_forward(input_ids, params, None)
    assert jnp.allclose(scores0, ref0, atol=ATOL, rtol=RTOL)
    assert jnp.allclose(h0_out, rh0, atol=ATOL, rtol=RTOL)
    assert jnp.allclose(c0_out, rc0, atol=ATOL, rtol=RTOL)

    # --- Config 2: T=20, B=20 with batch_tile=8 -> multi-tile "parallel" grid (grid=(3,))
    #     and partial (4x) loop unroll.  Exercises the v7x megacore / VMEM-scaling path. ---
    T2, B2 = 20, 20
    ids2 = jax.random.randint(ks[9], (T2, B2), 0, V, dtype=jnp.int32)
    dh2 = (0.1 * jax.random.normal(ks[10], (1, B2, H), jnp.float32),
           0.1 * jax.random.normal(ks[11], (1, B2, H), jnp.float32))
    scores2, (h2, c2) = char_decoder_forward(ids2, params, dh2, batch_tile=8)
    jax.block_until_ready((scores2, h2, c2))
    ref2, (rh2, rc2) = _reference_forward(ids2, params, dh2)
    assert scores2.shape == (T2, B2, V) and h2.shape == (1, B2, H)
    assert jnp.allclose(scores2, ref2, atol=ATOL, rtol=RTOL)
    assert jnp.allclose(h2, rh2, atol=ATOL, rtol=RTOL)
    assert jnp.allclose(c2, rc2, atol=ATOL, rtol=RTOL)

    # TODO(synk): train_forward's CrossEntropyLoss and decode_greedy's string
    # post-processing (python-side vocab lookup) are host-side glue, not kernel work.
    print("KERNEL_OK")
</pallas_src>

<mosaic_0001>
module attributes {stable_mosaic.version = 11 : i64} {
  func.func @_char_decoder_kernel(%arg0: i32, %arg1: memref<1x64x512xf32, #tpu.memory_space<vmem>>, %arg2: memref<1x8x128xf32, #tpu.memory_space<vmem>>, %arg3: memref<1x8x128xf32, #tpu.memory_space<vmem>>, %arg4: memref<128x512xbf16, #tpu.memory_space<vmem>>, %arg5: memref<128x128xbf16, #tpu.memory_space<vmem>>, %arg6: memref<1x128xf32, #tpu.memory_space<vmem>>, %arg7: memref<1x64x128xf32, #tpu.memory_space<vmem>>, %arg8: memref<1x8x128xf32, #tpu.memory_space<vmem>>, %arg9: memref<1x8x128xf32, #tpu.memory_space<vmem>>, %arg10: memref<64x128xf32, #tpu.memory_space<vmem>>) attributes {dimension_semantics = [#tpu.dimension_semantics<parallel>], iteration_bounds = array<i64: 1>, scalar_prefetch = 0 : i64, scratch_operands = 1 : i64, tpu.core_type = #tpu.core_type<tc>, window_params = [{transform_indices = @transform_0, window_bounds = array<i64: 1, 64, 512>}, {transform_indices = @transform_1, window_bounds = array<i64: 1, 8, 128>}, {transform_indices = @transform_2, window_bounds = array<i64: 1, 8, 128>}, {pipeline_mode = #tpu.pipeline_mode<synchronous>, transform_indices = @transform_3, window_bounds = array<i64: 128, 512>}, {pipeline_mode = #tpu.pipeline_mode<synchronous>, transform_indices = @transform_4, window_bounds = array<i64: 128, 128>}, {pipeline_mode = #tpu.pipeline_mode<synchronous>, transform_indices = @transform_5, window_bounds = array<i64: 1, 128>}, {transform_indices = @transform_6, window_bounds = array<i64: 1, 64, 128>}, {transform_indices = @transform_7, window_bounds = array<i64: 1, 8, 128>}, {transform_indices = @transform_8, window_bounds = array<i64: 1, 8, 128>}]} {
    %c0 = arith.constant 0 : index
    %c0_0 = arith.constant 0 : index
    %c0_1 = arith.constant 0 : index
    %0 = vector.load %arg2[%c0, %c0_0, %c0_1] : memref<1x8x128xf32, #tpu.memory_space<vmem>>, vector<1x8x128xf32>
    %1 = vector.shape_cast %0 : vector<1x8x128xf32> to vector<8x128xf32>
    %c0_2 = arith.constant 0 : index
    %c0_3 = arith.constant 0 : index
    %c0_4 = arith.constant 0 : index
    %2 = vector.load %arg3[%c0_2, %c0_3, %c0_4] : memref<1x8x128xf32, #tpu.memory_space<vmem>>, vector<1x8x128xf32>
    %3 = vector.shape_cast %2 : vector<1x8x128xf32> to vector<8x128xf32>
    %c0_i32 = arith.constant 0 : i32
    %c8_i32 = arith.constant 8 : i32
    %4 = arith.muli %c0_i32, %c8_i32 : i32
    %5 = tpu.assume_multiple %4, 8 : i32
    %c0_5 = arith.constant 0 : index
    %6 = arith.index_cast %5 : i32 to index
    %c0_6 = arith.constant 0 : index
    %7 = vector.load %arg1[%c0_5, %6, %c0_6] : memref<1x64x512xf32, #tpu.memory_space<vmem>>, vector<1x8x512xf32>
    %8 = vector.shape_cast %7 : vector<1x8x512xf32> to vector<8x512xf32>
    %9 = arith.truncf %1 : vector<8x128xf32> to vector<8x128xbf16>
    %c0_7 = arith.constant 0 : index
    %c0_8 = arith.constant 0 : index
    %10 = vector.load %arg4[%c0_7, %c0_8] : memref<128x512xbf16, #tpu.memory_space<vmem>>, vector<128x512xbf16>
    %cst = arith.constant dense<0.000000e+00> : vector<8x512xf32>
    %11 = tpu.matmul %9, %10, %cst {dimension_numbers = #tpu.dot_dimension_numbers<[1], [0], [0], [1], [0, 0, 1, 1], [], []>} : vector<8x128xbf16>, vector<128x512xbf16>, vector<8x512xf32> -> vector<8x512xf32>
    %12 = arith.addf %8, %11 : vector<8x512xf32>
    %13 = vector.extract_strided_slice %12 {offsets = [0, 0], sizes = [8, 128], strides = [1, 1]} : vector<8x512xf32> to vector<8x128xf32>
    %14 = arith.negf %13 : vector<8x128xf32>
    %15 = math.exp %14 : vector<8x128xf32>
    %cst_9 = arith.constant 1.000000e+00 : f32
    %16 = vector.broadcast %cst_9 : f32 to vector<8x128xf32>
    %17 = arith.addf %16, %15 : vector<8x128xf32>
    %18 = arith.divf %16, %17 : vector<8x128xf32>
    %19 = vector.extract_strided_slice %12 {offsets = [0, 128], sizes = [8, 128], strides = [1, 1]} : vector<8x512xf32> to vector<8x128xf32>
    %20 = arith.negf %19 : vector<8x128xf32>
    %21 = math.exp %20 : vector<8x128xf32>
    %cst_10 = arith.constant 1.000000e+00 : f32
    %22 = vector.broadcast %cst_10 : f32 to vector<8x128xf32>
    %23 = arith.addf %22, %21 : vector<8x128xf32>
    %24 = arith.divf %22, %23 : vector<8x128xf32>
    %25 = vector.extract_strided_slice %12 {offsets = [0, 256], sizes = [8, 128], strides = [1, 1]} : vector<8x512xf32> to vector<8x128xf32>
    %26 = math.tanh %25 : vector<8x128xf32>
    %27 = vector.extract_strided_slice %12 {offsets = [0, 384], sizes = [8, 128], strides = [1, 1]} : vector<8x512xf32> to vector<8x128xf32>
    %28 = arith.negf %27 : vector<8x128xf32>
    %29 = math.exp %28 : vector<8x128xf32>
    %cst_11 = arith.constant 1.000000e+00 : f32
    %30 = vector.broadcast %cst_11 : f32 to vector<8x128xf32>
    %31 = arith.addf %30, %29 : vector<8x128xf32>
    %32 = arith.divf %30, %31 : vector<8x128xf32>
    %33 = arith.mulf %24, %3 : vector<8x128xf32>
    %34 = arith.mulf %18, %26 : vector<8x128xf32>
    %35 = arith.addf %33, %34 : vector<8x128xf32>
    %36 = math.tanh %35 : vector<8x128xf32>
    %37 = arith.mulf %32, %36 : vector<8x128xf32>
    %38 = arith.index_cast %5 : i32 to index
    %c0_12 = arith.constant 0 : index
    %39 = vector.load %arg10[%38, %c0_12] : memref<64x128xf32, #tpu.memory_space<vmem>>, vector<8x128xf32>
    tpu.vector_store %arg10[%38, %c0_12], %37 {strides = array<i32>} : memref<64x128xf32, #tpu.memory_space<vmem>>, vector<8x128xf32>,
    %c1_i32 = arith.constant 1 : i32
    %c8_i32_13 = arith.constant 8 : i32
    %40 = arith.muli %c1_i32, %c8_i32_13 : i32
    %41 = tpu.assume_multiple %40, 8 : i32
    %c0_14 = arith.constant 0 : index
    %42 = arith.index_cast %41 : i32 to index
    %c0_15 = arith.constant 0 : index
    %43 = vector.load %arg1[%c0_14, %42, %c0_15] : memref<1x64x512xf32, #tpu.memory_space<vmem>>, vector<1x8x512xf32>
    %44 = vector.shape_cast %43 : vector<1x8x512xf32> to vector<8x512xf32>
    %45 = arith.truncf %37 : vector<8x128xf32> to vector<8x128xbf16>
    %c0_16 = arith.constant 0 : index
    %c0_17 = arith.constant 0 : index
    %46 = vector.load %arg4[%c0_16, %c0_17] : memref<128x512xbf16, #tpu.memory_space<vmem>>, vector<128x512xbf16>
    %cst_18 = arith.constant dense<0.000000e+00> : vector<8x512xf32>
    %47 = tpu.matmul %45, %46, %cst_18 {dimension_numbers = #tpu.dot_dimension_numbers<[1], [0], [0], [1], [0, 0, 1, 1], [], []>} : vector<8x128xbf16>, vector<128x512xbf16>, vector<8x512xf32> -> vector<8x512xf32>
    %48 = arith.addf %44, %47 : vector<8x512xf32>
    %49 = vector.extract_strided_slice %48 {offsets = [0, 0], sizes = [8, 128], strides = [1, 1]} : vector<8x512xf32> to vector<8x128xf32>
    %50 = arith.negf %49 : vector<8x128xf32>
    %51 = math.exp %50 : vector<8x128xf32>
    %cst_19 = arith.constant 1.000000e+00 : f32
    %52 = vector.broadcast %cst_19 : f32 to vector<8x128xf32>
    %53 = arith.addf %52, %51 : vector<8x128xf32>
    %54 = arith.divf %52, %53 : vector<8x128xf32>
    %55 = vector.extract_strided_slice %48 {offsets = [0, 128], sizes = [8, 128], strides = [1, 1]} : vector<8x512xf32> to vector<8x128xf32>
    %56 = arith.negf %55 : vector<8x128xf32>
    %57 = math.exp %56 : vector<8x128xf32>
    %cst_20 = arith.constant 1.000000e+00 : f32
    %58 = vector.broadcast %cst_20 : f32 to vector<8x128xf32>
    %59 = arith.addf %58, %57 : vector<8x128xf32>
    %60 = arith.divf %58, %59 : vector<8x128xf32>
    %61 = vector.extract_strided_slice %48 {offsets = [0, 256], sizes = [8, 128], strides = [1, 1]} : vector<8x512xf32> to vector<8x128xf32>
    %62 = math.tanh %61 : vector<8x128xf32>
    %63 = vector.extract_strided_slice %48 {offsets = [0, 384], sizes = [8, 128], strides = [1, 1]} : vector<8x512xf32> to vector<8x128xf32>
    %64 = arith.negf %63 : vector<8x128xf32>
    %65 = math.exp %64 : vector<8x128xf32>
    %cst_21 = arith.constant 1.000000e+00 : f32
    %66 = vector.broadcast %cst_21 : f32 to vector<8x128xf32>
    %67 = arith.addf %66, %65 : vector<8x128xf32>
    %68 = arith.divf %66, %67 : vector<8x128xf32>
    %69 = arith.mulf %60, %35 : vector<8x128xf32>
    %70 = arith.mulf %54, %62 : vector<8x128xf32>
    %71 = arith.addf %69, %70 : vector<8x128xf32>
    %72 = math.tanh %71 : vector<8x128xf32>
    %73 = arith.mulf %68, %72 : vector<8x128xf32>
    %74 = arith.index_cast %41 : i32 to index
    %c0_22 = arith.constant 0 : index
    %75 = vector.load %arg10[%74, %c0_22] : memref<64x128xf32, #tpu.memory_space<vmem>>, vector<8x128xf32>
    tpu.vector_store %arg10[%74, %c0_22], %73 {strides = array<i32>} : memref<64x128xf32, #tpu.memory_space<vmem>>, vector<8x128xf32>,
    %c2_i32 = arith.constant 2 : i32
    %c8_i32_23 = arith.constant 8 : i32
    %76 = arith.muli %c2_i32, %c8_i32_23 : i32
    %77 = tpu.assume_multiple %76, 8 : i32
    %c0_24 = arith.constant 0 : index
    %78 = arith.index_cast %77 : i32 to index
    %c0_25 = arith.constant 0 : index
    %79 = vector.load %arg1[%c0_24, %78, %c0_25] : memref<1x64x512xf32, #tpu.memory_space<vmem>>, vector<1x8x512xf32>
    %80 = vector.shape_cast %79 : vector<1x8x512xf32> to vector<8x512xf32>
    %81 = arith.truncf %73 : vector<8x128xf32> to vector<8x128xbf16>
    %c0_26 = arith.constant 0 : index
    %c0_27 = arith.constant 0 : index
    %82 = vector.load %arg4[%c0_26, %c0_27] : memref<128x512xbf16, #tpu.memory_space<vmem>>, vector<128x512xbf16>
    %cst_28 = arith.constant dense<0.000000e+00> : vector<8x512xf32>
    %83 = tpu.matmul %81, %82, %cst_28 {dimension_numbers = #tpu.dot_dimension_numbers<[1], [0], [0], [1], [0, 0, 1, 1], [], []>} : vector<8x128xbf16>, vector<128x512xbf16>, vector<8x512xf32> -> vector<8x512xf32>
    %84 = arith.addf %80, %83 : vector<8x512xf32>
    %85 = vector.extract_strided_slice %84 {offsets = [0, 0], sizes = [8, 128], strides = [1, 1]} : vector<8x512xf32> to vector<8x128xf32>
    %86 = arith.negf %85 : vector<8x128xf32>
    %87 = math.exp %86 : vector<8x128xf32>
    %cst_29 = arith.constant 1.000000e+00 : f32
    %88 = vector.broadcast %cst_29 : f32 to vector<8x128xf32>
    %89 = arith.addf %88, %87 : vector<8x128xf32>
    %90 = arith.divf %88, %89 : vector<8x128xf32>
    %91 = vector.extract_strided_slice %84 {offsets = [0, 128], sizes = [8, 128], strides = [1, 1]} : vector<8x512xf32> to vector<8x128xf32>
    %92 = arith.negf %91 : vector<8x128xf32>
    %93 = math.exp %92 : vector<8x128xf32>
    %cst_30 = arith.constant 1.000000e+00 : f32
    %94 = vector.broadcast %cst_30 : f32 to vector<8x128xf32>
    %95 = arith.addf %94, %93 : vector<8x128xf32>
    %96 = arith.divf %94, %95 : vector<8x128xf32>
    %97 = vector.extract_strided_slice %84 {offsets = [0, 256], sizes = [8, 128], strides = [1, 1]} : vector<8x512xf32> to vector<8x128xf32>
    %98 = math.tanh %97 : vector<8x128xf32>
    %99 = vector.extract_strided_slice %84 {offsets = [0, 384], sizes = [8, 128], strides = [1, 1]} : vector<8x512xf32> to vector<8x128xf32>
    %100 = arith.negf %99 : vector<8x128xf32>
    %101 = math.exp %100 : vector<8x128xf32>
    %cst_31 = arith.constant 1.000000e+00 : f32
    %102 = vector.broadcast %cst_31 : f32 to vector<8x128xf32>
    %103 = arith.addf %102, %101 : vector<8x128xf32>
    %104 = arith.divf %102, %103 : vector<8x128xf32>
    %105 = arith.mulf %96, %71 : vector<8x128xf32>
    %106 = arith.mulf %90, %98 : vector<8x128xf32>
    %107 = arith.addf %105, %106 : vector<8x128xf32>
    %108 = math.tanh %107 : vector<8x128xf32>
    %109 = arith.mulf %104, %108 : vector<8x128xf32>
    %110 = arith.index_cast %77 : i32 to index
    %c0_32 = arith.constant 0 : index
    %111 = vector.load %arg10[%110, %c0_32] : memref<64x128xf32, #tpu.memory_space<vmem>>, vector<8x128xf32>
    tpu.vector_store %arg10[%110, %c0_32], %109 {strides = array<i32>} : memref<64x128xf32, #tpu.memory_space<vmem>>, vector<8x128xf32>,
    %c3_i32 = arith.constant 3 : i32
    %c8_i32_33 = arith.constant 8 : i32
    %112 = arith.muli %c3_i32, %c8_i32_33 : i32
    %113 = tpu.assume_multiple %112, 8 : i32
    %c0_34 = arith.constant 0 : index
    %114 = arith.index_cast %113 : i32 to index
    %c0_35 = arith.constant 0 : index
    %115 = vector.load %arg1[%c0_34, %114, %c0_35] : memref<1x64x512xf32, #tpu.memory_space<vmem>>, vector<1x8x512xf32>
    %116 = vector.shape_cast %115 : vector<1x8x512xf32> to vector<8x512xf32>
    %117 = arith.truncf %109 : vector<8x128xf32> to vector<8x128xbf16>
    %c0_36 = arith.constant 0 : index
    %c0_37 = arith.constant 0 : index
    %118 = vector.load %arg4[%c0_36, %c0_37] : memref<128x512xbf16, #tpu.memory_space<vmem>>, vector<128x512xbf16>
    %cst_38 = arith.constant dense<0.000000e+00> : vector<8x512xf32>
    %119 = tpu.matmul %117, %118, %cst_38 {dimension_numbers = #tpu.dot_dimension_numbers<[1], [0], [0], [1], [0, 0, 1, 1], [], []>} : vector<8x128xbf16>, vector<128x512xbf16>, vector<8x512xf32> -> vector<8x512xf32>
    %120 = arith.addf %116, %119 : vector<8x512xf32>
    %121 = vector.extract_strided_slice %120 {offsets = [0, 0], sizes = [8, 128], strides = [1, 1]} : vector<8x512xf32> to vector<8x128xf32>
    %122 = arith.negf %121 : vector<8x128xf32>
    %123 = math.exp %122 : vector<8x128xf32>
    %cst_39 = arith.constant 1.000000e+00 : f32
    %124 = vector.broadcast %cst_39 : f32 to vector<8x128xf32>
    %125 = arith.addf %124, %123 : vector<8x128xf32>
    %126 = arith.divf %124, %125 : vector<8x128xf32>
    %127 = vector.extract_strided_slice %120 {offsets = [0, 128], sizes = [8, 128], strides = [1, 1]} : vector<8x512xf32> to vector<8x128xf32>
    %128 = arith.negf %127 : vector<8x128xf32>
    %129 = math.exp %128 : vector<8x128xf32>
    %cst_40 = arith.constant 1.000000e+00 : f32
    %130 = vector.broadcast %cst_40 : f32 to vector<8x128xf32>
    %131 = arith.addf %130, %129 : vector<8x128xf32>
    %132 = arith.divf %130, %131 : vector<8x128xf32>
    %133 = vector.extract_strided_slice %120 {offsets = [0, 256], sizes = [8, 128], strides = [1, 1]} : vector<8x512xf32> to vector<8x128xf32>
    %134 = math.tanh %133 : vector<8x128xf32>
    %135 = vector.extract_strided_slice %120 {offsets = [0, 384], sizes = [8, 128], strides = [1, 1]} : vector<8x512xf32> to vector<8x128xf32>
    %136 = arith.negf %135 : vector<8x128xf32>
    %137 = math.exp %136 : vector<8x128xf32>
    %cst_41 = arith.constant 1.000000e+00 : f32
    %138 = vector.broadcast %cst_41 : f32 to vector<8x128xf32>
    %139 = arith.addf %138, %137 : vector<8x128xf32>
    %140 = arith.divf %138, %139 : vector<8x128xf32>
    %141 = arith.mulf %132, %107 : vector<8x128xf32>
    %142 = arith.mulf %126, %134 : vector<8x128xf32>
    %143 = arith.addf %141, %142 : vector<8x128xf32>
    %144 = math.tanh %143 : vector<8x128xf32>
    %145 = arith.mulf %140, %144 : vector<8x128xf32>
    %146 = arith.index_cast %113 : i32 to index
    %c0_42 = arith.constant 0 : index
    %147 = vector.load %arg10[%146, %c0_42] : memref<64x128xf32, #tpu.memory_space<vmem>>, vector<8x128xf32>
    tpu.vector_store %arg10[%146, %c0_42], %145 {strides = array<i32>} : memref<64x128xf32, #tpu.memory_space<vmem>>, vector<8x128xf32>,
    %c4_i32 = arith.constant 4 : i32
    %c8_i32_43 = arith.constant 8 : i32
    %148 = arith.muli %c4_i32, %c8_i32_43 : i32
    %149 = tpu.assume_multiple %148, 8 : i32
    %c0_44 = arith.constant 0 : index
    %150 = arith.index_cast %149 : i32 to index
    %c0_45 = arith.constant 0 : index
    %151 = vector.load %arg1[%c0_44, %150, %c0_45] : memref<1x64x512xf32, #tpu.memory_space<vmem>>, vector<1x8x512xf32>
    %152 = vector.shape_cast %151 : vector<1x8x512xf32> to vector<8x512xf32>
    %153 = arith.truncf %145 : vector<8x128xf32> to vector<8x128xbf16>
    %c0_46 = arith.constant 0 : index
    %c0_47 = arith.constant 0 : index
    %154 = vector.load %arg4[%c0_46, %c0_47] : memref<128x512xbf16, #tpu.memory_space<vmem>>, vector<128x512xbf16>
    %cst_48 = arith.constant dense<0.000000e+00> : vector<8x512xf32>
    %155 = tpu.matmul %153, %154, %cst_48 {dimension_numbers = #tpu.dot_dimension_numbers<[1], [0], [0], [1], [0, 0, 1, 1], [], []>} : vector<8x128xbf16>, vector<128x512xbf16>, vector<8x512xf32> -> vector<8x512xf32>
    %156 = arith.addf %152, %155 : vector<8x512xf32>
    %157 = vector.extract_strided_slice %156 {offsets = [0, 0], sizes = [8, 128], strides = [1, 1]} : vector<8x512xf32> to vector<8x128xf32>
    %158 = arith.negf %157 : vector<8x128xf32>
    %159 = math.exp %158 : vector<8x128xf32>
    %cst_49 = arith.constant 1.000000e+00 : f32
    %160 = vector.broadcast %cst_49 : f32 to vector<8x128xf32>
    %161 = arith.addf %160, %159 : vector<8x128xf32>
    %162 = arith.divf %160, %161 : vector<8x128xf32>
    %163 = vector.extract_strided_slice %156 {offsets = [0, 128], sizes = [8, 128], strides = [1, 1]} : vector<8x512xf32> to vector<8x128xf32>
    %164 = arith.negf %163 : vector<8x128xf32>
    %165 = math.exp %164 : vector<8x128xf32>
    %cst_50 = arith.constant 1.000000e+00 : f32
    %166 = vector.broadcast %cst_50 : f32 to vector<8x128xf32>
    %167 = arith.addf %166, %165 : vector<8x128xf32>
    %168 = arith.divf %166, %167 : vector<8x128xf32>
    %169 = vector.extract_strided_slice %156 {offsets = [0, 256], sizes = [8, 128], strides = [1, 1]} : vector<8x512xf32> to vector<8x128xf32>
    %170 = math.tanh %169 : vector<8x128xf32>
    %171 = vector.extract_strided_slice %156 {offsets = [0, 384], sizes = [8, 128], strides = [1, 1]} : vector<8x512xf32> to vector<8x128xf32>
    %172 = arith.negf %171 : vector<8x128xf32>
    %173 = math.exp %172 : vector<8x128xf32>
    %cst_51 = arith.constant 1.000000e+00 : f32
    %174 = vector.broadcast %cst_51 : f32 to vector<8x128xf32>
    %175 = arith.addf %174, %173 : vector<8x128xf32>
    %176 = arith.divf %174, %175 : vector<8x128xf32>
    %177 = arith.mulf %168, %143 : vector<8x128xf32>
    %178 = arith.mulf %162, %170 : vector<8x128xf32>
    %179 = arith.addf %177, %178 : vector<8x128xf32>
    %180 = math.tanh %179 : vector<8x128xf32>
    %181 = arith.mulf %176, %180 : vector<8x128xf32>
    %182 = arith.index_cast %149 : i32 to index
    %c0_52 = arith.constant 0 : index
    %183 = vector.load %arg10[%182, %c0_52] : memref<64x128xf32, #tpu.memory_space<vmem>>, vector<8x128xf32>
    tpu.vector_store %arg10[%182, %c0_52], %181 {strides = array<i32>} : memref<64x128xf32, #tpu.memory_space<vmem>>, vector<8x128xf32>,
    %c5_i32 = arith.constant 5 : i32
    %c8_i32_53 = arith.constant 8 : i32
    %184 = arith.muli %c5_i32, %c8_i32_53 : i32
    %185 = tpu.assume_multiple %184, 8 : i32
    %c0_54 = arith.constant 0 : index
    %186 = arith.index_cast %185 : i32 to index
    %c0_55 = arith.constant 0 : index
    %187 = vector.load %arg1[%c0_54, %186, %c0_55] : memref<1x64x512xf32, #tpu.memory_space<vmem>>, vector<1x8x512xf32>
    %188 = vector.shape_cast %187 : vector<1x8x512xf32> to vector<8x512xf32>
    %189 = arith.truncf %181 : vector<8x128xf32> to vector<8x128xbf16>
    %c0_56 = arith.constant 0 : index
    %c0_57 = arith.constant 0 : index
    %190 = vector.load %arg4[%c0_56, %c0_57] : memref<128x512xbf16, #tpu.memory_space<vmem>>, vector<128x512xbf16>
    %cst_58 = arith.constant dense<0.000000e+00> : vector<8x512xf32>
    %191 = tpu.matmul %189, %190, %cst_58 {dimension_numbers = #tpu.dot_dimension_numbers<[1], [0], [0], [1], [0, 0, 1, 1], [], []>} : vector<8x128xbf16>, vector<128x512xbf16>, vector<8x512xf32> -> vector<8x512xf32>
    %192 = arith.addf %188, %191 : vector<8x512xf32>
    %193 = vector.extract_strided_slice %192 {offsets = [0, 0], sizes = [8, 128], strides = [1, 1]} : vector<8x512xf32> to vector<8x128xf32>
    %194 = arith.negf %193 : vector<8x128xf32>
    %195 = math.exp %194 : vector<8x128xf32>
    %cst_59 = arith.constant 1.000000e+00 : f32
    %196 = vector.broadcast %cst_59 : f32 to vector<8x128xf32>
    %197 = arith.addf %196, %195 : vector<8x128xf32>
    %198 = arith.divf %196, %197 : vector<8x128xf32>
    %199 = vector.extract_strided_slice %192 {offsets = [0, 128], sizes = [8, 128], strides = [1, 1]} : vector<8x512xf32> to vector<8x128xf32>
    %200 = arith.negf %199 : vector<8x128xf32>
    %201 = math.exp %200 : vector<8x128xf32>
    %cst_60 = arith.constant 1.000000e+00 : f32
    %202 = vector.broadcast %cst_60 : f32 to vector<8x128xf32>
    %203 = arith.addf %202, %201 : vector<8x128xf32>
    %204 = arith.divf %202, %203 : vector<8x128xf32>
    %205 = vector.extract_strided_slice %192 {offsets = [0, 256], sizes = [8, 128], strides = [1, 1]} : vector<8x512xf32> to vector<8x128xf32>
    %206 = math.tanh %205 : vector<8x128xf32>
    %207 = vector.extract_strided_slice %192 {offsets = [0, 384], sizes = [8, 128], strides = [1, 1]} : vector<8x512xf32> to vector<8x128xf32>
    %208 = arith.negf %207 : vector<8x128xf32>
    %209 = math.exp %208 : vector<8x128xf32>
    %cst_61 = arith.constant 1.000000e+00 : f32
    %210 = vector.broadcast %cst_61 : f32 to vector<8x128xf32>
    %211 = arith.addf %210, %209 : vector<8x128xf32>
    %212 = arith.divf %210, %211 : vector<8x128xf32>
    %213 = arith.mulf %204, %179 : vector<8x128xf32>
    %214 = arith.mulf %198, %206 : vector<8x128xf32>
    %215 = arith.addf %213, %214 : vector<8x128xf32>
    %216 = math.tanh %215 : vector<8x128xf32>
    %217 = arith.mulf %212, %216 : vector<8x128xf32>
    %218 = arith.index_cast %185 : i32 to index
    %c0_62 = arith.constant 0 : index
    %219 = vector.load %arg10[%218, %c0_62] : memref<64x128xf32, #tpu.memory_space<vmem>>, vector<8x128xf32>
    tpu.vector_store %arg10[%218, %c0_62], %217 {strides = array<i32>} : memref<64x128xf32, #tpu.memory_space<vmem>>, vector<8x128xf32>,
    %c6_i32 = arith.constant 6 : i32
    %c8_i32_63 = arith.constant 8 : i32
    %220 = arith.muli %c6_i32, %c8_i32_63 : i32
    %221 = tpu.assume_multiple %220, 8 : i32
    %c0_64 = arith.constant 0 : index
    %222 = arith.index_cast %221 : i32 to index
    %c0_65 = arith.constant 0 : index
    %223 = vector.load %arg1[%c0_64, %222, %c0_65] : memref<1x64x512xf32, #tpu.memory_space<vmem>>, vector<1x8x512xf32>
    %224 = vector.shape_cast %223 : vector<1x8x512xf32> to vector<8x512xf32>
    %225 = arith.truncf %217 : vector<8x128xf32> to vector<8x128xbf16>
    %c0_66 = arith.constant 0 : index
    %c0_67 = arith.constant 0 : index
    %226 = vector.load %arg4[%c0_66, %c0_67] : memref<128x512xbf16, #tpu.memory_space<vmem>>, vector<128x512xbf16>
    %cst_68 = arith.constant dense<0.000000e+00> : vector<8x512xf32>
    %227 = tpu.matmul %225, %226, %cst_68 {dimension_numbers = #tpu.dot_dimension_numbers<[1], [0], [0], [1], [0, 0, 1, 1], [], []>} : vector<8x128xbf16>, vector<128x512xbf16>, vector<8x512xf32> -> vector<8x512xf32>
    %228 = arith.addf %224, %227 : vector<8x512xf32>
    %229 = vector.extract_strided_slice %228 {offsets = [0, 0], sizes = [8, 128], strides = [1, 1]} : vector<8x512xf32> to vector<8x128xf32>
    %230 = arith.negf %229 : vector<8x128xf32>
    %231 = math.exp %230 : vector<8x128xf32>
    %cst_69 = arith.constant 1.000000e+00 : f32
    %232 = vector.broadcast %cst_69 : f32 to vector<8x128xf32>
    %233 = arith.addf %232, %231 : vector<8x128xf32>
    %234 = arith.divf %232, %233 : vector<8x128xf32>
    %235 = vector.extract_strided_slice %228 {offsets = [0, 128], sizes = [8, 128], strides = [1, 1]} : vector<8x512xf32> to vector<8x128xf32>
    %236 = arith.negf %235 : vector<8x128xf32>
    %237 = math.exp %236 : vector<8x128xf32>
    %cst_70 = arith.constant 1.000000e+00 : f32
    %238 = vector.broadcast %cst_70 : f32 to vector<8x128xf32>
    %239 = arith.addf %238, %237 : vector<8x128xf32>
    %240 = arith.divf %238, %239 : vector<8x128xf32>
    %241 = vector.extract_strided_slice %228 {offsets = [0, 256], sizes = [8, 128], strides = [1, 1]} : vector<8x512xf32> to vector<8x128xf32>
    %242 = math.tanh %241 : vector<8x128xf32>
    %243 = vector.extract_strided_slice %228 {offsets = [0, 384], sizes = [8, 128], strides = [1, 1]} : vector<8x512xf32> to vector<8x128xf32>
    %244 = arith.negf %243 : vector<8x128xf32>
    %245 = math.exp %244 : vector<8x128xf32>
    %cst_71 = arith.constant 1.000000e+00 : f32
    %246 = vector.broadcast %cst_71 : f32 to vector<8x128xf32>
    %247 = arith.addf %246, %245 : vector<8x128xf32>
    %248 = arith.divf %246, %247 : vector<8x128xf32>
    %249 = arith.mulf %240, %215 : vector<8x128xf32>
    %250 = arith.mulf %234, %242 : vector<8x128xf32>
    %251 = arith.addf %249, %250 : vector<8x128xf32>
    %252 = math.tanh %251 : vector<8x128xf32>
    %253 = arith.mulf %248, %252 : vector<8x128xf32>
    %254 = arith.index_cast %221 : i32 to index
    %c0_72 = arith.constant 0 : index
    %255 = vector.load %arg10[%254, %c0_72] : memref<64x128xf32, #tpu.memory_space<vmem>>, vector<8x128xf32>
    tpu.vector_store %arg10[%254, %c0_72], %253 {strides = array<i32>} : memref<64x128xf32, #tpu.memory_space<vmem>>, vector<8x128xf32>,
    %c7_i32 = arith.constant 7 : i32
    %c8_i32_73 = arith.constant 8 : i32
    %256 = arith.muli %c7_i32, %c8_i32_73 : i32
    %257 = tpu.assume_multiple %256, 8 : i32
    %c0_74 = arith.constant 0 : index
    %258 = arith.index_cast %257 : i32 to index
    %c0_75 = arith.constant 0 : index
    %259 = vector.load %arg1[%c0_74, %258, %c0_75] : memref<1x64x512xf32, #tpu.memory_space<vmem>>, vector<1x8x512xf32>
    %260 = vector.shape_cast %259 : vector<1x8x512xf32> to vector<8x512xf32>
    %261 = arith.truncf %253 : vector<8x128xf32> to vector<8x128xbf16>
    %c0_76 = arith.constant 0 : index
    %c0_77 = arith.constant 0 : index
    %262 = vector.load %arg4[%c0_76, %c0_77] : memref<128x512xbf16, #tpu.memory_space<vmem>>, vector<128x512xbf16>
    %cst_78 = arith.constant dense<0.000000e+00> : vector<8x512xf32>
    %263 = tpu.matmul %261, %262, %cst_78 {dimension_numbers = #tpu.dot_dimension_numbers<[1], [0], [0], [1], [0, 0, 1, 1], [], []>} : vector<8x128xbf16>, vector<128x512xbf16>, vector<8x512xf32> -> vector<8x512xf32>
    %264 = arith.addf %260, %263 : vector<8x512xf32>
    %265 = vector.extract_strided_slice %264 {offsets = [0, 0], sizes = [8, 128], strides = [1, 1]} : vector<8x512xf32> to vector<8x128xf32>
    %266 = arith.negf %265 : vector<8x128xf32>
    %267 = math.exp %266 : vector<8x128xf32>
    %cst_79 = arith.constant 1.000000e+00 : f32
    %268 = vector.broadcast %cst_79 : f32 to vector<8x128xf32>
    %269 = arith.addf %268, %267 : vector<8x128xf32>
    %270 = arith.divf %268, %269 : vector<8x128xf32>
    %271 = vector.extract_strided_slice %264 {offsets = [0, 128], sizes = [8, 128], strides = [1, 1]} : vector<8x512xf32> to vector<8x128xf32>
    %272 = arith.negf %271 : vector<8x128xf32>
    %273 = math.exp %272 : vector<8x128xf32>
    %cst_80 = arith.constant 1.000000e+00 : f32
    %274 = vector.broadcast %cst_80 : f32 to vector<8x128xf32>
    %275 = arith.addf %274, %273 : vector<8x128xf32>
    %276 = arith.divf %274, %275 : vector<8x128xf32>
    %277 = vector.extract_strided_slice %264 {offsets = [0, 256], sizes = [8, 128], strides = [1, 1]} : vector<8x512xf32> to vector<8x128xf32>
    %278 = math.tanh %277 : vector<8x128xf32>
    %279 = vector.extract_strided_slice %264 {offsets = [0, 384], sizes = [8, 128], strides = [1, 1]} : vector<8x512xf32> to vector<8x128xf32>
    %280 = arith.negf %279 : vector<8x128xf32>
    %281 = math.exp %280 : vector<8x128xf32>
    %cst_81 = arith.constant 1.000000e+00 : f32
    %282 = vector.broadcast %cst_81 : f32 to vector<8x128xf32>
    %283 = arith.addf %282, %281 : vector<8x128xf32>
    %284 = arith.divf %282, %283 : vector<8x128xf32>
    %285 = arith.mulf %276, %251 : vector<8x128xf32>
    %286 = arith.mulf %270, %278 : vector<8x128xf32>
    %287 = arith.addf %285, %286 : vector<8x128xf32>
    %288 = math.tanh %287 : vector<8x128xf32>
    %289 = arith.mulf %284, %288 : vector<8x128xf32>
    %290 = arith.index_cast %257 : i32 to index
    %c0_82 = arith.constant 0 : index
    %291 = vector.load %arg10[%290, %c0_82] : memref<64x128xf32, #tpu.memory_space<vmem>>, vector<8x128xf32>
    tpu.vector_store %arg10[%290, %c0_82], %289 {strides = array<i32>} : memref<64x128xf32, #tpu.memory_space<vmem>>, vector<8x128xf32>,
    %c8_i32_83 = arith.constant 8 : i32
    %c0_84 = arith.constant 0 : index
    %c0_85 = arith.constant 0 : index
    %292 = vector.load %arg10[%c0_84, %c0_85] : memref<64x128xf32, #tpu.memory_space<vmem>>, vector<64x128xf32>
    %293 = arith.truncf %292 : vector<64x128xf32> to vector<64x128xbf16>
    %c0_86 = arith.constant 0 : index
    %c0_87 = arith.constant 0 : index
    %294 = vector.load %arg5[%c0_86, %c0_87] : memref<128x128xbf16, #tpu.memory_space<vmem>>, vector<128x128xbf16>
    %cst_88 = arith.constant dense<0.000000e+00> : vector<64x128xf32>
    %295 = tpu.matmul %293, %294, %cst_88 {dimension_numbers = #tpu.dot_dimension_numbers<[1], [0], [0], [1], [0, 0, 1, 1], [], []>} : vector<64x128xbf16>, vector<128x128xbf16>, vector<64x128xf32> -> vector<64x128xf32>
    %c0_89 = arith.constant 0 : index
    %c0_90 = arith.constant 0 : index
    %296 = vector.load %arg6[%c0_89, %c0_90] : memref<1x128xf32, #tpu.memory_space<vmem>>, vector<1x128xf32>
    %297 = vector.broadcast %296 : vector<1x128xf32> to vector<64x128xf32>
    %298 = arith.addf %295, %297 : vector<64x128xf32>
    %c0_91 = arith.constant 0 : index
    %c0_92 = arith.constant 0 : index
    %c0_93 = arith.constant 0 : index
    %299 = vector.load %arg7[%c0_91, %c0_92, %c0_93] : memref<1x64x128xf32, #tpu.memory_space<vmem>>, vector<1x64x128xf32>
    %300 = vector.shape_cast %299 : vector<1x64x128xf32> to vector<64x128xf32>
    %301 = vector.shape_cast %298 : vector<64x128xf32> to vector<1x64x128xf32>
    tpu.vector_store %arg7[%c0_91, %c0_92, %c0_93], %301 {strides = array<i32>} : memref<1x64x128xf32, #tpu.memory_space<vmem>>, vector<1x64x128xf32>,
    %c0_94 = arith.constant 0 : index
    %c0_95 = arith.constant 0 : index
    %c0_96 = arith.constant 0 : index
    %302 = vector.load %arg8[%c0_94, %c0_95, %c0_96] : memref<1x8x128xf32, #tpu.memory_space<vmem>>, vector<1x8x128xf32>
    %303 = vector.shape_cast %302 : vector<1x8x128xf32> to vector<8x128xf32>
    %304 = vector.shape_cast %289 : vector<8x128xf32> to vector<1x8x128xf32>
    tpu.vector_store %arg8[%c0_94, %c0_95, %c0_96], %304 {strides = array<i32>} : memref<1x8x128xf32, #tpu.memory_space<vmem>>, vector<1x8x128xf32>,
    %c0_97 = arith.constant 0 : index
    %c0_98 = arith.constant 0 : index
    %c0_99 = arith.constant 0 : index
    %305 = vector.load %arg9[%c0_97, %c0_98, %c0_99] : memref<1x8x128xf32, #tpu.memory_space<vmem>>, vector<1x8x128xf32>
    %306 = vector.shape_cast %305 : vector<1x8x128xf32> to vector<8x128xf32>
    %307 = vector.shape_cast %287 : vector<8x128xf32> to vector<1x8x128xf32>
    tpu.vector_store %arg9[%c0_97, %c0_98, %c0_99], %307 {strides = array<i32>} : memref<1x8x128xf32, #tpu.memory_space<vmem>>, vector<1x8x128xf32>,
    return
  }
  func.func @transform_0(%arg0: i32) -> (i32, i32, i32) {
    %c0_i32 = arith.constant 0 : i32
    %c0_i32_0 = arith.constant 0 : i32
    %c0_i32_1 = arith.constant 0 : i32
    return %arg0, %c0_i32, %c0_i32_0 : i32, i32, i32
  }
  func.func @transform_1(%arg0: i32) -> (i32, i32, i32) {
    %c0_i32 = arith.constant 0 : i32
    %c0_i32_0 = arith.constant 0 : i32
    %c0_i32_1 = arith.constant 0 : i32
    return %arg0, %c0_i32, %c0_i32_0 : i32, i32, i32
  }
  func.func @transform_2(%arg0: i32) -> (i32, i32, i32) {
    %c0_i32 = arith.constant 0 : i32
    %c0_i32_0 = arith.constant 0 : i32
    %c0_i32_1 = arith.constant 0 : i32
    return %arg0, %c0_i32, %c0_i32_0 : i32, i32, i32
  }
  func.func @transform_3(%arg0: i32) -> (i32, i32) {
    %c0_i32 = arith.constant 0 : i32
    %c0_i32_0 = arith.constant 0 : i32
    %c0_i32_1 = arith.constant 0 : i32
    return %c0_i32, %c0_i32_0 : i32, i32
  }
  func.func @transform_4(%arg0: i32) -> (i32, i32) {
    %c0_i32 = arith.constant 0 : i32
    %c0_i32_0 = arith.constant 0 : i32
    %c0_i32_1 = arith.constant 0 : i32
    return %c0_i32, %c0_i32_0 : i32, i32
  }
  func.func @transform_5(%arg0: i32) -> (i32, i32) {
    %c0_i32 = arith.constant 0 : i32
    %c0_i32_0 = arith.constant 0 : i32
    %c0_i32_1 = arith.constant 0 : i32
    return %c0_i32, %c0_i32_0 : i32, i32
  }
  func.func @transform_6(%arg0: i32) -> (i32, i32, i32) {
    %c0_i32 = arith.constant 0 : i32
    %c0_i32_0 = arith.constant 0 : i32
    %c0_i32_1 = arith.constant 0 : i32
    return %arg0, %c0_i32, %c0_i32_0 : i32, i32, i32
  }
  func.func @transform_7(%arg0: i32) -> (i32, i32, i32) {
    %c0_i32 = arith.constant 0 : i32
    %c0_i32_0 = arith.constant 0 : i32
    %c0_i32_1 = arith.constant 0 : i32
    return %arg0, %c0_i32, %c0_i32_0 : i32, i32, i32
  }
  func.func @transform_8(%arg0: i32) -> (i32, i32, i32) {
    %c0_i32 = arith.constant 0 : i32
    %c0_i32_0 = arith.constant 0 : i32
    %c0_i32_1 = arith.constant 0 : i32
    return %arg0, %c0_i32, %c0_i32_0 : i32, i32, i32
  }
}

</mosaic_0001>

<llo_original>
// kernel: tpu_custom_call.1
$region0: #{tpu_custom_call.1}
  #allocation0 [shape = 'u32[]', space=smem, size = 0x4, offset = 0x4, fixed_abs, tag = 'smem constant byte address 0x4 - core index']
  #allocation1 [shape = 'u32[144,128]{1,0:T(1,128)}', space=vmem, size = 0x12000, scoped, tag = 'internal scratch']
  #allocation2 [shape = 'f32[64,128]{1,0:T(8,128)}', space=vmem, size = 0x8000, scoped, tag = 'scratch operand']
  %s0 = inlined_call_operand.hbm [shape: f32[1,64,512], index: 0, kind: input, shape index: {}]
  %s1 = inlined_call_operand.hbm [shape: f32[1,8,128], index: 1, kind: input, shape index: {}]
  %s2 = inlined_call_operand.hbm [shape: f32[1,8,128], index: 2, kind: input, shape index: {}]
  %s3 = inlined_call_operand.hbm [shape: bf16[128,512], index: 3, kind: input, shape index: {}]
  %s4 = inlined_call_operand.hbm [shape: bf16[128,128], index: 4, kind: input, shape index: {}]
  %s5 = inlined_call_operand.vmem [shape: f32[1,128], index: 5, kind: input, shape index: {}]
  %s6 = inlined_call_operand.hbm [shape: f32[1,64,128], index: 6, kind: output, shape index: {0}]
  %s7 = inlined_call_operand.hbm [shape: f32[1,8,128], index: 7, kind: output, shape index: {1}]
  %s8 = inlined_call_operand.hbm [shape: f32[1,8,128], index: 8, kind: output, shape index: {2}]
  %9 = xla_tuple %s6, %s7, %s8
  %s10 = sld [smem:[#allocation0]]
  $region70: #{tpu_custom_call.1} parent=0
    _
  %s12 = ssub.s32 1, %s10
  %s13 = scalar_select 0, %s12, %s10
  $region1: #{tpu_custom_call.1} parent=0
    #allocation3 [shape = 'u8[131072]{0}', space=vmem, size = 0x20000, scoped, tag = 'input window, operand 0, single buffered']
    #allocation4 [shape = 's32[1]{0}', space=sflag, size = 0x4, scoped, tag = 'scoped memory for tpu_custom_call.1']
    #allocation5 [shape = 's32[1]{0}', space=sflag, size = 0x4, scoped, tag = 'scoped memory for tpu_custom_call.1']
    #allocation6 [shape = 'u8[4096]{0}', space=vmem, size = 0x1000, scoped, tag = 'input window, operand 1, single buffered']
    #allocation7 [shape = 's32[1]{0}', space=sflag, size = 0x4, scoped, tag = 'scoped memory for tpu_custom_call.1']
    #allocation8 [shape = 'u8[4096]{0}', space=vmem, size = 0x1000, scoped, tag = 'input window, operand 2, single buffered']
    #allocation9 [shape = 'u8[131072]{0}', space=vmem, size = 0x20000, scoped, tag = 'input window, operand 3, single buffered']
    #allocation10 [shape = 's32[1]{0}', space=sflag, size = 0x4, scoped, tag = 'scoped memory for tpu_custom_call.1']
    #allocation11 [shape = 'u8[32768]{0}', space=vmem, size = 0x8000, scoped, tag = 'input window, operand 4, single buffered']
    #allocation12 [shape = 'u8[32768]{0}', space=vmem, size = 0x8000, scoped, tag = 'output window, operand 0, single buffered']
    #allocation13 [shape = 'u8[4096]{0}', space=vmem, size = 0x1000, scoped, tag = 'output window, operand 1, single buffered']
    #allocation14 [shape = 's32[1]{0}', space=sflag, size = 0x4, scoped, tag = 'scoped memory for tpu_custom_call.1']
    #allocation15 [shape = 'u8[4096]{0}', space=vmem, size = 0x1000, scoped, tag = 'output window, operand 2, single buffered']
    %14 = vsyncpa [#allocation4], 0
    %15 = vsyncpa [#allocation7], 0
    %16 = vsyncpa [#allocation10], 0
    %17 = vsyncpa [#allocation5], 0
    %18 = vsyncpa [#allocation14], 0
    // Predicated region
    $region2: #{tpu_custom_call.1} parent=1 // pred_check
      _
    $region3: #{tpu_custom_call.1} parent=1 // pred_check_branch
      %20 = sbr.rel (0) target = $region5
    $region4: #{tpu_custom_call.1} parent=1 // pred_region
      %s22 = ssub.s32 4096, 4096
      %23 = vsyncadd [#allocation4], %s22
      %s24 = sshll.u32 [#allocation3], 4
      %s25 = int_to_ptr.vmem [resolvable:$true] %s24
      %30 = dma.hbm_to_vmem [thread:$0]  %s0, 4096, %s25, [#allocation4], 512, 512, 32
    $region5: #{tpu_custom_call.1} parent=1 // pred_fallthru
      _
    // Predicated region
    $region6: #{tpu_custom_call.1} parent=1 // pred_check
      _
    $region7: #{tpu_custom_call.1} parent=1 // pred_check_branch
      %32 = sbr.rel (0) target = $region9
    $region8: #{tpu_custom_call.1} parent=1 // pred_region
      %s34 = ssub.s32 128, 128
      %35 = vsyncadd [#allocation7], %s34
      %s37 = sshll.u32 [#allocation6], 4
      %s38 = int_to_ptr.vmem [resolvable:$true] %s37
      %40 = dma.hbm_to_vmem [thread:$0]  %s1, 128, %s38, [#allocation7]
    $region9: #{tpu_custom_call.1} parent=1 // pred_fallthru
      _
    // Predicated region
    $region10: #{tpu_custom_call.1} parent=1 // pred_check
      _
    $region11: #{tpu_custom_call.1} parent=1 // pred_check_branch
      %42 = sbr.rel (0) target = $region13
    $region12: #{tpu_custom_call.1} parent=1 // pred_region
      %s44 = ssub.s32 128, 128
      %45 = vsyncadd [#allocation7], %s44
      %s47 = sshll.u32 [#allocation8], 4
      %s48 = int_to_ptr.vmem [resolvable:$true] %s47
      %50 = dma.hbm_to_vmem [thread:$0]  %s2, 128, %s48, [#allocation7]
    $region13: #{tpu_custom_call.1} parent=1 // pred_fallthru
      _
    // Predicated region
    $region14: #{tpu_custom_call.1} parent=1 // pred_check
      _
    $region15: #{tpu_custom_call.1} parent=1 // pred_check_branch
      %52 = sbr.rel (0) target = $region17
    $region16: #{tpu_custom_call.1} parent=1 // pred_region
      %s54 = ssub.s32 4096, 4096
      %55 = vsyncadd [#allocation10], %s54
      %s56 = sshll.u32 [#allocation9], 4
      %s57 = int_to_ptr.vmem [resolvable:$true] %s56
      %62 = dma.hbm_to_vmem [thread:$0]  %s3, 4096, %s57, [#allocation10], 256, 256, 16
    $region17: #{tpu_custom_call.1} parent=1 // pred_fallthru
      _
    // Predicated region
    $region18: #{tpu_custom_call.1} parent=1 // pred_check
      _
    $region19: #{tpu_custom_call.1} parent=1 // pred_check_branch
      %64 = sbr.rel (0) target = $region21
    $region20: #{tpu_custom_call.1} parent=1 // pred_region
      %s66 = ssub.s32 1024, 1024
      %67 = vsyncadd [#allocation10], %s66
      %s68 = sshll.u32 [#allocation11], 4
      %s69 = int_to_ptr.vmem [resolvable:$true] %s68
      %74 = dma.hbm_to_vmem [thread:$0]  %s4, 1024, %s69, [#allocation10], 64, 64, 4
    $region21: #{tpu_custom_call.1} parent=1 // pred_fallthru
      _
    // Predicated region
    $region22: #{tpu_custom_call.1} parent=1 // pred_check
      _
    $region23: #{tpu_custom_call.1} parent=1 // pred_check_branch
      %76 = sbr.rel (0) target = $region25
    $region24: #{tpu_custom_call.1} parent=1 // pred_region
      _
    $region25: #{tpu_custom_call.1} parent=1 // pred_fallthru
      _
    // Predicated region
    $region26: #{tpu_custom_call.1} parent=1 // pred_check
      _
    $region27: #{tpu_custom_call.1} parent=1 // pred_check_branch
      %78 = sbr.rel (0) target = $region29
    $region28: #{tpu_custom_call.1} parent=1 // pred_region
      %79 = dma.done [#allocation4], 4096
    $region29: #{tpu_custom_call.1} parent=1 // pred_fallthru
      _
    // Predicated region
    $region30: #{tpu_custom_call.1} parent=1 // pred_check
      _
    $region31: #{tpu_custom_call.1} parent=1 // pred_check_branch
      %81 = sbr.rel (0) target = $region33
    $region32: #{tpu_custom_call.1} parent=1 // pred_region
      %82 = dma.done [#allocation7], 128
    $region33: #{tpu_custom_call.1} parent=1 // pred_fallthru
      _
    // Predicated region
    $region34: #{tpu_custom_call.1} parent=1 // pred_check
      _
    $region35: #{tpu_custom_call.1} parent=1 // pred_check_branch
      %84 = sbr.rel (0) target = $region37
    $region36: #{tpu_custom_call.1} parent=1 // pred_region
      %85 = dma.done [#allocation7], 128
    $region37: #{tpu_custom_call.1} parent=1 // pred_fallthru
      _
    // Predicated region
    $region38: #{tpu_custom_call.1} parent=1 // pred_check
      _
    $region39: #{tpu_custom_call.1} parent=1 // pred_check_branch
      %87 = sbr.rel (0) target = $region41
    $region40: #{tpu_custom_call.1} parent=1 // pred_region
      %88 = dma.done [#allocation10], 4096
    $region41: #{tpu_custom_call.1} parent=1 // pred_fallthru
      _
    // Predicated region
    $region42: #{tpu_custom_call.1} parent=1 // pred_check
      _
    $region43: #{tpu_custom_call.1} parent=1 // pred_check_branch
      %90 = sbr.rel (0) target = $region45
    $region44: #{tpu_custom_call.1} parent=1 // pred_region
      %91 = dma.done [#allocation10], 1024
    $region45: #{tpu_custom_call.1} parent=1 // pred_fallthru
      _
    %v93 = vld [vmem:[#allocation6] sm:$0xff]
    %v94 = vld [vmem:[#allocation8] sm:$0xff]
    %s95 = smul.u32 0, 4
    %s96 = smul.addr %s95, 8
    %s97 = scalar_lea.vmem [#allocation3], %s96
    %v98 = vld [vmem:[%s97] sm:$0xff]
    %v99 = vld [vmem:[%s97 + $0x8] sm:$0xff]
    %v100 = vld [vmem:[%s97 + $0x10] sm:$0xff]
    %v101 = vld [vmem:[%s97 + $0x18] sm:$0xff]
    %v102 = vpack.c.bf16 %v93, %v93
    %v103 = vld [vmem:[#allocation9] sm:$0xff]
    %v104 = vld [vmem:[#allocation9 + $0x8] sm:$0xff]
    %v105 = vld [vmem:[#allocation9 + $0x10] sm:$0xff]
    %v106 = vld [vmem:[#allocation9 + $0x18] sm:$0xff]
    %v107 = vld [vmem:[#allocation9 + $0x20] sm:$0xff]
    %v108 = vld [vmem:[#allocation9 + $0x28] sm:$0xff]
    %v109 = vld [vmem:[#allocation9 + $0x30] sm:$0xff]
    %v110 = vld [vmem:[#allocation9 + $0x38] sm:$0xff]
    %v111 = vld [vmem:[#allocation9 + $0x40] sm:$0xff]
    %v112 = vld [vmem:[#allocation9 + $0x48] sm:$0xff]
    %v113 = vld [vmem:[#allocation9 + $0x50] sm:$0xff]
    %v114 = vld [vmem:[#allocation9 + $0x58] sm:$0xff]
    %v115 = vld [vmem:[#allocation9 + $0x60] sm:$0xff]
    %v116 = vld [vmem:[#allocation9 + $0x68] sm:$0xff]
    %v117 = vld [vmem:[#allocation9 + $0x70] sm:$0xff]
    %v118 = vld [vmem:[#allocation9 + $0x78] sm:$0xff]
    %v119 = vld [vmem:[#allocation9 + $0x80] sm:$0xff]
    %v120 = vld [vmem:[#allocation9 + $0x88] sm:$0xff]
    %v121 = vld [vmem:[#allocation9 + $0x90] sm:$0xff]
    %v122 = vld [vmem:[#allocation9 + $0x98] sm:$0xff]
    %v123 = vld [vmem:[#allocation9 + $0xa0] sm:$0xff]
    %v124 = vld [vmem:[#allocation9 + $0xa8] sm:$0xff]
    %v125 = vld [vmem:[#allocation9 + $0xb0] sm:$0xff]
    %v126 = vld [vmem:[#allocation9 + $0xb8] sm:$0xff]
    %v127 = vld [vmem:[#allocation9 + $0xc0] sm:$0xff]
    %v128 = vld [vmem:[#allocation9 + $0xc8] sm:$0xff]
    %v129 = vld [vmem:[#allocation9 + $0xd0] sm:$0xff]
    %v130 = vld [vmem:[#allocation9 + $0xd8] sm:$0xff]
    %v131 = vld [vmem:[#allocation9 + $0xe0] sm:$0xff]
    %v132 = vld [vmem:[#allocation9 + $0xe8] sm:$0xff]
    %v133 = vld [vmem:[#allocation9 + $0xf0] sm:$0xff]
    %v134 = vld [vmem:[#allocation9 + $0xf8] sm:$0xff]
    %v167 = vunpack.c.l.b16 %v103
    %v168 = vunpack.c.h.b16 %v103
    %v169 = vunpack.c.l.b16 %v104
    %v170 = vunpack.c.h.b16 %v104
    %v171 = vunpack.c.l.b16 %v105
    %v172 = vunpack.c.h.b16 %v105
    %v173 = vunpack.c.l.b16 %v106
    %v174 = vunpack.c.h.b16 %v106
    %v175 = vunpack.c.l.b16 %v107
    %v176 = vunpack.c.h.b16 %v107
    %v177 = vunpack.c.l.b16 %v108
    %v178 = vunpack.c.h.b16 %v108
    %v179 = vunpack.c.l.b16 %v109
    %v180 = vunpack.c.h.b16 %v109
    %v181 = vunpack.c.l.b16 %v110
    %v182 = vunpack.c.h.b16 %v110
    %v183 = vunpack.c.l.b16 %v111
    %v184 = vunpack.c.h.b16 %v111
    %v185 = vunpack.c.l.b16 %v112
    %v186 = vunpack.c.h.b16 %v112
    %v187 = vunpack.c.l.b16 %v113
    %v188 = vunpack.c.h.b16 %v113
    %v189 = vunpack.c.l.b16 %v114
    %v190 = vunpack.c.h.b16 %v114
    %v191 = vunpack.c.l.b16 %v115
    %v192 = vunpack.c.h.b16 %v115
    %v193 = vunpack.c.l.b16 %v116
    %v194 = vunpack.c.h.b16 %v116
    %v195 = vunpack.c.l.b16 %v117
    %v196 = vunpack.c.h.b16 %v117
    %v197 = vunpack.c.l.b16 %v118
    %v198 = vunpack.c.h.b16 %v118
    %v199 = vunpack.c.l.b16 %v119
    %v200 = vunpack.c.h.b16 %v119
    %v201 = vunpack.c.l.b16 %v120
    %v202 = vunpack.c.h.b16 %v120
    %v203 = vunpack.c.l.b16 %v121
    %v204 = vunpack.c.h.b16 %v121
    %v205 = vunpack.c.l.b16 %v122
    %v206 = vunpack.c.h.b16 %v122
    %v207 = vunpack.c.l.b16 %v123
    %v208 = vunpack.c.h.b16 %v123
    %v209 = vunpack.c.l.b16 %v124
    %v210 = vunpack.c.h.b16 %v124
    %v211 = vunpack.c.l.b16 %v125
    %v212 = vunpack.c.h.b16 %v125
    %v213 = vunpack.c.l.b16 %v126
    %v214 = vunpack.c.h.b16 %v126
    %v215 = vunpack.c.l.b16 %v127
    %v216 = vunpack.c.h.b16 %v127
    %v217 = vunpack.c.l.b16 %v128
    %v218 = vunpack.c.h.b16 %v128
    %v219 = vunpack.c.l.b16 %v129
    %v220 = vunpack.c.h.b16 %v129
    %v221 = vunpack.c.l.b16 %v130
    %v222 = vunpack.c.h.b16 %v130
    %v223 = vunpack.c.l.b16 %v131
    %v224 = vunpack.c.h.b16 %v131
    %v225 = vunpack.c.l.b16 %v132
    %v226 = vunpack.c.h.b16 %v132
    %v227 = vunpack.c.l.b16 %v133
    %v228 = vunpack.c.h.b16 %v133
    %v229 = vunpack.c.l.b16 %v134
    %v230 = vunpack.c.h.b16 %v134
    %v231 = vpack.c.b16 %v171, %v167
    %v232 = vpack.c.b16 %v172, %v168
    %v233 = vpack.c.b16 %v173, %v169
    %v234 = vpack.c.b16 %v174, %v170
    %v235 = vpack.c.b16 %v179, %v175
    %v236 = vpack.c.b16 %v180, %v176
    %v237 = vpack.c.b16 %v181, %v177
    %v238 = vpack.c.b16 %v182, %v178
    %v239 = vpack.c.b16 %v187, %v183
    %v240 = vpack.c.b16 %v188, %v184
    %v241 = vpack.c.b16 %v189, %v185
    %v242 = vpack.c.b16 %v190, %v186
    %v243 = vpack.c.b16 %v195, %v191
    %v244 = vpack.c.b16 %v196, %v192
    %v245 = vpack.c.b16 %v197, %v193
    %v246 = vpack.c.b16 %v198, %v194
    %v247 = vpack.c.b16 %v203, %v199
    %v248 = vpack.c.b16 %v204, %v200
    %v249 = vpack.c.b16 %v205, %v201
    %v250 = vpack.c.b16 %v206, %v202
    %v251 = vpack.c.b16 %v211, %v207
    %v252 = vpack.c.b16 %v212, %v208
    %v253 = vpack.c.b16 %v213, %v209
    %v254 = vpack.c.b16 %v214, %v210
    %v255 = vpack.c.b16 %v219, %v215
    %v256 = vpack.c.b16 %v220, %v216
    %v257 = vpack.c.b16 %v221, %v217
    %v258 = vpack.c.b16 %v222, %v218
    %v259 = vpack.c.b16 %v227, %v223
    %v260 = vpack.c.b16 %v228, %v224
    %v261 = vpack.c.b16 %v229, %v225
    %v262 = vpack.c.b16 %v230, %v226
    %295 = vmatprep.subr.bf16.mxu0 %v260
    %296 = vmatpush1.bf16.msra.mxu0 %v259
    %297 = vmatprep.subr.bf16.mxu0 %v256
    %298 = vmatpush1.bf16.msra.mxu0 %v255
    %299 = vmatprep.subr.bf16.mxu0 %v252
    %300 = vmatpush1.bf16.msra.mxu0 %v251
    %301 = vmatprep.subr.bf16.mxu0 %v248
    %302 = vmatpush1.bf16.msra.mxu0 %v247
    %303 = vmatprep.subr.bf16.mxu0 %v244
    %304 = vmatpush1.bf16.msra.mxu0 %v243
    %305 = vmatprep.subr.bf16.mxu0 %v240
    %306 = vmatpush1.bf16.msra.mxu0 %v239
    %307 = vmatprep.subr.bf16.mxu0 %v236
    %308 = vmatpush1.bf16.msra.mxu0 %v235
    %309 = vmatprep.subr.bf16.mxu0 %v232
    %310 = vmatpush1.bf16.msra.mxu0 %v231
    %311 = vmatprep.subr.bf16.mxu0 0
    %312 = vmatpush2.bf16.msra.mxu0 0
    %313 = vmatprep.subr.bf16.mxu0 0
    %314 = vmatpush2.bf16.msra.mxu0 0
    %315 = vmatprep.subr.bf16.mxu0 0
    %316 = vmatpush2.bf16.msra.mxu0 0
    %317 = vmatprep.subr.bf16.mxu0 0
    %318 = vmatpush2.bf16.msra.mxu0 0
    %319 = vmatprep.subr.bf16.mxu0 0
    %320 = vmatpush2.bf16.msra.mxu0 0
    %321 = vmatprep.subr.bf16.mxu0 0
    %322 = vmatpush2.bf16.msra.mxu0 0
    %323 = vmatprep.subr.bf16.mxu0 0
    %324 = vmatpush2.bf16.msra.mxu0 0
    %325 = vmatprep.subr.bf16.mxu0 0
    %326 = vmatpush2.bf16.msra.mxu0 0
    %327 = vmatprep.mubr.bf16.mxu0 0
    %328 = vmatmul.mubr.bf16.gmra.mxu0 %v102
    %v329 = vpop.f32.mrf.mxu0
    %v330 = vadd.f32 0.0, %v329
    %v331 = vpop.f32.mrf.mxu0
    %v332 = vadd.f32 0.0, %v331
    %v333 = vpop.f32.mrf.mxu0
    %v334 = vpop.f32.mrf.mxu0
    %335 = vdwg.mxu0
    %336 = vmatprep.subr.bf16.mxu0 %v262
    %337 = vmatpush1.bf16.msra.mxu0 %v261
    %338 = vmatprep.subr.bf16.mxu0 %v258
    %339 = vmatpush1.bf16.msra.mxu0 %v257
    %340 = vmatprep.subr.bf16.mxu0 %v254
    %341 = vmatpush1.bf16.msra.mxu0 %v253
    %342 = vmatprep.subr.bf16.mxu0 %v250
    %343 = vmatpush1.bf16.msra.mxu0 %v249
    %344 = vmatprep.subr.bf16.mxu0 %v246
    %345 = vmatpush1.bf16.msra.mxu0 %v245
    %346 = vmatprep.subr.bf16.mxu0 %v242
    %347 = vmatpush1.bf16.msra.mxu0 %v241
    %348 = vmatprep.subr.bf16.mxu0 %v238
    %349 = vmatpush1.bf16.msra.mxu0 %v237
    %350 = vmatprep.subr.bf16.mxu0 %v234
    %351 = vmatpush1.bf16.msra.mxu0 %v233
    %352 = vmatprep.subr.bf16.mxu0 0
    %353 = vmatpush2.bf16.msra.mxu0 0
    %354 = vmatprep.subr.bf16.mxu0 0
    %355 = vmatpush2.bf16.msra.mxu0 0
    %356 = vmatprep.subr.bf16.mxu0 0
    %357 = vmatpush2.bf16.msra.mxu0 0
    %358 = vmatprep.subr.bf16.mxu0 0
    %359 = vmatpush2.bf16.msra.mxu0 0
    %360 = vmatprep.subr.bf16.mxu0 0
    %361 = vmatpush2.bf16.msra.mxu0 0
    %362 = vmatprep.subr.bf16.mxu0 0
    %363 = vmatpush2.bf16.msra.mxu0 0
    %364 = vmatprep.subr.bf16.mxu0 0
    %365 = vmatpush2.bf16.msra.mxu0 0
    %366 = vmatprep.subr.bf16.mxu0 0
    %367 = vmatpush2.bf16.msra.mxu0 0
    %368 = vmatprep.mubr.bf16.mxu0 0
    %369 = vmatmul.mubr.bf16.gmra.mxu0 %v102
    %v370 = vpop.f32.mrf.mxu0
    %v371 = vadd.f32 0.0, %v370
    %v372 = vpop.f32.mrf.mxu0
    %v373 = vadd.f32 0.0, %v372
    %v374 = vpop.f32.mrf.mxu0
    %v375 = vpop.f32.mrf.mxu0
    %376 = vdwg.mxu0
    %v377 = vadd.f32 %v98, %v330
    %v378 = vadd.f32 %v99, %v332
    %v379 = vadd.f32 %v100, %v371
    %v380 = vadd.f32 %v101, %v373
    %v381 = vxor.u32 %v377, 2147483648
    %v382 = vmul.f32 %v381, 1.442695
    %v383 = vpow.pop %v382
    %v384 = vadd.f32 %v383, 1.0
    %v385 = vrcp.pop %v384
    %v386 = vmul.f32 1.0, %v385
    %v387 = vxor.u32 %v378, 2147483648
    %v388 = vmul.f32 %v387, 1.442695
    %v389 = vpow.pop %v388
    %v390 = vadd.f32 %v389, 1.0
    %v391 = vrcp.pop %v390
    %v392 = vmul.f32 1.0, %v391
    %v393 = vtanh.pop %v379
    %v394 = vxor.u32 %v380, 2147483648
    %v395 = vmul.f32 %v394, 1.442695
    %v396 = vpow.pop %v395
    %v397 = vadd.f32 %v396, 1.0
    %v398 = vrcp.pop %v397
    %v399 = vmul.f32 1.0, %v398
    %v400 = vmul.f32 %v392, %v94
    %v401 = vmul.f32 %v386, %v393
    %v402 = vadd.f32 %v400, %v401
    %v403 = vtanh.pop %v402
    %v404 = vmul.f32 %v399, %v403
    %405 = vst [vmem:[#allocation2] sm:$0xff] %v404
    %s406 = smul.u32 1, 4
    %s407 = smul.addr %s406, 8
    %s408 = scalar_lea.vmem [#allocation3], %s407
    %v409 = vld [vmem:[%s408] sm:$0xff]
    %v410 = vld [vmem:[%s408 + $0x8] sm:$0xff]
    %v411 = vld [vmem:[%s408 + $0x10] sm:$0xff]
    %v412 = vld [vmem:[%s408 + $0x18] sm:$0xff]
    %v413 = vpack.c.bf16 %v404, %v404
    %v414 = vld [vmem:[#allocation9] sm:$0xff]
    %v415 = vld [vmem:[#allocation9 + $0x8] sm:$0xff]
    %v416 = vld [vmem:[#allocation9 + $0x10] sm:$0xff]
    %v417 = vld [vmem:[#allocation9 + $0x18] sm:$0xff]
    %v418 = vld [vmem:[#allocation9 + $0x20] sm:$0xff]
    %v419 = vld [vmem:[#allocation9 + $0x28] sm:$0xff]
    %v420 = vld [vmem:[#allocation9 + $0x30] sm:$0xff]
    %v421 = vld [vmem:[#allocation9 + $0x38] sm:$0xff]
    %v422 = vld [vmem:[#allocation9 + $0x40] sm:$0xff]
    %v423 = vld [vmem:[#allocation9 + $0x48] sm:$0xff]
    %v424 = vld [vmem:[#allocation9 + $0x50] sm:$0xff]
    %v425 = vld [vmem:[#allocation9 + $0x58] sm:$0xff]
    %v426 = vld [vmem:[#allocation9 + $0x60] sm:$0xff]
    %v427 = vld [vmem:[#allocation9 + $0x68] sm:$0xff]
    %v428 = vld [vmem:[#allocation9 + $0x70] sm:$0xff]
    %v429 = vld [vmem:[#allocation9 + $0x78] sm:$0xff]
    %v430 = vld [vmem:[#allocation9 + $0x80] sm:$0xff]
    %v431 = vld [vmem:[#allocation9 + $0x88] sm:$0xff]
    %v432 = vld [vmem:[#allocation9 + $0x90] sm:$0xff]
    %v433 = vld [vmem:[#allocation9 + $0x98] sm:$0xff]
    %v434 = vld [vmem:[#allocation9 + $0xa0] sm:$0xff]
    %v435 = vld [vmem:[#allocation9 + $0xa8] sm:$0xff]
    %v436 = vld [vmem:[#allocation9 + $0xb0] sm:$0xff]
    %v437 = vld [vmem:[#allocation9 + $0xb8] sm:$0xff]
    %v438 = vld [vmem:[#allocation9 + $0xc0] sm:$0xff]
    %v439 = vld [vmem:[#allocation9 + $0xc8] sm:$0xff]
    %v440 = vld [vmem:[#allocation9 + $0xd0] sm:$0xff]
    %v441 = vld [vmem:[#allocation9 + $0xd8] sm:$0xff]
    %v442 = vld [vmem:[#allocation9 + $0xe0] sm:$0xff]
    %v443 = vld [vmem:[#allocation9 + $0xe8] sm:$0xff]
    %v444 = vld [vmem:[#allocation9 + $0xf0] sm:$0xff]
    %v445 = vld [vmem:[#allocation9 + $0xf8] sm:$0xff]
    %v478 = vunpack.c.l.b16 %v414
    %v479 = vunpack.c.h.b16 %v414
    %v480 = vunpack.c.l.b16 %v415
    %v481 = vunpack.c.h.b16 %v415
    %v482 = vunpack.c.l.b16 %v416
    %v483 = vunpack.c.h.b16 %v416
    %v484 = vunpack.c.l.b16 %v417
    %v485 = vunpack.c.h.b16 %v417
    %v486 = vunpack.c.l.b16 %v418
    %v487 = vunpack.c.h.b16 %v418
    %v488 = vunpack.c.l.b16 %v419
    %v489 = vunpack.c.h.b16 %v419
    %v490 = vunpack.c.l.b16 %v420
    %v491 = vunpack.c.h.b16 %v420
    %v492 = vunpack.c.l.b16 %v421
    %v493 = vunpack.c.h.b16 %v421
    %v494 = vunpack.c.l.b16 %v422
    %v495 = vunpack.c.h.b16 %v422
    %v496 = vunpack.c.l.b16 %v423
    %v497 = vunpack.c.h.b16 %v423
    %v498 = vunpack.c.l.b16 %v424
    %v499 = vunpack.c.h.b16 %v424
    %v500 = vunpack.c.l.b16 %v425
    %v501 = vunpack.c.h.b16 %v425
    %v502 = vunpack.c.l.b16 %v426
    %v503 = vunpack.c.h.b16 %v426
    %v504 = vunpack.c.l.b16 %v427
    %v505 = vunpack.c.h.b16 %v427
    %v506 = vunpack.c.l.b16 %v428
    %v507 = vunpack.c.h.b16 %v428
    %v508 = vunpack.c.l.b16 %v429
    %v509 = vunpack.c.h.b16 %v429
    %v510 = vunpack.c.l.b16 %v430
    %v511 = vunpack.c.h.b16 %v430
    %v512 = vunpack.c.l.b16 %v431
    %v513 = vunpack.c.h.b16 %v431
    %v514 = vunpack.c.l.b16 %v432
    %v515 = vunpack.c.h.b16 %v432
    %v516 = vunpack.c.l.b16 %v433
    %v517 = vunpack.c.h.b16 %v433
    %v518 = vunpack.c.l.b16 %v434
    %v519 = vunpack.c.h.b16 %v434
    %v520 = vunpack.c.l.b16 %v435
    %v521 = vunpack.c.h.b16 %v435
    %v522 = vunpack.c.l.b16 %v436
    %v523 = vunpack.c.h.b16 %v436
    %v524 = vunpack.c.l.b16 %v437
    %v525 = vunpack.c.h.b16 %v437
    %v526 = vunpack.c.l.b16 %v438
    %v527 = vunpack.c.h.b16 %v438
    %v528 = vunpack.c.l.b16 %v439
    %v529 = vunpack.c.h.b16 %v439
    %v530 = vunpack.c.l.b16 %v440
    %v531 = vunpack.c.h.b16 %v440
    %v532 = vunpack.c.l.b16 %v441
    %v533 = vunpack.c.h.b16 %v441
    %v534 = vunpack.c.l.b16 %v442
    %v535 = vunpack.c.h.b16 %v442
    %v536 = vunpack.c.l.b16 %v443
    %v537 = vunpack.c.h.b16 %v443
    %v538 = vunpack.c.l.b16 %v444
    %v539 = vunpack.c.h.b16 %v444
    %v540 = vunpack.c.l.b16 %v445
    %v541 = vunpack.c.h.b16 %v445
    %v542 = vpack.c.b16 %v482, %v478
    %v543 = vpack.c.b16 %v483, %v479
    %v544 = vpack.c.b16 %v484, %v480
    %v545 = vpack.c.b16 %v485, %v481
    %v546 = vpack.c.b16 %v490, %v486
    %v547 = vpack.c.b16 %v491, %v487
    %v548 = vpack.c.b16 %v492, %v488
    %v549 = vpack.c.b16 %v493, %v489
    %v550 = vpack.c.b16 %v498, %v494
    %v551 = vpack.c.b16 %v499, %v495
    %v552 = vpack.c.b16 %v500, %v496
    %v553 = vpack.c.b16 %v501, %v497
    %v554 = vpack.c.b16 %v506, %v502
    %v555 = vpack.c.b16 %v507, %v503
    %v556 = vpack.c.b16 %v508, %v504
    %v557 = vpack.c.b16 %v509, %v505
    %v558 = vpack.c.b16 %v514, %v510
    %v559 = vpack.c.b16 %v515, %v511
    %v560 = vpack.c.b16 %v516, %v512
    %v561 = vpack.c.b16 %v517, %v513
    %v562 = vpack.c.b16 %v522, %v518
    %v563 = vpack.c.b16 %v523, %v519
    %v564 = vpack.c.b16 %v524, %v520
    %v565 = vpack.c.b16 %v525, %v521
    %v566 = vpack.c.b16 %v530, %v526
    %v567 = vpack.c.b16 %v531, %v527
    %v568 = vpack.c.b16 %v532, %v528
    %v569 = vpack.c.b16 %v533, %v529
    %v570 = vpack.c.b16 %v538, %v534
    %v571 = vpack.c.b16 %v539, %v535
    %v572 = vpack.c.b16 %v540, %v536
    %v573 = vpack.c.b16 %v541, %v537
    %606 = vmatprep.subr.bf16.mxu0 %v571
    %607 = vmatpush1.bf16.msra.mxu0 %v570
    %608 = vmatprep.subr.bf16.mxu0 %v567
    %609 = vmatpush1.bf16.msra.mxu0 %v566
    %610 = vmatprep.subr.bf16.mxu0 %v563
    %611 = vmatpush1.bf16.msra.mxu0 %v562
    %612 = vmatprep.subr.bf16.mxu0 %v559
    %613 = vmatpush1.bf16.msra.mxu0 %v558
    %614 = vmatprep.subr.bf16.mxu0 %v555
    %615 = vmatpush1.bf16.msra.mxu0 %v554
    %616 = vmatprep.subr.bf16.mxu0 %v551
    %617 = vmatpush1.bf16.msra.mxu0 %v550
    %618 = vmatprep.subr.bf16.mxu0 %v547
    %619 = vmatpush1.bf16.msra.mxu0 %v546
    %620 = vmatprep.subr.bf16.mxu0 %v543
    %621 = vmatpush1.bf16.msra.mxu0 %v542
    %622 = vmatprep.subr.bf16.mxu0 0
    %623 = vmatpush2.bf16.msra.mxu0 0
    %624 = vmatprep.subr.bf16.mxu0 0
    %625 = vmatpush2.bf16.msra.mxu0 0
    %626 = vmatprep.subr.bf16.mxu0 0
    %627 = vmatpush2.bf16.msra.mxu0 0
    %628 = vmatprep.subr.bf16.mxu0 0
    %629 = vmatpush2.bf16.msra.mxu0 0
    %630 = vmatprep.subr.bf16.mxu0 0
    %631 = vmatpush2.bf16.msra.mxu0 0
    %632 = vmatprep.subr.bf16.mxu0 0
    %633 = vmatpush2.bf16.msra.mxu0 0
    %634 = vmatprep.subr.bf16.mxu0 0
    %635 = vmatpush2.bf16.msra.mxu0 0
    %636 = vmatprep.subr.bf16.mxu0 0
    %637 = vmatpush2.bf16.msra.mxu0 0
    %638 = vmatprep.mubr.bf16.mxu0 0
    %639 = vmatmul.mubr.bf16.gmra.mxu0 %v413
    %v640 = vpop.f32.mrf.mxu0
    %v641 = vadd.f32 0.0, %v640
    %v642 = vpop.f32.mrf.mxu0
    %v643 = vadd.f32 0.0, %v642
    %v644 = vpop.f32.mrf.mxu0
    %v645 = vpop.f32.mrf.mxu0
    %646 = vdwg.mxu0
    %647 = vmatprep.subr.bf16.mxu0 %v573
    %648 = vmatpush1.bf16.msra.mxu0 %v572
    %649 = vmatprep.subr.bf16.mxu0 %v569
    %650 = vmatpush1.bf16.msra.mxu0 %v568
    %651 = vmatprep.subr.bf16.mxu0 %v565
    %652 = vmatpush1.bf16.msra.mxu0 %v564
    %653 = vmatprep.subr.bf16.mxu0 %v561
    %654 = vmatpush1.bf16.msra.mxu0 %v560
    %655 = vmatprep.subr.bf16.mxu0 %v557
    %656 = vmatpush1.bf16.msra.mxu0 %v556
    %657 = vmatprep.subr.bf16.mxu0 %v553
    %658 = vmatpush1.bf16.msra.mxu0 %v552
    %659 = vmatprep.subr.bf16.mxu0 %v549
    %660 = vmatpush1.bf16.msra.mxu0 %v548
    %661 = vmatprep.subr.bf16.mxu0 %v545
    %662 = vmatpush1.bf16.msra.mxu0 %v544
    %663 = vmatprep.subr.bf16.mxu0 0
    %664 = vmatpush2.bf16.msra.mxu0 0
    %665 = vmatprep.subr.bf16.mxu0 0
    %666 = vmatpush2.bf16.msra.mxu0 0
    %667 = vmatprep.subr.bf16.mxu0 0
    %668 = vmatpush2.bf16.msra.mxu0 0
    %669 = vmatprep.subr.bf16.mxu0 0
    %670 = vmatpush2.bf16.msra.mxu0 0
    %671 = vmatprep.subr.bf16.mxu0 0
    %672 = vmatpush2.bf16.msra.mxu0 0
    %673 = vmatprep.subr.bf16.mxu0 0
    %674 = vmatpush2.bf16.msra.mxu0 0
    %675 = vmatprep.subr.bf16.mxu0 0
    %676 = vmatpush2.bf16.msra.mxu0 0
    %677 = vmatprep.subr.bf16.mxu0 0
    %678 = vmatpush2.bf16.msra.mxu0 0
    %679 = vmatprep.mubr.bf16.mxu0 0
    %680 = vmatmul.mubr.bf16.gmra.mxu0 %v413
    %v681 = vpop.f32.mrf.mxu0
    %v682 = vadd.f32 0.0, %v681
    %v683 = vpop.f32.mrf.mxu0
    %v684 = vadd.f32 0.0, %v683
    %v685 = vpop.f32.mrf.mxu0
    %v686 = vpop.f32.mrf.mxu0
    %687 = vdwg.mxu0
    %v688 = vadd.f32 %v409, %v641
    %v689 = vadd.f32 %v410, %v643
    %v690 = vadd.f32 %v411, %v682
    %v691 = vadd.f32 %v412, %v684
    %v692 = vxor.u32 %v688, 2147483648
    %v693 = vmul.f32 %v692, 1.442695
    %v694 = vpow.pop %v693
    %v695 = vadd.f32 %v694, 1.0
    %v696 = vrcp.pop %v695
    %v697 = vmul.f32 1.0, %v696
    %v698 = vxor.u32 %v689, 2147483648
    %v699 = vmul.f32 %v698, 1.442695
    %v700 = vpow.pop %v699
    %v701 = vadd.f32 %v700, 1.0
    %v702 = vrcp.pop %v701
    %v703 = vmul.f32 1.0, %v702
    %v704 = vtanh.pop %v690
    %v705 = vxor.u32 %v691, 2147483648
    %v706 = vmul.f32 %v705, 1.442695
    %v707 = vpow.pop %v706
    %v708 = vadd.f32 %v707, 1.0
    %v709 = vrcp.pop %v708
    %v710 = vmul.f32 1.0, %v709
    %v711 = vmul.f32 %v703, %v402
    %v712 = vmul.f32 %v697, %v704
    %v713 = vadd.f32 %v711, %v712
    %v714 = vtanh.pop %v713
    %v715 = vmul.f32 %v710, %v714
    %s716 = scalar_lea.vmem [#allocation2], 8
    %717 = vst [vmem:[%s716] sm:$0xff] %v715
    %s718 = smul.u32 2, 4
    %s719 = smul.addr %s718, 8
    %s720 = scalar_lea.vmem [#allocation3], %s719
    %v721 = vld [vmem:[%s720] sm:$0xff]
    %v722 = vld [vmem:[%s720 + $0x8] sm:$0xff]
    %v723 = vld [vmem:[%s720 + $0x10] sm:$0xff]
    %v724 = vld [vmem:[%s720 + $0x18] sm:$0xff]
    %v725 = vpack.c.bf16 %v715, %v715
    %v726 = vld [vmem:[#allocation9] sm:$0xff]
    %v727 = vld [vmem:[#allocation9 + $0x8] sm:$0xff]
    %v728 = vld [vmem:[#allocation9 + $0x10] sm:$0xff]
    %v729 = vld [vmem:[#allocation9 + $0x18] sm:$0xff]
    %v730 = vld [vmem:[#allocation9 + $0x20] sm:$0xff]
    %v731 = vld [vmem:[#allocation9 + $0x28] sm:$0xff]
    %v732 = vld [vmem:[#allocation9 + $0x30] sm:$0xff]
    %v733 = vld [vmem:[#allocation9 + $0x38] sm:$0xff]
    %v734 = vld [vmem:[#allocation9 + $0x40] sm:$0xff]
    %v735 = vld [vmem:[#allocation9 + $0x48] sm:$0xff]
    %v736 = vld [vmem:[#allocation9 + $0x50] sm:$0xff]
    %v737 = vld [vmem:[#allocation9 + $0x58] sm:$0xff]
    %v738 = vld [vmem:[#allocation9 + $0x60] sm:$0xff]
    %v739 = vld [vmem:[#allocation9 + $0x68] sm:$0xff]
    %v740 = vld [vmem:[#allocation9 + $0x70] sm:$0xff]
    %v741 = vld [vmem:[#allocation9 + $0x78] sm:$0xff]
    %v742 = vld [vmem:[#allocation9 + $0x80] sm:$0xff]
    %v743 = vld [vmem:[#allocation9 + $0x88] sm:$0xff]
    %v744 = vld [vmem:[#allocation9 + $0x90] sm:$0xff]
    %v745 = vld [vmem:[#allocation9 + $0x98] sm:$0xff]
    %v746 = vld [vmem:[#allocation9 + $0xa0] sm:$0xff]
    %v747 = vld [vmem:[#allocation9 + $0xa8] sm:$0xff]
    %v748 = vld [vmem:[#allocation9 + $0xb0] sm:$0xff]
    %v749 = vld [vmem:[#allocation9 + $0xb8] sm:$0xff]
    %v750 = vld [vmem:[#allocation9 + $0xc0] sm:$0xff]
    %v751 = vld [vmem:[#allocation9 + $0xc8] sm:$0xff]
    %v752 = vld [vmem:[#allocation9 + $0xd0] sm:$0xff]
    %v753 = vld [vmem:[#allocation9 + $0xd8] sm:$0xff]
    %v754 = vld [vmem:[#allocation9 + $0xe0] sm:$0xff]
    %v755 = vld [vmem:[#allocation9 + $0xe8] sm:$0xff]
    %v756 = vld [vmem:[#allocation9 + $0xf0] sm:$0xff]
    %v757 = vld [vmem:[#allocation9 + $0xf8] sm:$0xff]
    %v790 = vunpack.c.l.b16 %v726
    %v791 = vunpack.c.h.b16 %v726
    %v792 = vunpack.c.l.b16 %v727
    %v793 = vunpack.c.h.b16 %v727
    %v794 = vunpack.c.l.b16 %v728
    %v795 = vunpack.c.h.b16 %v728
    %v796 = vunpack.c.l.b16 %v729
    %v797 = vunpack.c.h.b16 %v729
    %v798 = vunpack.c.l.b16 %v730
    %v799 = vunpack.c.h.b16 %v730
    %v800 = vunpack.c.l.b16 %v731
    %v801 = vunpack.c.h.b16 %v731
    %v802 = vunpack.c.l.b16 %v732
    %v803 = vunpack.c.h.b16 %v732
    %v804 = vunpack.c.l.b16 %v733
    %v805 = vunpack.c.h.b16 %v733
    %v806 = vunpack.c.l.b16 %v734
    %v807 = vunpack.c.h.b16 %v734
    %v808 = vunpack.c.l.b16 %v735
    %v809 = vunpack.c.h.b16 %v735
    %v810 = vunpack.c.l.b16 %v736
    %v811 = vunpack.c.h.b16 %v736
    %v812 = vunpack.c.l.b16 %v737
    %v813 = vunpack.c.h.b16 %v737
    %v814 = vunpack.c.l.b16 %v738
    %v815 = vunpack.c.h.b16 %v738
    %v816 = vunpack.c.l.b16 %v739
    %v817 = vunpack.c.h.b16 %v739
    %v818 = vunpack.c.l.b16 %v740
    %v819 = vunpack.c.h.b16 %v740
    %v820 = vunpack.c.l.b16 %v741
    %v821 = vunpack.c.h.b16 %v741
    %v822 = vunpack.c.l.b16 %v742
    %v823 = vunpack.c.h.b16 %v742
    %v824 = vunpack.c.l.b16 %v743
    %v825 = vunpack.c.h.b16 %v743
    %v826 = vunpack.c.l.b16 %v744
    %v827 = vunpack.c.h.b16 %v744
    %v828 = vunpack.c.l.b16 %v745
    %v829 = vunpack.c.h.b16 %v745
    %v830 = vunpack.c.l.b16 %v746
    %v831 = vunpack.c.h.b16 %v746
    %v832 = vunpack.c.l.b16 %v747
    %v833 = vunpack.c.h.b16 %v747
    %v834 = vunpack.c.l.b16 %v748
    %v835 = vunpack.c.h.b16 %v748
    %v836 = vunpack.c.l.b16 %v749
    %v837 = vunpack.c.h.b16 %v749
    %v838 = vunpack.c.l.b16 %v750
    %v839 = vunpack.c.h.b16 %v750
    %v840 = vunpack.c.l.b16 %v751
    %v841 = vunpack.c.h.b16 %v751
    %v842 = vunpack.c.l.b16 %v752
    %v843 = vunpack.c.h.b16 %v752
    %v844 = vunpack.c.l.b16 %v753
    %v845 = vunpack.c.h.b16 %v753
    %v846 = vunpack.c.l.b16 %v754
    %v847 = vunpack.c.h.b16 %v754
    %v848 = vunpack.c.l.b16 %v755
    %v849 = vunpack.c.h.b16 %v755
    %v850 = vunpack.c.l.b16 %v756
    %v851 = vunpack.c.h.b16 %v756
    %v852 = vunpack.c.l.b16 %v757
    %v853 = vunpack.c.h.b16 %v757
    %v854 = vpack.c.b16 %v794, %v790
    %v855 = vpack.c.b16 %v795, %v791
    %v856 = vpack.c.b16 %v796, %v792
    %v857 = vpack.c.b16 %v797, %v793
    %v858 = vpack.c.b16 %v802, %v798
    %v859 = vpack.c.b16 %v803, %v799
    %v860 = vpack.c.b16 %v804, %v800
    %v861 = vpack.c.b16 %v805, %v801
    %v862 = vpack.c.b16 %v810, %v806
    %v863 = vpack.c.b16 %v811, %v807
    %v864 = vpack.c.b16 %v812, %v808
    %v865 = vpack.c.b16 %v813, %v809
    %v866 = vpack.c.b16 %v818, %v814
    %v867 = vpack.c.b16 %v819, %v815
    %v868 = vpack.c.b16 %v820, %v816
    %v869 = vpack.c.b16 %v821, %v817
    %v870 = vpack.c.b16 %v826, %v822
    %v871 = vpack.c.b16 %v827, %v823
    %v872 = vpack.c.b16 %v828, %v824
    %v873 = vpack.c.b16 %v829, %v825
    %v874 = vpack.c.b16 %v834, %v830
    %v875 = vpack.c.b16 %v835, %v831
    %v876 = vpack.c.b16 %v836, %v832
    %v877 = vpack.c.b16 %v837, %v833
    %v878 = vpack.c.b16 %v842, %v838
    %v879 = vpack.c.b16 %v843, %v839
    %v880 = vpack.c.b16 %v844, %v840
    %v881 = vpack.c.b16 %v845, %v841
    %v882 = vpack.c.b16 %v850, %v846
    %v883 = vpack.c.b16 %v851, %v847
    %v884 = vpack.c.b16 %v852, %v848
    %v885 = vpack.c.b16 %v853, %v849
    %918 = vmatprep.subr.bf16.mxu0 %v883
    %919 = vmatpush1.bf16.msra.mxu0 %v882
    %920 = vmatprep.subr.bf16.mxu0 %v879
    %921 = vmatpush1.bf16.msra.mxu0 %v878
    %922 = vmatprep.subr.bf16.mxu0 %v875
    %923 = vmatpush1.bf16.msra.mxu0 %v874
    %924 = vmatprep.subr.bf16.mxu0 %v871
    %925 = vmatpush1.bf16.msra.mxu0 %v870
    %926 = vmatprep.subr.bf16.mxu0 %v867
    %927 = vmatpush1.bf16.msra.mxu0 %v866
    %928 = vmatprep.subr.bf16.mxu0 %v863
    %929 = vmatpush1.bf16.msra.mxu0 %v862
    %930 = vmatprep.subr.bf16.mxu0 %v859
    %931 = vmatpush1.bf16.msra.mxu0 %v858
    %932 = vmatprep.subr.bf16.mxu0 %v855
    %933 = vmatpush1.bf16.msra.mxu0 %v854
    %934 = vmatprep.subr.bf16.mxu0 0
    %935 = vmatpush2.bf16.msra.mxu0 0
    %936 = vmatprep.subr.bf16.mxu0 0
    %937 = vmatpush2.bf16.msra.mxu0 0
    %938 = vmatprep.subr.bf16.mxu0 0
    %939 = vmatpush2.bf16.msra.mxu0 0
    %940 = vmatprep.subr.bf16.mxu0 0
    %941 = vmatpush2.bf16.msra.mxu0 0
    %942 = vmatprep.subr.bf16.mxu0 0
    %943 = vmatpush2.bf16.msra.mxu0 0
    %944 = vmatprep.subr.bf16.mxu0 0
    %945 = vmatpush2.bf16.msra.mxu0 0
    %946 = vmatprep.subr.bf16.mxu0 0
    %947 = vmatpush2.bf16.msra.mxu0 0
    %948 = vmatprep.subr.bf16.mxu0 0
    %949 = vmatpush2.bf16.msra.mxu0 0
    %950 = vmatprep.mubr.bf16.mxu0 0
    %951 = vmatmul.mubr.bf16.gmra.mxu0 %v725
    %v952 = vpop.f32.mrf.mxu0
    %v953 = vadd.f32 0.0, %v952
    %v954 = vpop.f32.mrf.mxu0
    %v955 = vadd.f32 0.0, %v954
    %v956 = vpop.f32.mrf.mxu0
    %v957 = vpop.f32.mrf.mxu0
    %958 = vdwg.mxu0
    %959 = vmatprep.subr.bf16.mxu0 %v885
    %960 = vmatpush1.bf16.msra.mxu0 %v884
    %961 = vmatprep.subr.bf16.mxu0 %v881
    %962 = vmatpush1.bf16.msra.mxu0 %v880
    %963 = vmatprep.subr.bf16.mxu0 %v877
    %964 = vmatpush1.bf16.msra.mxu0 %v876
    %965 = vmatprep.subr.bf16.mxu0 %v873
    %966 = vmatpush1.bf16.msra.mxu0 %v872
    %967 = vmatprep.subr.bf16.mxu0 %v869
    %968 = vmatpush1.bf16.msra.mxu0 %v868
    %969 = vmatprep.subr.bf16.mxu0 %v865
    %970 = vmatpush1.bf16.msra.mxu0 %v864
    %971 = vmatprep.subr.bf16.mxu0 %v861
    %972 = vmatpush1.bf16.msra.mxu0 %v860
    %973 = vmatprep.subr.bf16.mxu0 %v857
    %974 = vmatpush1.bf16.msra.mxu0 %v856
    %975 = vmatprep.subr.bf16.mxu0 0
    %976 = vmatpush2.bf16.msra.mxu0 0
    %977 = vmatprep.subr.bf16.mxu0 0
    %978 = vmatpush2.bf16.msra.mxu0 0
    %979 = vmatprep.subr.bf16.mxu0 0
    %980 = vmatpush2.bf16.msra.mxu0 0
    %981 = vmatprep.subr.bf16.mxu0 0
    %982 = vmatpush2.bf16.msra.mxu0 0
    %983 = vmatprep.subr.bf16.mxu0 0
    %984 = vmatpush2.bf16.msra.mxu0 0
    %985 = vmatprep.subr.bf16.mxu0 0
    %986 = vmatpush2.bf16.msra.mxu0 0
    %987 = vmatprep.subr.bf16.mxu0 0
    %988 = vmatpush2.bf16.msra.mxu0 0
    %989 = vmatprep.subr.bf16.mxu0 0
    %990 = vmatpush2.bf16.msra.mxu0 0
    %991 = vmatprep.mubr.bf16.mxu0 0
    %992 = vmatmul.mubr.bf16.gmra.mxu0 %v725
    %v993 = vpop.f32.mrf.mxu0
    %v994 = vadd.f32 0.0, %v993
    %v995 = vpop.f32.mrf.mxu0
    %v996 = vadd.f32 0.0, %v995
    %v997 = vpop.f32.mrf.mxu0
    %v998 = vpop.f32.mrf.mxu0
    %999 = vdwg.mxu0
    %v1000 = vadd.f32 %v721, %v953
    %v1001 = vadd.f32 %v722, %v955
    %v1002 = vadd.f32 %v723, %v994
    %v1003 = vadd.f32 %v724, %v996
    %v1004 = vxor.u32 %v1000, 2147483648
    %v1005 = vmul.f32 %v1004, 1.442695
    %v1006 = vpow.pop %v1005
    %v1007 = vadd.f32 %v1006, 1.0
    %v1008 = vrcp.pop %v1007
    %v1009 = vmul.f32 1.0, %v1008
    %v1010 = vxor.u32 %v1001, 2147483648
    %v1011 = vmul.f32 %v1010, 1.442695
    %v1012 = vpow.pop %v1011
    %v1013 = vadd.f32 %v1012, 1.0
    %v1014 = vrcp.pop %v1013
    %v1015 = vmul.f32 1.0, %v1014
    %v1016 = vtanh.pop %v1002
    %v1017 = vxor.u32 %v1003, 2147483648
    %v1018 = vmul.f32 %v1017, 1.442695
    %v1019 = vpow.pop %v1018
    %v1020 = vadd.f32 %v1019, 1.0
    %v1021 = vrcp.pop %v1020
    %v1022 = vmul.f32 1.0, %v1021
    %v1023 = vmul.f32 %v1015, %v713
    %v1024 = vmul.f32 %v1009, %v1016
    %v1025 = vadd.f32 %v1023, %v1024
    %v1026 = vtanh.pop %v1025
    %v1027 = vmul.f32 %v1022, %v1026
    %s1028 = scalar_lea.vmem [#allocation2], 16
    %1029 = vst [vmem:[%s1028] sm:$0xff] %v1027
    %s1030 = smul.u32 3, 4
    %s1031 = smul.addr %s1030, 8
    %s1032 = scalar_lea.vmem [#allocation3], %s1031
    %v1033 = vld [vmem:[%s1032] sm:$0xff]
    %v1034 = vld [vmem:[%s1032 + $0x8] sm:$0xff]
    %v1035 = vld [vmem:[%s1032 + $0x10] sm:$0xff]
    %v1036 = vld [vmem:[%s1032 + $0x18] sm:$0xff]
    %v1037 = vpack.c.bf16 %v1027, %v1027
    %v1038 = vld [vmem:[#allocation9] sm:$0xff]
    %v1039 = vld [vmem:[#allocation9 + $0x8] sm:$0xff]
    %v1040 = vld [vmem:[#allocation9 + $0x10] sm:$0xff]
    %v1041 = vld [vmem:[#allocation9 + $0x18] sm:$0xff]
    %v1042 = vld [vmem:[#allocation9 + $0x20] sm:$0xff]
    %v1043 = vld [vmem:[#allocation9 + $0x28] sm:$0xff]
    %v1044 = vld [vmem:[#allocation9 + $0x30] sm:$0xff]
    %v1045 = vld [vmem:[#allocation9 + $0x38] sm:$0xff]
    %v1046 = vld [vmem:[#allocation9 + $0x40] sm:$0xff]
    %v1047 = vld [vmem:[#allocation9 + $0x48] sm:$0xff]
    %v1048 = vld [vmem:[#allocation9 + $0x50] sm:$0xff]
    %v1049 = vld [vmem:[#allocation9 + $0x58] sm:$0xff]
    %v1050 = vld [vmem:[#allocation9 + $0x60] sm:$0xff]
    %v1051 = vld [vmem:[#allocation9 + $0x68] sm:$0xff]
    %v1052 = vld [vmem:[#allocation9 + $0x70] sm:$0xff]
    %v1053 = vld [vmem:[#allocation9 + $0x78] sm:$0xff]
    %v1054 = vld [vmem:[#allocation9 + $0x80] sm:$0xff]
    %v1055 = vld [vmem:[#allocation9 + $0x88] sm:$0xff]
    %v1056 = vld [vmem:[#allocation9 + $0x90] sm:$0xff]
    %v1057 = vld [vmem:[#allocation9 + $0x98] sm:$0xff]
    %v1058 = vld [vmem:[#allocation9 + $0xa0] sm:$0xff]
    %v1059 = vld [vmem:[#allocation9 + $0xa8] sm:$0xff]
    %v1060 = vld [vmem:[#allocation9 + $0xb0] sm:$0xff]
    %v1061 = vld [vmem:[#allocation9 + $0xb8] sm:$0xff]
    %v1062 = vld [vmem:[#allocation9 + $0xc0] sm:$0xff]
    %v1063 = vld [vmem:[#allocation9 + $0xc8] sm:$0xff]
    %v1064 = vld [vmem:[#allocation9 + $0xd0] sm:$0xff]
    %v1065 = vld [vmem:[#allocation9 + $0xd8] sm:$0xff]
    %v1066 = vld [vmem:[#allocation9 + $0xe0] sm:$0xff]
    %v1067 = vld [vmem:[#allocation9 + $0xe8] sm:$0xff]
    %v1068 = vld [vmem:[#allocation9 + $0xf0] sm:$0xff]
    %v1069 = vld [vmem:[#allocation9 + $0xf8] sm:$0xff]
    %v1102 = vunpack.c.l.b16 %v1038
    %v1103 = vunpack.c.h.b16 %v1038
    %v1104 = vunpack.c.l.b16 %v1039
    %v1105 = vunpack.c.h.b16 %v1039
    %v1106 = vunpack.c.l.b16 %v1040
    %v1107 = vunpack.c.h.b16 %v1040
    %v1108 = vunpack.c.l.b16 %v1041
    %v1109 = vunpack.c.h.b16 %v1041
    %v1110 = vunpack.c.l.b16 %v1042
    %v1111 = vunpack.c.h.b16 %v1042
    %v1112 = vunpack.c.l.b16 %v1043
    %v1113 = vunpack.c.h.b16 %v1043
    %v1114 = vunpack.c.l.b16 %v1044
    %v1115 = vunpack.c.h.b16 %v1044
    %v1116 = vunpack.c.l.b16 %v1045
    %v1117 = vunpack.c.h.b16 %v1045
    %v1118 = vunpack.c.l.b16 %v1046
    %v1119 = vunpack.c.h.b16 %v1046
    %v1120 = vunpack.c.l.b16 %v1047
    %v1121 = vunpack.c.h.b16 %v1047
    %v1122 = vunpack.c.l.b16 %v1048
    %v1123 = vunpack.c.h.b16 %v1048
    %v1124 = vunpack.c.l.b16 %v1049
    %v1125 = vunpack.c.h.b16 %v1049
    %v1126 = vunpack.c.l.b16 %v1050
    %v1127 = vunpack.c.h.b16 %v1050
    %v1128 = vunpack.c.l.b16 %v1051
    %v1129 = vunpack.c.h.b16 %v1051
    %v1130 = vunpack.c.l.b16 %v1052
    %v1131 = vunpack.c.h.b16 %v1052
    %v1132 = vunpack.c.l.b16 %v1053
    %v1133 = vunpack.c.h.b16 %v1053
    %v1134 = vunpack.c.l.b16 %v1054
    %v1135 = vunpack.c.h.b16 %v1054
    %v1136 = vunpack.c.l.b16 %v1055
    %v1137 = vunpack.c.h.b16 %v1055
    %v1138 = vunpack.c.l.b16 %v1056
    %v1139 = vunpack.c.h.b16 %v1056
    %v1140 = vunpack.c.l.b16 %v1057
    %v1141 = vunpack.c.h.b16 %v1057
    %v1142 = vunpack.c.l.b16 %v1058
    %v1143 = vunpack.c.h.b16 %v1058
    %v1144 = vunpack.c.l.b16 %v1059
    %v1145 = vunpack.c.h.b16 %v1059
    %v1146 = vunpack.c.l.b16 %v1060
    %v1147 = vunpack.c.h.b16 %v1060
    %v1148 = vunpack.c.l.b16 %v1061
    %v1149 = vunpack.c.h.b16 %v1061
    %v1150 = vunpack.c.l.b16 %v1062
    %v1151 = vunpack.c.h.b16 %v1062
    %v1152 = vunpack.c.l.b16 %v1063
    %v1153 = vunpack.c.h.b16 %v1063
    %v1154 = vunpack.c.l.b16 %v1064
    %v1155 = vunpack.c.h.b16 %v1064
    %v1156 = vunpack.c.l.b16 %v1065
    %v1157 = vunpack.c.h.b16 %v1065
    %v1158 = vunpack.c.l.b16 %v1066
    %v1159 = vunpack.c.h.b16 %v1066
    %v1160 = vunpack.c.l.b16 %v1067
    %v1161 = vunpack.c.h.b16 %v1067
    %v1162 = vunpack.c.l.b16 %v1068
    %v1163 = vunpack.c.h.b16 %v1068
    %v1164 = vunpack.c.l.b16 %v1069
    %v1165 = vunpack.c.h.b16 %v1069
    %v1166 = vpack.c.b16 %v1106, %v1102
    %v1167 = vpack.c.b16 %v1107, %v1103
    %v1168 = vpack.c.b16 %v1108, %v1104
    %v1169 = vpack.c.b16 %v1109, %v1105
    %v1170 = vpack.c.b16 %v1114, %v1110
    %v1171 = vpack.c.b16 %v1115, %v1111
    %v1172 = vpack.c.b16 %v1116, %v1112
    %v1173 = vpack.c.b16 %v1117, %v1113
    %v1174 = vpack.c.b16 %v1122, %v1118
    %v1175 = vpack.c.b16 %v1123, %v1119
    %v1176 = vpack.c.b16 %v1124, %v1120
    %v1177 = vpack.c.b16 %v1125, %v1121
    %v1178 = vpack.c.b16 %v1130, %v1126
    %v1179 = vpack.c.b16 %v1131, %v1127
    %v1180 = vpack.c.b16 %v1132, %v1128
    %v1181 = vpack.c.b16 %v1133, %v1129
    %v1182 = vpack.c.b16 %v1138, %v1134
    %v1183 = vpack.c.b16 %v1139, %v1135
    %v1184 = vpack.c.b16 %v1140, %v1136
    %v1185 = vpack.c.b16 %v1141, %v1137
    %v1186 = vpack.c.b16 %v1146, %v1142
    %v1187 = vpack.c.b16 %v1147, %v1143
    %v1188 = vpack.c.b16 %v1148, %v1144
    %v1189 = vpack.c.b16 %v1149, %v1145
    %v1190 = vpack.c.b16 %v1154, %v1150
    %v1191 = vpack.c.b16 %v1155, %v1151
    %v1192 = vpack.c.b16 %v1156, %v1152
    %v1193 = vpack.c.b16 %v1157, %v1153
    %v1194 = vpack.c.b16 %v1162, %v1158
    %v1195 = vpack.c.b16 %v1163, %v1159
    %v1196 = vpack.c.b16 %v1164, %v1160
    %v1197 = vpack.c.b16 %v1165, %v1161
    %1230 = vmatprep.subr.bf16.mxu0 %v1195
    %1231 = vmatpush1.bf16.msra.mxu0 %v1194
    %1232 = vmatprep.subr.bf16.mxu0 %v1191
    %1233 = vmatpush1.bf16.msra.mxu0 %v1190
    %1234 = vmatprep.subr.bf16.mxu0 %v1187
    %1235 = vmatpush1.bf16.msra.mxu0 %v1186
    %1236 = vmatprep.subr.bf16.mxu0 %v1183
    %1237 = vmatpush1.bf16.msra.mxu0 %v1182
    %1238 = vmatprep.subr.bf16.mxu0 %v1179
    %1239 = vmatpush1.bf16.msra.mxu0 %v1178
    %1240 = vmatprep.subr.bf16.mxu0 %v1175
    %1241 = vmatpush1.bf16.msra.mxu0 %v1174
    %1242 = vmatprep.subr.bf16.mxu0 %v1171
    %1243 = vmatpush1.bf16.msra.mxu0 %v1170
    %1244 = vmatprep.subr.bf16.mxu0 %v1167
    %1245 = vmatpush1.bf16.msra.mxu0 %v1166
    %1246 = vmatprep.subr.bf16.mxu0 0
    %1247 = vmatpush2.bf16.msra.mxu0 0
    %1248 = vmatprep.subr.bf16.mxu0 0
    %1249 = vmatpush2.bf16.msra.mxu0 0
    %1250 = vmatprep.subr.bf16.mxu0 0
    %1251 = vmatpush2.bf16.msra.mxu0 0
    %1252 = vmatprep.subr.bf16.mxu0 0
    %1253 = vmatpush2.bf16.msra.mxu0 0
    %1254 = vmatprep.subr.bf16.mxu0 0
    %1255 = vmatpush2.bf16.msra.mxu0 0
    %1256 = vmatprep.subr.bf16.mxu0 0
    %1257 = vmatpush2.bf16.msra.mxu0 0
    %1258 = vmatprep.subr.bf16.mxu0 0
    %1259 = vmatpush2.bf16.msra.mxu0 0
    %1260 = vmatprep.subr.bf16.mxu0 0
    %1261 = vmatpush2.bf16.msra.mxu0 0
    %1262 = vmatprep.mubr.bf16.mxu0 0
    %1263 = vmatmul.mubr.bf16.gmra.mxu0 %v1037
    %v1264 = vpop.f32.mrf.mxu0
    %v1265 = vadd.f32 0.0, %v1264
    %v1266 = vpop.f32.mrf.mxu0
    %v1267 = vadd.f32 0.0, %v1266
    %v1268 = vpop.f32.mrf.mxu0
    %v1269 = vpop.f32.mrf.mxu0
    %1270 = vdwg.mxu0
    %1271 = vmatprep.subr.bf16.mxu0 %v1197
    %1272 = vmatpush1.bf16.msra.mxu0 %v1196
    %1273 = vmatprep.subr.bf16.mxu0 %v1193
    %1274 = vmatpush1.bf16.msra.mxu0 %v1192
    %1275 = vmatprep.subr.bf16.mxu0 %v1189
    %1276 = vmatpush1.bf16.msra.mxu0 %v1188
    %1277 = vmatprep.subr.bf16.mxu0 %v1185
    %1278 = vmatpush1.bf16.msra.mxu0 %v1184
    %1279 = vmatprep.subr.bf16.mxu0 %v1181
    %1280 = vmatpush1.bf16.msra.mxu0 %v1180
    %1281 = vmatprep.subr.bf16.mxu0 %v1177
    %1282 = vmatpush1.bf16.msra.mxu0 %v1176
    %1283 = vmatprep.subr.bf16.mxu0 %v1173
    %1284 = vmatpush1.bf16.msra.mxu0 %v1172
    %1285 = vmatprep.subr.bf16.mxu0 %v1169
    %1286 = vmatpush1.bf16.msra.mxu0 %v1168
    %1287 = vmatprep.subr.bf16.mxu0 0
    %1288 = vmatpush2.bf16.msra.mxu0 0
    %1289 = vmatprep.subr.bf16.mxu0 0
    %1290 = vmatpush2.bf16.msra.mxu0 0
    %1291 = vmatprep.subr.bf16.mxu0 0
    %1292 = vmatpush2.bf16.msra.mxu0 0
    %1293 = vmatprep.subr.bf16.mxu0 0
    %1294 = vmatpush2.bf16.msra.mxu0 0
    %1295 = vmatprep.subr.bf16.mxu0 0
    %1296 = vmatpush2.bf16.msra.mxu0 0
    %1297 = vmatprep.subr.bf16.mxu0 0
    %1298 = vmatpush2.bf16.msra.mxu0 0
    %1299 = vmatprep.subr.bf16.mxu0 0
    %1300 = vmatpush2.bf16.msra.mxu0 0
    %1301 = vmatprep.subr.bf16.mxu0 0
    %1302 = vmatpush2.bf16.msra.mxu0 0
    %1303 = vmatprep.mubr.bf16.mxu0 0
    %1304 = vmatmul.mubr.bf16.gmra.mxu0 %v1037
    %v1305 = vpop.f32.mrf.mxu0
    %v1306 = vadd.f32 0.0, %v1305
    %v1307 = vpop.f32.mrf.mxu0
    %v1308 = vadd.f32 0.0, %v1307
    %v1309 = vpop.f32.mrf.mxu0
    %v1310 = vpop.f32.mrf.mxu0
    %1311 = vdwg.mxu0
    %v1312 = vadd.f32 %v1033, %v1265
    %v1313 = vadd.f32 %v1034, %v1267
    %v1314 = vadd.f32 %v1035, %v1306
    %v1315 = vadd.f32 %v1036, %v1308
    %v1316 = vxor.u32 %v1312, 2147483648
    %v1317 = vmul.f32 %v1316, 1.442695
    %v1318 = vpow.pop %v1317
    %v1319 = vadd.f32 %v1318, 1.0
    %v1320 = vrcp.pop %v1319
    %v1321 = vmul.f32 1.0, %v1320
    %v1322 = vxor.u32 %v1313, 2147483648
    %v1323 = vmul.f32 %v1322, 1.442695
    %v1324 = vpow.pop %v1323
    %v1325 = vadd.f32 %v1324, 1.0
    %v1326 = vrcp.pop %v1325
    %v1327 = vmul.f32 1.0, %v1326
    %v1328 = vtanh.pop %v1314
    %v1329 = vxor.u32 %v1315, 2147483648
    %v1330 = vmul.f32 %v1329, 1.442695
    %v1331 = vpow.pop %v1330
    %v1332 = vadd.f32 %v1331, 1.0
    %v1333 = vrcp.pop %v1332
    %v1334 = vmul.f32 1.0, %v1333
    %v1335 = vmul.f32 %v1327, %v1025
    %v1336 = vmul.f32 %v1321, %v1328
    %v1337 = vadd.f32 %v1335, %v1336
    %v1338 = vtanh.pop %v1337
    %v1339 = vmul.f32 %v1334, %v1338
    %s1340 = scalar_lea.vmem [#allocation2], 24
    %1341 = vst [vmem:[%s1340] sm:$0xff] %v1339
    %s1342 = smul.u32 4, 4
    %s1343 = smul.addr %s1342, 8
    %s1344 = scalar_lea.vmem [#allocation3], %s1343
    %v1345 = vld [vmem:[%s1344] sm:$0xff]
    %v1346 = vld [vmem:[%s1344 + $0x8] sm:$0xff]
    %v1347 = vld [vmem:[%s1344 + $0x10] sm:$0xff]
    %v1348 = vld [vmem:[%s1344 + $0x18] sm:$0xff]
    %v1349 = vpack.c.bf16 %v1339, %v1339
    %v1350 = vld [vmem:[#allocation9] sm:$0xff]
    %v1351 = vld [vmem:[#allocation9 + $0x8] sm:$0xff]
    %v1352 = vld [vmem:[#allocation9 + $0x10] sm:$0xff]
    %v1353 = vld [vmem:[#allocation9 + $0x18] sm:$0xff]
    %v1354 = vld [vmem:[#allocation9 + $0x20] sm:$0xff]
    %v1355 = vld [vmem:[#allocation9 + $0x28] sm:$0xff]
    %v1356 = vld [vmem:[#allocation9 + $0x30] sm:$0xff]
    %v1357 = vld [vmem:[#allocation9 + $0x38] sm:$0xff]
    %v1358 = vld [vmem:[#allocation9 + $0x40] sm:$0xff]
    %v1359 = vld [vmem:[#allocation9 + $0x48] sm:$0xff]
    %v1360 = vld [vmem:[#allocation9 + $0x50] sm:$0xff]
    %v1361 = vld [vmem:[#allocation9 + $0x58] sm:$0xff]
    %v1362 = vld [vmem:[#allocation9 + $0x60] sm:$0xff]
    %v1363 = vld [vmem:[#allocation9 + $0x68] sm:$0xff]
    %v1364 = vld [vmem:[#allocation9 + $0x70] sm:$0xff]
    %v1365 = vld [vmem:[#allocation9 + $0x78] sm:$0xff]
    %v1366 = vld [vmem:[#allocation9 + $0x80] sm:$0xff]
    %v1367 = vld [vmem:[#allocation9 + $0x88] sm:$0xff]
    %v1368 = vld [vmem:[#allocation9 + $0x90] sm:$0xff]
    %v1369 = vld [vmem:[#allocation9 + $0x98] sm:$0xff]
    %v1370 = vld [vmem:[#allocation9 + $0xa0] sm:$0xff]
    %v1371 = vld [vmem:[#allocation9 + $0xa8] sm:$0xff]
    %v1372 = vld [vmem:[#allocation9 + $0xb0] sm:$0xff]
    %v1373 = vld [vmem:[#allocation9 + $0xb8] sm:$0xff]
    %v1374 = vld [vmem:[#allocation9 + $0xc0] sm:$0xff]
    %v1375 = vld [vmem:[#allocation9 + $0xc8] sm:$0xff]
    %v1376 = vld [vmem:[#allocation9 + $0xd0] sm:$0xff]
    %v1377 = vld [vmem:[#allocation9 + $0xd8] sm:$0xff]
    %v1378 = vld [vmem:[#allocation9 + $0xe0] sm:$0xff]
    %v1379 = vld [vmem:[#allocation9 + $0xe8] sm:$0xff]
    %v1380 = vld [vmem:[#allocation9 + $0xf0] sm:$0xff]
    %v1381 = vld [vmem:[#allocation9 + $0xf8] sm:$0xff]
    %v1414 = vunpack.c.l.b16 %v1350
    %v1415 = vunpack.c.h.b16 %v1350
    %v1416 = vunpack.c.l.b16 %v1351
    %v1417 = vunpack.c.h.b16 %v1351
    %v1418 = vunpack.c.l.b16 %v1352
    %v1419 = vunpack.c.h.b16 %v1352
    %v1420 = vunpack.c.l.b16 %v1353
    %v1421 = vunpack.c.h.b16 %v1353
    %v1422 = vunpack.c.l.b16 %v1354
    %v1423 = vunpack.c.h.b16 %v1354
    %v1424 = vunpack.c.l.b16 %v1355
    %v1425 = vunpack.c.h.b16 %v1355
    %v1426 = vunpack.c.l.b16 %v1356
    %v1427 = vunpack.c.h.b16 %v1356
    %v1428 = vunpack.c.l.b16 %v1357
    %v1429 = vunpack.c.h.b16 %v1357
    %v1430 = vunpack.c.l.b16 %v1358
    %v1431 = vunpack.c.h.b16 %v1358
    %v1432 = vunpack.c.l.b16 %v1359
    %v1433 = vunpack.c.h.b16 %v1359
    %v1434 = vunpack.c.l.b16 %v1360
    %v1435 = vunpack.c.h.b16 %v1360
    %v1436 = vunpack.c.l.b16 %v1361
    %v1437 = vunpack.c.h.b16 %v1361
    %v1438 = vunpack.c.l.b16 %v1362
    %v1439 = vunpack.c.h.b16 %v1362
    %v1440 = vunpack.c.l.b16 %v1363
    %v1441 = vunpack.c.h.b16 %v1363
    %v1442 = vunpack.c.l.b16 %v1364
    %v1443 = vunpack.c.h.b16 %v1364
    %v1444 = vunpack.c.l.b16 %v1365
    %v1445 = vunpack.c.h.b16 %v1365
    %v1446 = vunpack.c.l.b16 %v1366
    %v1447 = vunpack.c.h.b16 %v1366
    %v1448 = vunpack.c.l.b16 %v1367
    %v1449 = vunpack.c.h.b16 %v1367
    %v1450 = vunpack.c.l.b16 %v1368
    %v1451 = vunpack.c.h.b16 %v1368
    %v1452 = vunpack.c.l.b16 %v1369
    %v1453 = vunpack.c.h.b16 %v1369
    %v1454 = vunpack.c.l.b16 %v1370
    %v1455 = vunpack.c.h.b16 %v1370
    %v1456 = vunpack.c.l.b16 %v1371
    %v1457 = vunpack.c.h.b16 %v1371
    %v1458 = vunpack.c.l.b16 %v1372
    %v1459 = vunpack.c.h.b16 %v1372
    %v1460 = vunpack.c.l.b16 %v1373
    %v1461 = vunpack.c.h.b16 %v1373
    %v1462 = vunpack.c.l.b16 %v1374
    %v1463 = vunpack.c.h.b16 %v1374
    %v1464 = vunpack.c.l.b16 %v1375
    %v1465 = vunpack.c.h.b16 %v1375
    %v1466 = vunpack.c.l.b16 %v1376
    %v1467 = vunpack.c.h.b16 %v1376
    %v1468 = vunpack.c.l.b16 %v1377
    %v1469 = vunpack.c.h.b16 %v1377
    %v1470 = vunpack.c.l.b16 %v1378
    %v1471 = vunpack.c.h.b16 %v1378
    %v1472 = vunpack.c.l.b16 %v1379
    %v1473 = vunpack.c.h.b16 %v1379
    %v1474 = vunpack.c.l.b16 %v1380
    %v1475 = vunpack.c.h.b16 %v1380
    %v1476 = vunpack.c.l.b16 %v1381
    %v1477 = vunpack.c.h.b16 %v1381
    %v1478 = vpack.c.b16 %v1418, %v1414
    %v1479 = vpack.c.b16 %v1419, %v1415
    %v1480 = vpack.c.b16 %v1420, %v1416
    %v1481 = vpack.c.b16 %v1421, %v1417
    %v1482 = vpack.c.b16 %v1426, %v1422
    %v1483 = vpack.c.b16 %v1427, %v1423
    %v1484 = vpack.c.b16 %v1428, %v1424
    %v1485 = vpack.c.b16 %v1429, %v1425
    %v1486 = vpack.c.b16 %v1434, %v1430
    %v1487 = vpack.c.b16 %v1435, %v1431
    %v1488 = vpack.c.b16 %v1436, %v1432
    %v1489 = vpack.c.b16 %v1437, %v1433
    %v1490 = vpack.c.b16 %v1442, %v1438
    %v1491 = vpack.c.b16 %v1443, %v1439
    %v1492 = vpack.c.b16 %v1444, %v1440
    %v1493 = vpack.c.b16 %v1445, %v1441
    %v1494 = vpack.c.b16 %v1450, %v1446
    %v1495 = vpack.c.b16 %v1451, %v1447
    %v1496 = vpack.c.b16 %v1452, %v1448
    %v1497 = vpack.c.b16 %v1453, %v1449
    %v1498 = vpack.c.b16 %v1458, %v1454
    %v1499 = vpack.c.b16 %v1459, %v1455
    %v1500 = vpack.c.b16 %v1460, %v1456
    %v1501 = vpack.c.b16 %v1461, %v1457
    %v1502 = vpack.c.b16 %v1466, %v1462
    %v1503 = vpack.c.b16 %v1467, %v1463
    %v1504 = vpack.c.b16 %v1468, %v1464
    %v1505 = vpack.c.b16 %v1469, %v1465
    %v1506 = vpack.c.b16 %v1474, %v1470
    %v1507 = vpack.c.b16 %v1475, %v1471
    %v1508 = vpack.c.b16 %v1476, %v1472
    %v1509 = vpack.c.b16 %v1477, %v1473
    %1542 = vmatprep.subr.bf16.mxu0 %v1507
    %1543 = vmatpush1.bf16.msra.mxu0 %v1506
    %1544 = vmatprep.subr.bf16.mxu0 %v1503
    %1545 = vmatpush1.bf16.msra.mxu0 %v1502
    %1546 = vmatprep.subr.bf16.mxu0 %v1499
    %1547 = vmatpush1.bf16.msra.mxu0 %v1498
    %1548 = vmatprep.subr.bf16.mxu0 %v1495
    %1549 = vmatpush1.bf16.msra.mxu0 %v1494
    %1550 = vmatprep.subr.bf16.mxu0 %v1491
    %1551 = vmatpush1.bf16.msra.mxu0 %v1490
    %1552 = vmatprep.subr.bf16.mxu0 %v1487
    %1553 = vmatpush1.bf16.msra.mxu0 %v1486
    %1554 = vmatprep.subr.bf16.mxu0 %v1483
    %1555 = vmatpush1.bf16.msra.mxu0 %v1482
    %1556 = vmatprep.subr.bf16.mxu0 %v1479
    %1557 = vmatpush1.bf16.msra.mxu0 %v1478
    %1558 = vmatprep.subr.bf16.mxu0 0
    %1559 = vmatpush2.bf16.msra.mxu0 0
    %1560 = vmatprep.subr.bf16.mxu0 0
    %1561 = vmatpush2.bf16.msra.mxu0 0
    %1562 = vmatprep.subr.bf16.mxu0 0
    %1563 = vmatpush2.bf16.msra.mxu0 0
    %1564 = vmatprep.subr.bf16.mxu0 0
    %1565 = vmatpush2.bf16.msra.mxu0 0
    %1566 = vmatprep.subr.bf16.mxu0 0
    %1567 = vmatpush2.bf16.msra.mxu0 0
    %1568 = vmatprep.subr.bf16.mxu0 0
    %1569 = vmatpush2.bf16.msra.mxu0 0
    %1570 = vmatprep.subr.bf16.mxu0 0
    %1571 = vmatpush2.bf16.msra.mxu0 0
    %1572 = vmatprep.subr.bf16.mxu0 0
    %1573 = vmatpush2.bf16.msra.mxu0 0
    %1574 = vmatprep.mubr.bf16.mxu0 0
    %1575 = vmatmul.mubr.bf16.gmra.mxu0 %v1349
    %v1576 = vpop.f32.mrf.mxu0
    %v1577 = vadd.f32 0.0, %v1576
    %v1578 = vpop.f32.mrf.mxu0
    %v1579 = vadd.f32 0.0, %v1578
    %v1580 = vpop.f32.mrf.mxu0
    %v1581 = vpop.f32.mrf.mxu0
    %1582 = vdwg.mxu0
    %1583 = vmatprep.subr.bf16.mxu0 %v1509
    %1584 = vmatpush1.bf16.msra.mxu0 %v1508
    %1585 = vmatprep.subr.bf16.mxu0 %v1505
    %1586 = vmatpush1.bf16.msra.mxu0 %v1504
    %1587 = vmatprep.subr.bf16.mxu0 %v1501
    %1588 = vmatpush1.bf16.msra.mxu0 %v1500
    %1589 = vmatprep.subr.bf16.mxu0 %v1497
    %1590 = vmatpush1.bf16.msra.mxu0 %v1496
    %1591 = vmatprep.subr.bf16.mxu0 %v1493
    %1592 = vmatpush1.bf16.msra.mxu0 %v1492
    %1593 = vmatprep.subr.bf16.mxu0 %v1489
    %1594 = vmatpush1.bf16.msra.mxu0 %v1488
    %1595 = vmatprep.subr.bf16.mxu0 %v1485
    %1596 = vmatpush1.bf16.msra.mxu0 %v1484
    %1597 = vmatprep.subr.bf16.mxu0 %v1481
    %1598 = vmatpush1.bf16.msra.mxu0 %v1480
    %1599 = vmatprep.subr.bf16.mxu0 0
    %1600 = vmatpush2.bf16.msra.mxu0 0
    %1601 = vmatprep.subr.bf16.mxu0 0
    %1602 = vmatpush2.bf16.msra.mxu0 0
    %1603 = vmatprep.subr.bf16.mxu0 0
    %1604 = vmatpush2.bf16.msra.mxu0 0
    %1605 = vmatprep.subr.bf16.mxu0 0
    %1606 = vmatpush2.bf16.msra.mxu0 0
    %1607 = vmatprep.subr.bf16.mxu0 0
    %1608 = vmatpush2.bf16.msra.mxu0 0
    %1609 = vmatprep.subr.bf16.mxu0 0
    %1610 = vmatpush2.bf16.msra.mxu0 0
    %1611 = vmatprep.subr.bf16.mxu0 0
    %1612 = vmatpush2.bf16.msra.mxu0 0
    %1613 = vmatprep.subr.bf16.mxu0 0
    %1614 = vmatpush2.bf16.msra.mxu0 0
    %1615 = vmatprep.mubr.bf16.mxu0 0
    %1616 = vmatmul.mubr.bf16.gmra.mxu0 %v1349
    %v1617 = vpop.f32.mrf.mxu0
    %v1618 = vadd.f32 0.0, %v1617
    %v1619 = vpop.f32.mrf.mxu0
    %v1620 = vadd.f32 0.0, %v1619
    %v1621 = vpop.f32.mrf.mxu0
    %v1622 = vpop.f32.mrf.mxu0
    %1623 = vdwg.mxu0
    %v1624 = vadd.f32 %v1345, %v1577
    %v1625 = vadd.f32 %v1346, %v1579
    %v1626 = vadd.f32 %v1347, %v1618
    %v1627 = vadd.f32 %v1348, %v1620
    %v1628 = vxor.u32 %v1624, 2147483648
    %v1629 = vmul.f32 %v1628, 1.442695
    %v1630 = vpow.pop %v1629
    %v1631 = vadd.f32 %v1630, 1.0
    %v1632 = vrcp.pop %v1631
    %v1633 = vmul.f32 1.0, %v1632
    %v1634 = vxor.u32 %v1625, 2147483648
    %v1635 = vmul.f32 %v1634, 1.442695
    %v1636 = vpow.pop %v1635
    %v1637 = vadd.f32 %v1636, 1.0
    %v1638 = vrcp.pop %v1637
    %v1639 = vmul.f32 1.0, %v1638
    %v1640 = vtanh.pop %v1626
    %v1641 = vxor.u32 %v1627, 2147483648
    %v1642 = vmul.f32 %v1641, 1.442695
    %v1643 = vpow.pop %v1642
    %v1644 = vadd.f32 %v1643, 1.0
    %v1645 = vrcp.pop %v1644
    %v1646 = vmul.f32 1.0, %v1645
    %v1647 = vmul.f32 %v1639, %v1337
    %v1648 = vmul.f32 %v1633, %v1640
    %v1649 = vadd.f32 %v1647, %v1648
    %v1650 = vtanh.pop %v1649
    %v1651 = vmul.f32 %v1646, %v1650
    %s1652 = scalar_lea.vmem [#allocation2], 32
    %1653 = vst [vmem:[%s1652] sm:$0xff] %v1651
    %s1654 = smul.u32 5, 4
    %s1655 = smul.addr %s1654, 8
    %s1656 = scalar_lea.vmem [#allocation3], %s1655
    %v1657 = vld [vmem:[%s1656] sm:$0xff]
    %v1658 = vld [vmem:[%s1656 + $0x8] sm:$0xff]
    %v1659 = vld [vmem:[%s1656 + $0x10] sm:$0xff]
    %v1660 = vld [vmem:[%s1656 + $0x18] sm:$0xff]
    %v1661 = vpack.c.bf16 %v1651, %v1651
    %v1662 = vld [vmem:[#allocation9] sm:$0xff]
    %v1663 = vld [vmem:[#allocation9 + $0x8] sm:$0xff]
    %v1664 = vld [vmem:[#allocation9 + $0x10] sm:$0xff]
    %v1665 = vld [vmem:[#allocation9 + $0x18] sm:$0xff]
    %v1666 = vld [vmem:[#allocation9 + $0x20] sm:$0xff]
    %v1667 = vld [vmem:[#allocation9 + $0x28] sm:$0xff]
    %v1668 = vld [vmem:[#allocation9 + $0x30] sm:$0xff]
    %v1669 = vld [vmem:[#allocation9 + $0x38] sm:$0xff]
    %v1670 = vld [vmem:[#allocation9 + $0x40] sm:$0xff]
    %v1671 = vld [vmem:[#allocation9 + $0x48] sm:$0xff]
    %v1672 = vld [vmem:[#allocation9 + $0x50] sm:$0xff]
    %v1673 = vld [vmem:[#allocation9 + $0x58] sm:$0xff]
    %v1674 = vld [vmem:[#allocation9 + $0x60] sm:$0xff]
    %v1675 = vld [vmem:[#allocation9 + $0x68] sm:$0xff]
    %v1676 = vld [vmem:[#allocation9 + $0x70] sm:$0xff]
    %v1677 = vld [vmem:[#allocation9 + $0x78] sm:$0xff]
    %v1678 = vld [vmem:[#allocation9 + $0x80] sm:$0xff]
    %v1679 = vld [vmem:[#allocation9 + $0x88] sm:$0xff]
    %v1680 = vld [vmem:[#allocation9 + $0x90] sm:$0xff]
    %v1681 = vld [vmem:[#allocation9 + $0x98] sm:$0xff]
    %v1682 = vld [vmem:[#allocation9 + $0xa0] sm:$0xff]
    %v1683 = vld [vmem:[#allocation9 + $0xa8] sm:$0xff]
    %v1684 = vld [vmem:[#allocation9 + $0xb0] sm:$0xff]
    %v1685 = vld [vmem:[#allocation9 + $0xb8] sm:$0xff]
    %v1686 = vld [vmem:[#allocation9 + $0xc0] sm:$0xff]
    %v1687 = vld [vmem:[#allocation9 + $0xc8] sm:$0xff]
    %v1688 = vld [vmem:[#allocation9 + $0xd0] sm:$0xff]
    %v1689 = vld [vmem:[#allocation9 + $0xd8] sm:$0xff]
    %v1690 = vld [vmem:[#allocation9 + $0xe0] sm:$0xff]
    %v1691 = vld [vmem:[#allocation9 + $0xe8] sm:$0xff]
    %v1692 = vld [vmem:[#allocation9 + $0xf0] sm:$0xff]
    %v1693 = vld [vmem:[#allocation9 + $0xf8] sm:$0xff]
    %v1726 = vunpack.c.l.b16 %v1662
    %v1727 = vunpack.c.h.b16 %v1662
    %v1728 = vunpack.c.l.b16 %v1663
    %v1729 = vunpack.c.h.b16 %v1663
    %v1730 = vunpack.c.l.b16 %v1664
    %v1731 = vunpack.c.h.b16 %v1664
    %v1732 = vunpack.c.l.b16 %v1665
    %v1733 = vunpack.c.h.b16 %v1665
    %v1734 = vunpack.c.l.b16 %v1666
    %v1735 = vunpack.c.h.b16 %v1666
    %v1736 = vunpack.c.l.b16 %v1667
    %v1737 = vunpack.c.h.b16 %v1667
    %v1738 = vunpack.c.l.b16 %v1668
    %v1739 = vunpack.c.h.b16 %v1668
    %v1740 = vunpack.c.l.b16 %v1669
    %v1741 = vunpack.c.h.b16 %v1669
    %v1742 = vunpack.c.l.b16 %v1670
    %v1743 = vunpack.c.h.b16 %v1670
    %v1744 = vunpack.c.l.b16 %v1671
    %v1745 = vunpack.c.h.b16 %v1671
    %v1746 = vunpack.c.l.b16 %v1672
    %v1747 = vunpack.c.h.b16 %v1672
    %v1748 = vunpack.c.l.b16 %v1673
    %v1749 = vunpack.c.h.b16 %v1673
    %v1750 = vunpack.c.l.b16 %v1674
    %v1751 = vunpack.c.h.b16 %v1674
    %v1752 = vunpack.c.l.b16 %v1675
    %v1753 = vunpack.c.h.b16 %v1675
    %v1754 = vunpack.c.l.b16 %v1676
    %v1755 = vunpack.c.h.b16 %v1676
    %v1756 = vunpack.c.l.b16 %v1677
    %v1757 = vunpack.c.h.b16 %v1677
    %v1758 = vunpack.c.l.b16 %v1678
    %v1759 = vunpack.c.h.b16 %v1678
    %v1760 = vunpack.c.l.b16 %v1679
    %v1761 = vunpack.c.h.b16 %v1679
    %v1762 = vunpack.c.l.b16 %v1680
    %v1763 = vunpack.c.h.b16 %v1680
    %v1764 = vunpack.c.l.b16 %v1681
    %v1765 = vunpack.c.h.b16 %v1681
    %v1766 = vunpack.c.l.b16 %v1682
    %v1767 = vunpack.c.h.b16 %v1682
    %v1768 = vunpack.c.l.b16 %v1683
    %v1769 = vunpack.c.h.b16 %v1683
    %v1770 = vunpack.c.l.b16 %v1684
    %v1771 = vunpack.c.h.b16 %v1684
    %v1772 = vunpack.c.l.b16 %v1685
    %v1773 = vunpack.c.h.b16 %v1685
    %v1774 = vunpack.c.l.b16 %v1686
    %v1775 = vunpack.c.h.b16 %v1686
    %v1776 = vunpack.c.l.b16 %v1687
    %v1777 = vunpack.c.h.b16 %v1687
    %v1778 = vunpack.c.l.b16 %v1688
    %v1779 = vunpack.c.h.b16 %v1688
    %v1780 = vunpack.c.l.b16 %v1689
    %v1781 = vunpack.c.h.b16 %v1689
    %v1782 = vunpack.c.l.b16 %v1690
    %v1783 = vunpack.c.h.b16 %v1690
    %v1784 = vunpack.c.l.b16 %v1691
    %v1785 = vunpack.c.h.b16 %v1691
    %v1786 = vunpack.c.l.b16 %v1692
    %v1787 = vunpack.c.h.b16 %v1692
    %v1788 = vunpack.c.l.b16 %v1693
    %v1789 = vunpack.c.h.b16 %v1693
    %v1790 = vpack.c.b16 %v1730, %v1726
    %v1791 = vpack.c.b16 %v1731, %v1727
    %v1792 = vpack.c.b16 %v1732, %v1728
    %v1793 = vpack.c.b16 %v1733, %v1729
    %v1794 = vpack.c.b16 %v1738, %v1734
    %v1795 = vpack.c.b16 %v1739, %v1735
    %v1796 = vpack.c.b16 %v1740, %v1736
    %v1797 = vpack.c.b16 %v1741, %v1737
    %v1798 = vpack.c.b16 %v1746, %v1742
    %v1799 = vpack.c.b16 %v1747, %v1743
    %v1800 = vpack.c.b16 %v1748, %v1744
    %v1801 = vpack.c.b16 %v1749, %v1745
    %v1802 = vpack.c.b16 %v1754, %v1750
    %v1803 = vpack.c.b16 %v1755, %v1751
    %v1804 = vpack.c.b16 %v1756, %v1752
    %v1805 = vpack.c.b16 %v1757, %v1753
    %v1806 = vpack.c.b16 %v1762, %v1758
    %v1807 = vpack.c.b16 %v1763, %v1759
    %v1808 = vpack.c.b16 %v1764, %v1760
    %v1809 = vpack.c.b16 %v1765, %v1761
    %v1810 = vpack.c.b16 %v1770, %v1766
    %v1811 = vpack.c.b16 %v1771, %v1767
    %v1812 = vpack.c.b16 %v1772, %v1768
    %v1813 = vpack.c.b16 %v1773, %v1769
    %v1814 = vpack.c.b16 %v1778, %v1774
    %v1815 = vpack.c.b16 %v1779, %v1775
    %v1816 = vpack.c.b16 %v1780, %v1776
    %v1817 = vpack.c.b16 %v1781, %v1777
    %v1818 = vpack.c.b16 %v1786, %v1782
    %v1819 = vpack.c.b16 %v1787, %v1783
    %v1820 = vpack.c.b16 %v1788, %v1784
    %v1821 = vpack.c.b16 %v1789, %v1785
    %1854 = vmatprep.subr.bf16.mxu0 %v1819
    %1855 = vmatpush1.bf16.msra.mxu0 %v1818
    %1856 = vmatprep.subr.bf16.mxu0 %v1815
    %1857 = vmatpush1.bf16.msra.mxu0 %v1814
    %1858 = vmatprep.subr.bf16.mxu0 %v1811
    %1859 = vmatpush1.bf16.msra.mxu0 %v1810
    %1860 = vmatprep.subr.bf16.mxu0 %v1807
    %1861 = vmatpush1.bf16.msra.mxu0 %v1806
    %1862 = vmatprep.subr.bf16.mxu0 %v1803
    %1863 = vmatpush1.bf16.msra.mxu0 %v1802
    %1864 = vmatprep.subr.bf16.mxu0 %v1799
    %1865 = vmatpush1.bf16.msra.mxu0 %v1798
    %1866 = vmatprep.subr.bf16.mxu0 %v1795
    %1867 = vmatpush1.bf16.msra.mxu0 %v1794
    %1868 = vmatprep.subr.bf16.mxu0 %v1791
    %1869 = vmatpush1.bf16.msra.mxu0 %v1790
    %1870 = vmatprep.subr.bf16.mxu0 0
    %1871 = vmatpush2.bf16.msra.mxu0 0
    %1872 = vmatprep.subr.bf16.mxu0 0
    %1873 = vmatpush2.bf16.msra.mxu0 0
    %1874 = vmatprep.subr.bf16.mxu0 0
    %1875 = vmatpush2.bf16.msra.mxu0 0
    %1876 = vmatprep.subr.bf16.mxu0 0
    %1877 = vmatpush2.bf16.msra.mxu0 0
    %1878 = vmatprep.subr.bf16.mxu0 0
    %1879 = vmatpush2.bf16.msra.mxu0 0
    %1880 = vmatprep.subr.bf16.mxu0 0
    %1881 = vmatpush2.bf16.msra.mxu0 0
    %1882 = vmatprep.subr.bf16.mxu0 0
    %1883 = vmatpush2.bf16.msra.mxu0 0
    %1884 = vmatprep.subr.bf16.mxu0 0
    %1885 = vmatpush2.bf16.msra.mxu0 0
    %1886 = vmatprep.mubr.bf16.mxu0 0
    %1887 = vmatmul.mubr.bf16.gmra.mxu0 %v1661
    %v1888 = vpop.f32.mrf.mxu0
    %v1889 = vadd.f32 0.0, %v1888
    %v1890 = vpop.f32.mrf.mxu0
    %v1891 = vadd.f32 0.0, %v1890
    %v1892 = vpop.f32.mrf.mxu0
    %v1893 = vpop.f32.mrf.mxu0
    %1894 = vdwg.mxu0
    %1895 = vmatprep.subr.bf16.mxu0 %v1821
    %1896 = vmatpush1.bf16.msra.mxu0 %v1820
    %1897 = vmatprep.subr.bf16.mxu0 %v1817
    %1898 = vmatpush1.bf16.msra.mxu0 %v1816
    %1899 = vmatprep.subr.bf16.mxu0 %v1813
    %1900 = vmatpush1.bf16.msra.mxu0 %v1812
    %1901 = vmatprep.subr.bf16.mxu0 %v1809
    %1902 = vmatpush1.bf16.msra.mxu0 %v1808
    %1903 = vmatprep.subr.bf16.mxu0 %v1805
    %1904 = vmatpush1.bf16.msra.mxu0 %v1804
    %1905 = vmatprep.subr.bf16.mxu0 %v1801
    %1906 = vmatpush1.bf16.msra.mxu0 %v1800
    %1907 = vmatprep.subr.bf16.mxu0 %v1797
    %1908 = vmatpush1.bf16.msra.mxu0 %v1796
    %1909 = vmatprep.subr.bf16.mxu0 %v1793
    %1910 = vmatpush1.bf16.msra.mxu0 %v1792
    %1911 = vmatprep.subr.bf16.mxu0 0
    %1912 = vmatpush2.bf16.msra.mxu0 0
    %1913 = vmatprep.subr.bf16.mxu0 0
    %1914 = vmatpush2.bf16.msra.mxu0 0
    %1915 = vmatprep.subr.bf16.mxu0 0
    %1916 = vmatpush2.bf16.msra.mxu0 0
    %1917 = vmatprep.subr.bf16.mxu0 0
    %1918 = vmatpush2.bf16.msra.mxu0 0
    %1919 = vmatprep.subr.bf16.mxu0 0
    %1920 = vmatpush2.bf16.msra.mxu0 0
    %1921 = vmatprep.subr.bf16.mxu0 0
    %1922 = vmatpush2.bf16.msra.mxu0 0
    %1923 = vmatprep.subr.bf16.mxu0 0
    %1924 = vmatpush2.bf16.msra.mxu0 0
    %1925 = vmatprep.subr.bf16.mxu0 0
    %1926 = vmatpush2.bf16.msra.mxu0 0
    %1927 = vmatprep.mubr.bf16.mxu0 0
    %1928 = vmatmul.mubr.bf16.gmra.mxu0 %v1661
    %v1929 = vpop.f32.mrf.mxu0
    %v1930 = vadd.f32 0.0, %v1929
    %v1931 = vpop.f32.mrf.mxu0
    %v1932 = vadd.f32 0.0, %v1931
    %v1933 = vpop.f32.mrf.mxu0
    %v1934 = vpop.f32.mrf.mxu0
    %1935 = vdwg.mxu0
    %v1936 = vadd.f32 %v1657, %v1889
    %v1937 = vadd.f32 %v1658, %v1891
    %v1938 = vadd.f32 %v1659, %v1930
    %v1939 = vadd.f32 %v1660, %v1932
    %v1940 = vxor.u32 %v1936, 2147483648
    %v1941 = vmul.f32 %v1940, 1.442695
    %v1942 = vpow.pop %v1941
    %v1943 = vadd.f32 %v1942, 1.0
    %v1944 = vrcp.pop %v1943
    %v1945 = vmul.f32 1.0, %v1944
    %v1946 = vxor.u32 %v1937, 2147483648
    %v1947 = vmul.f32 %v1946, 1.442695
    %v1948 = vpow.pop %v1947
    %v1949 = vadd.f32 %v1948, 1.0
    %v1950 = vrcp.pop %v1949
    %v1951 = vmul.f32 1.0, %v1950
    %v1952 = vtanh.pop %v1938
    %v1953 = vxor.u32 %v1939, 2147483648
    %v1954 = vmul.f32 %v1953, 1.442695
    %v1955 = vpow.pop %v1954
    %v1956 = vadd.f32 %v1955, 1.0
    %v1957 = vrcp.pop %v1956
    %v1958 = vmul.f32 1.0, %v1957
    %v1959 = vmul.f32 %v1951, %v1649
    %v1960 = vmul.f32 %v1945, %v1952
    %v1961 = vadd.f32 %v1959, %v1960
    %v1962 = vtanh.pop %v1961
    %v1963 = vmul.f32 %v1958, %v1962
    %s1964 = scalar_lea.vmem [#allocation2], 40
    %1965 = vst [vmem:[%s1964] sm:$0xff] %v1963
    %s1966 = smul.u32 6, 4
    %s1967 = smul.addr %s1966, 8
    %s1968 = scalar_lea.vmem [#allocation3], %s1967
    %v1969 = vld [vmem:[%s1968] sm:$0xff]
    %v1970 = vld [vmem:[%s1968 + $0x8] sm:$0xff]
    %v1971 = vld [vmem:[%s1968 + $0x10] sm:$0xff]
    %v1972 = vld [vmem:[%s1968 + $0x18] sm:$0xff]
    %v1973 = vpack.c.bf16 %v1963, %v1963
    %v1974 = vld [vmem:[#allocation9] sm:$0xff]
    %v1975 = vld [vmem:[#allocation9 + $0x8] sm:$0xff]
    %v1976 = vld [vmem:[#allocation9 + $0x10] sm:$0xff]
    %v1977 = vld [vmem:[#allocation9 + $0x18] sm:$0xff]
    %v1978 = vld [vmem:[#allocation9 + $0x20] sm:$0xff]
    %v1979 = vld [vmem:[#allocation9 + $0x28] sm:$0xff]
    %v1980 = vld [vmem:[#allocation9 + $0x30] sm:$0xff]
    %v1981 = vld [vmem:[#allocation9 + $0x38] sm:$0xff]
    %v1982 = vld [vmem:[#allocation9 + $0x40] sm:$0xff]
    %v1983 = vld [vmem:[#allocation9 + $0x48] sm:$0xff]
    %v1984 = vld [vmem:[#allocation9 + $0x50] sm:$0xff]
    %v1985 = vld [vmem:[#allocation9 + $0x58] sm:$0xff]
    %v1986 = vld [vmem:[#allocation9 + $0x60] sm:$0xff]
    %v1987 = vld [vmem:[#allocation9 + $0x68] sm:$0xff]
    %v1988 = vld [vmem:[#allocation9 + $0x70] sm:$0xff]
    %v1989 = vld [vmem:[#allocation9 + $0x78] sm:$0xff]
    %v1990 = vld [vmem:[#allocation9 + $0x80] sm:$0xff]
    %v1991 = vld [vmem:[#allocation9 + $0x88] sm:$0xff]
    %v1992 = vld [vmem:[#allocation9 + $0x90] sm:$0xff]
    %v1993 = vld [vmem:[#allocation9 + $0x98] sm:$0xff]
    %v1994 = vld [vmem:[#allocation9 + $0xa0] sm:$0xff]
    %v1995 = vld [vmem:[#allocation9 + $0xa8] sm:$0xff]
    %v1996 = vld [vmem:[#allocation9 + $0xb0] sm:$0xff]
    %v1997 = vld [vmem:[#allocation9 + $0xb8] sm:$0xff]
    %v1998 = vld [vmem:[#allocation9 + $0xc0] sm:$0xff]
    %v1999 = vld [vmem:[#allocation9 + $0xc8] sm:$0xff]
    %v2000 = vld [vmem:[#allocation9 + $0xd0] sm:$0xff]
    %v2001 = vld [vmem:[#allocation9 + $0xd8] sm:$0xff]
    %v2002 = vld [vmem:[#allocation9 + $0xe0] sm:$0xff]
    %v2003 = vld [vmem:[#allocation9 + $0xe8] sm:$0xff]
    %v2004 = vld [vmem:[#allocation9 + $0xf0] sm:$0xff]
    %v2005 = vld [vmem:[#allocation9 + $0xf8] sm:$0xff]
    %v2038 = vunpack.c.l.b16 %v1974
    %v2039 = vunpack.c.h.b16 %v1974
    %v2040 = vunpack.c.l.b16 %v1975
    %v2041 = vunpack.c.h.b16 %v1975
    %v2042 = vunpack.c.l.b16 %v1976
    %v2043 = vunpack.c.h.b16 %v1976
    %v2044 = vunpack.c.l.b16 %v1977
    %v2045 = vunpack.c.h.b16 %v1977
    %v2046 = vunpack.c.l.b16 %v1978
    %v2047 = vunpack.c.h.b16 %v1978
    %v2048 = vunpack.c.l.b16 %v1979
    %v2049 = vunpack.c.h.b16 %v1979
    %v2050 = vunpack.c.l.b16 %v1980
    %v2051 = vunpack.c.h.b16 %v1980
    %v2052 = vunpack.c.l.b16 %v1981
    %v2053 = vunpack.c.h.b16 %v1981
    %v2054 = vunpack.c.l.b16 %v1982
    %v2055 = vunpack.c.h.b16 %v1982
    %v2056 = vunpack.c.l.b16 %v1983
    %v2057 = vunpack.c.h.b16 %v1983
    %v2058 = vunpack.c.l.b16 %v1984
    %v2059 = vunpack.c.h.b16 %v1984
    %v2060 = vunpack.c.l.b16 %v1985
    %v2061 = vunpack.c.h.b16 %v1985
    %v2062 = vunpack.c.l.b16 %v1986
    %v2063 = vunpack.c.h.b16 %v1986
    %v2064 = vunpack.c.l.b16 %v1987
    %v2065 = vunpack.c.h.b16 %v1987
    %v2066 = vunpack.c.l.b16 %v1988
    %v2067 = vunpack.c.h.b16 %v1988
    %v2068 = vunpack.c.l.b16 %v1989
    %v2069 = vunpack.c.h.b16 %v1989
    %v2070 = vunpack.c.l.b16 %v1990
    %v2071 = vunpack.c.h.b16 %v1990
    %v2072 = vunpack.c.l.b16 %v1991
    %v2073 = vunpack.c.h.b16 %v1991
    %v2074 = vunpack.c.l.b16 %v1992
    %v2075 = vunpack.c.h.b16 %v1992
    %v2076 = vunpack.c.l.b16 %v1993
    %v2077 = vunpack.c.h.b16 %v1993
    %v2078 = vunpack.c.l.b16 %v1994
    %v2079 = vunpack.c.h.b16 %v1994
    %v2080 = vunpack.c.l.b16 %v1995
    %v2081 = vunpack.c.h.b16 %v1995
    %v2082 = vunpack.c.l.b16 %v1996
    %v2083 = vunpack.c.h.b16 %v1996
    %v2084 = vunpack.c.l.b16 %v1997
    %v2085 = vunpack.c.h.b16 %v1997
    %v2086 = vunpack.c.l.b16 %v1998
    %v2087 = vunpack.c.h.b16 %v1998
    %v2088 = vunpack.c.l.b16 %v1999
    %v2089 = vunpack.c.h.b16 %v1999
    %v2090 = vunpack.c.l.b16 %v2000
    %v2091 = vunpack.c.h.b16 %v2000
    %v2092 = vunpack.c.l.b16 %v2001
    %v2093 = vunpack.c.h.b16 %v2001
    %v2094 = vunpack.c.l.b16 %v2002
    %v2095 = vunpack.c.h.b16 %v2002
    %v2096 = vunpack.c.l.b16 %v2003
    %v2097 = vunpack.c.h.b16 %v2003
    %v2098 = vunpack.c.l.b16 %v2004
    %v2099 = vunpack.c.h.b16 %v2004
    %v2100 = vunpack.c.l.b16 %v2005
    %v2101 = vunpack.c.h.b16 %v2005
    %v2102 = vpack.c.b16 %v2042, %v2038
    %v2103 = vpack.c.b16 %v2043, %v2039
    %v2104 = vpack.c.b16 %v2044, %v2040
    %v2105 = vpack.c.b16 %v2045, %v2041
    %v2106 = vpack.c.b16 %v2050, %v2046
    %v2107 = vpack.c.b16 %v2051, %v2047
    %v2108 = vpack.c.b16 %v2052, %v2048
    %v2109 = vpack.c.b16 %v2053, %v2049
    %v2110 = vpack.c.b16 %v2058, %v2054
    %v2111 = vpack.c.b16 %v2059, %v2055
    %v2112 = vpack.c.b16 %v2060, %v2056
    %v2113 = vpack.c.b16 %v2061, %v2057
    %v2114 = vpack.c.b16 %v2066, %v2062
    %v2115 = vpack.c.b16 %v2067, %v2063
    %v2116 = vpack.c.b16 %v2068, %v2064
    %v2117 = vpack.c.b16 %v2069, %v2065
    %v2118 = vpack.c.b16 %v2074, %v2070
    %v2119 = vpack.c.b16 %v2075, %v2071
    %v2120 = vpack.c.b16 %v2076, %v2072
    %v2121 = vpack.c.b16 %v2077, %v2073
    %v2122 = vpack.c.b16 %v2082, %v2078
    %v2123 = vpack.c.b16 %v2083, %v2079
    %v2124 = vpack.c.b16 %v2084, %v2080
    %v2125 = vpack.c.b16 %v2085, %v2081
    %v2126 = vpack.c.b16 %v2090, %v2086
    %v2127 = vpack.c.b16 %v2091, %v2087
    %v2128 = vpack.c.b16 %v2092, %v2088
    %v2129 = vpack.c.b16 %v2093, %v2089
    %v2130 = vpack.c.b16 %v2098, %v2094
    %v2131 = vpack.c.b16 %v2099, %v2095
    %v2132 = vpack.c.b16 %v2100, %v2096
    %v2133 = vpack.c.b16 %v2101, %v2097
    %2166 = vmatprep.subr.bf16.mxu0 %v2131
    %2167 = vmatpush1.bf16.msra.mxu0 %v2130
    %2168 = vmatprep.subr.bf16.mxu0 %v2127
    %2169 = vmatpush1.bf16.msra.mxu0 %v2126
    %2170 = vmatprep.subr.bf16.mxu0 %v2123
    %2171 = vmatpush1.bf16.msra.mxu0 %v2122
    %2172 = vmatprep.subr.bf16.mxu0 %v2119
    %2173 = vmatpush1.bf16.msra.mxu0 %v2118
    %2174 = vmatprep.subr.bf16.mxu0 %v2115
    %2175 = vmatpush1.bf16.msra.mxu0 %v2114
    %2176 = vmatprep.subr.bf16.mxu0 %v2111
    %2177 = vmatpush1.bf16.msra.mxu0 %v2110
    %2178 = vmatprep.subr.bf16.mxu0 %v2107
    %2179 = vmatpush1.bf16.msra.mxu0 %v2106
    %2180 = vmatprep.subr.bf16.mxu0 %v2103
    %2181 = vmatpush1.bf16.msra.mxu0 %v2102
    %2182 = vmatprep.subr.bf16.mxu0 0
    %2183 = vmatpush2.bf16.msra.mxu0 0
    %2184 = vmatprep.subr.bf16.mxu0 0
    %2185 = vmatpush2.bf16.msra.mxu0 0
    %2186 = vmatprep.subr.bf16.mxu0 0
    %2187 = vmatpush2.bf16.msra.mxu0 0
    %2188 = vmatprep.subr.bf16.mxu0 0
    %2189 = vmatpush2.bf16.msra.mxu0 0
    %2190 = vmatprep.subr.bf16.mxu0 0
    %2191 = vmatpush2.bf16.msra.mxu0 0
    %2192 = vmatprep.subr.bf16.mxu0 0
    %2193 = vmatpush2.bf16.msra.mxu0 0
    %2194 = vmatprep.subr.bf16.mxu0 0
    %2195 = vmatpush2.bf16.msra.mxu0 0
    %2196 = vmatprep.subr.bf16.mxu0 0
    %2197 = vmatpush2.bf16.msra.mxu0 0
    %2198 = vmatprep.mubr.bf16.mxu0 0
    %2199 = vmatmul.mubr.bf16.gmra.mxu0 %v1973
    %v2200 = vpop.f32.mrf.mxu0
    %v2201 = vadd.f32 0.0, %v2200
    %v2202 = vpop.f32.mrf.mxu0
    %v2203 = vadd.f32 0.0, %v2202
    %v2204 = vpop.f32.mrf.mxu0
    %v2205 = vpop.f32.mrf.mxu0
    %2206 = vdwg.mxu0
    %2207 = vmatprep.subr.bf16.mxu0 %v2133
    %2208 = vmatpush1.bf16.msra.mxu0 %v2132
    %2209 = vmatprep.subr.bf16.mxu0 %v2129
    %2210 = vmatpush1.bf16.msra.mxu0 %v2128
    %2211 = vmatprep.subr.bf16.mxu0 %v2125
    %2212 = vmatpush1.bf16.msra.mxu0 %v2124
    %2213 = vmatprep.subr.bf16.mxu0 %v2121
    %2214 = vmatpush1.bf16.msra.mxu0 %v2120
    %2215 = vmatprep.subr.bf16.mxu0 %v2117
    %2216 = vmatpush1.bf16.msra.mxu0 %v2116
    %2217 = vmatprep.subr.bf16.mxu0 %v2113
    %2218 = vmatpush1.bf16.msra.mxu0 %v2112
    %2219 = vmatprep.subr.bf16.mxu0 %v2109
    %2220 = vmatpush1.bf16.msra.mxu0 %v2108
    %2221 = vmatprep.subr.bf16.mxu0 %v2105
    %2222 = vmatpush1.bf16.msra.mxu0 %v2104
    %2223 = vmatprep.subr.bf16.mxu0 0
    %2224 = vmatpush2.bf16.msra.mxu0 0
    %2225 = vmatprep.subr.bf16.mxu0 0
    %2226 = vmatpush2.bf16.msra.mxu0 0
    %2227 = vmatprep.subr.bf16.mxu0 0
    %2228 = vmatpush2.bf16.msra.mxu0 0
    %2229 = vmatprep.subr.bf16.mxu0 0
    %2230 = vmatpush2.bf16.msra.mxu0 0
    %2231 = vmatprep.subr.bf16.mxu0 0
    %2232 = vmatpush2.bf16.msra.mxu0 0
    %2233 = vmatprep.subr.bf16.mxu0 0
    %2234 = vmatpush2.bf16.msra.mxu0 0
    %2235 = vmatprep.subr.bf16.mxu0 0
    %2236 = vmatpush2.bf16.msra.mxu0 0
    %2237 = vmatprep.subr.bf16.mxu0 0
    %2238 = vmatpush2.bf16.msra.mxu0 0
    %2239 = vmatprep.mubr.bf16.mxu0 0
    %2240 = vmatmul.mubr.bf16.gmra.mxu0 %v1973
    %v2241 = vpop.f32.mrf.mxu0
    %v2242 = vadd.f32 0.0, %v2241
    %v2243 = vpop.f32.mrf.mxu0
    %v2244 = vadd.f32 0.0, %v2243
    %v2245 = vpop.f32.mrf.mxu0
    %v2246 = vpop.f32.mrf.mxu0
    %2247 = vdwg.mxu0
    %v2248 = vadd.f32 %v1969, %v2201
    %v2249 = vadd.f32 %v1970, %v2203
    %v2250 = vadd.f32 %v1971, %v2242
    %v2251 = vadd.f32 %v1972, %v2244
    %v2252 = vxor.u32 %v2248, 2147483648
    %v2253 = vmul.f32 %v2252, 1.442695
    %v2254 = vpow.pop %v2253
    %v2255 = vadd.f32 %v2254, 1.0
    %v2256 = vrcp.pop %v2255
    %v2257 = vmul.f32 1.0, %v2256
    %v2258 = vxor.u32 %v2249, 2147483648
    %v2259 = vmul.f32 %v2258, 1.442695
    %v2260 = vpow.pop %v2259
    %v2261 = vadd.f32 %v2260, 1.0
    %v2262 = vrcp.pop %v2261
    %v2263 = vmul.f32 1.0, %v2262
    %v2264 = vtanh.pop %v2250
    %v2265 = vxor.u32 %v2251, 2147483648
    %v2266 = vmul.f32 %v2265, 1.442695
    %v2267 = vpow.pop %v2266
    %v2268 = vadd.f32 %v2267, 1.0
    %v2269 = vrcp.pop %v2268
    %v2270 = vmul.f32 1.0, %v2269
    %v2271 = vmul.f32 %v2263, %v1961
    %v2272 = vmul.f32 %v2257, %v2264
    %v2273 = vadd.f32 %v2271, %v2272
    %v2274 = vtanh.pop %v2273
    %v2275 = vmul.f32 %v2270, %v2274
    %s2276 = scalar_lea.vmem [#allocation2], 48
    %2277 = vst [vmem:[%s2276] sm:$0xff] %v2275
    %s2278 = smul.u32 7, 4
    %s2279 = smul.addr %s2278, 8
    %s2280 = scalar_lea.vmem [#allocation3], %s2279
    %v2281 = vld [vmem:[%s2280] sm:$0xff]
    %v2282 = vld [vmem:[%s2280 + $0x8] sm:$0xff]
    %v2283 = vld [vmem:[%s2280 + $0x10] sm:$0xff]
    %v2284 = vld [vmem:[%s2280 + $0x18] sm:$0xff]
    %v2285 = vpack.c.bf16 %v2275, %v2275
    %v2286 = vld [vmem:[#allocation9] sm:$0xff]
    %v2287 = vld [vmem:[#allocation9 + $0x8] sm:$0xff]
    %v2288 = vld [vmem:[#allocation9 + $0x10] sm:$0xff]
    %v2289 = vld [vmem:[#allocation9 + $0x18] sm:$0xff]
    %v2290 = vld [vmem:[#allocation9 + $0x20] sm:$0xff]
    %v2291 = vld [vmem:[#allocation9 + $0x28] sm:$0xff]
    %v2292 = vld [vmem:[#allocation9 + $0x30] sm:$0xff]
    %v2293 = vld [vmem:[#allocation9 + $0x38] sm:$0xff]
    %v2294 = vld [vmem:[#allocation9 + $0x40] sm:$0xff]
    %v2295 = vld [vmem:[#allocation9 + $0x48] sm:$0xff]
    %v2296 = vld [vmem:[#allocation9 + $0x50] sm:$0xff]
    %v2297 = vld [vmem:[#allocation9 + $0x58] sm:$0xff]
    %v2298 = vld [vmem:[#allocation9 + $0x60] sm:$0xff]
    %v2299 = vld [vmem:[#allocation9 + $0x68] sm:$0xff]
    %v2300 = vld [vmem:[#allocation9 + $0x70] sm:$0xff]
    %v2301 = vld [vmem:[#allocation9 + $0x78] sm:$0xff]
    %v2302 = vld [vmem:[#allocation9 + $0x80] sm:$0xff]
    %v2303 = vld [vmem:[#allocation9 + $0x88] sm:$0xff]
    %v2304 = vld [vmem:[#allocation9 + $0x90] sm:$0xff]
    %v2305 = vld [vmem:[#allocation9 + $0x98] sm:$0xff]
    %v2306 = vld [vmem:[#allocation9 + $0xa0] sm:$0xff]
    %v2307 = vld [vmem:[#allocation9 + $0xa8] sm:$0xff]
    %v2308 = vld [vmem:[#allocation9 + $0xb0] sm:$0xff]
    %v2309 = vld [vmem:[#allocation9 + $0xb8] sm:$0xff]
    %v2310 = vld [vmem:[#allocation9 + $0xc0] sm:$0xff]
    %v2311 = vld [vmem:[#allocation9 + $0xc8] sm:$0xff]
    %v2312 = vld [vmem:[#allocation9 + $0xd0] sm:$0xff]
    %v2313 = vld [vmem:[#allocation9 + $0xd8] sm:$0xff]
    %v2314 = vld [vmem:[#allocation9 + $0xe0] sm:$0xff]
    %v2315 = vld [vmem:[#allocation9 + $0xe8] sm:$0xff]
    %v2316 = vld [vmem:[#allocation9 + $0xf0] sm:$0xff]
    %v2317 = vld [vmem:[#allocation9 + $0xf8] sm:$0xff]
    %v2350 = vunpack.c.l.b16 %v2286
    %v2351 = vunpack.c.h.b16 %v2286
    %v2352 = vunpack.c.l.b16 %v2287
    %v2353 = vunpack.c.h.b16 %v2287
    %v2354 = vunpack.c.l.b16 %v2288
    %v2355 = vunpack.c.h.b16 %v2288
    %v2356 = vunpack.c.l.b16 %v2289
    %v2357 = vunpack.c.h.b16 %v2289
    %v2358 = vunpack.c.l.b16 %v2290
    %v2359 = vunpack.c.h.b16 %v2290
    %v2360 = vunpack.c.l.b16 %v2291
    %v2361 = vunpack.c.h.b16 %v2291
    %v2362 = vunpack.c.l.b16 %v2292
    %v2363 = vunpack.c.h.b16 %v2292
    %v2364 = vunpack.c.l.b16 %v2293
    %v2365 = vunpack.c.h.b16 %v2293
    %v2366 = vunpack.c.l.b16 %v2294
    %v2367 = vunpack.c.h.b16 %v2294
    %v2368 = vunpack.c.l.b16 %v2295
    %v2369 = vunpack.c.h.b16 %v2295
    %v2370 = vunpack.c.l.b16 %v2296
    %v2371 = vunpack.c.h.b16 %v2296
    %v2372 = vunpack.c.l.b16 %v2297
    %v2373 = vunpack.c.h.b16 %v2297
    %v2374 = vunpack.c.l.b16 %v2298
    %v2375 = vunpack.c.h.b16 %v2298
    %v2376 = vunpack.c.l.b16 %v2299
    %v2377 = vunpack.c.h.b16 %v2299
    %v2378 = vunpack.c.l.b16 %v2300
    %v2379 = vunpack.c.h.b16 %v2300
    %v2380 = vunpack.c.l.b16 %v2301
    %v2381 = vunpack.c.h.b16 %v2301
    %v2382 = vunpack.c.l.b16 %v2302
    %v2383 = vunpack.c.h.b16 %v2302
    %v2384 = vunpack.c.l.b16 %v2303
    %v2385 = vunpack.c.h.b16 %v2303
    %v2386 = vunpack.c.l.b16 %v2304
    %v2387 = vunpack.c.h.b16 %v2304
    %v2388 = vunpack.c.l.b16 %v2305
    %v2389 = vunpack.c.h.b16 %v2305
    %v2390 = vunpack.c.l.b16 %v2306
    %v2391 = vunpack.c.h.b16 %v2306
    %v2392 = vunpack.c.l.b16 %v2307
    %v2393 = vunpack.c.h.b16 %v2307
    %v2394 = vunpack.c.l.b16 %v2308
    %v2395 = vunpack.c.h.b16 %v2308
    %v2396 = vunpack.c.l.b16 %v2309
    %v2397 = vunpack.c.h.b16 %v2309
    %v2398 = vunpack.c.l.b16 %v2310
    %v2399 = vunpack.c.h.b16 %v2310
    %v2400 = vunpack.c.l.b16 %v2311
    %v2401 = vunpack.c.h.b16 %v2311
    %v2402 = vunpack.c.l.b16 %v2312
    %v2403 = vunpack.c.h.b16 %v2312
    %v2404 = vunpack.c.l.b16 %v2313
    %v2405 = vunpack.c.h.b16 %v2313
    %v2406 = vunpack.c.l.b16 %v2314
    %v2407 = vunpack.c.h.b16 %v2314
    %v2408 = vunpack.c.l.b16 %v2315
    %v2409 = vunpack.c.h.b16 %v2315
    %v2410 = vunpack.c.l.b16 %v2316
    %v2411 = vunpack.c.h.b16 %v2316
    %v2412 = vunpack.c.l.b16 %v2317
    %v2413 = vunpack.c.h.b16 %v2317
    %v2414 = vpack.c.b16 %v2354, %v2350
    %v2415 = vpack.c.b16 %v2355, %v2351
    %v2416 = vpack.c.b16 %v2356, %v2352
    %v2417 = vpack.c.b16 %v2357, %v2353
    %v2418 = vpack.c.b16 %v2362, %v2358
    %v2419 = vpack.c.b16 %v2363, %v2359
    %v2420 = vpack.c.b16 %v2364, %v2360
    %v2421 = vpack.c.b16 %v2365, %v2361
    %v2422 = vpack.c.b16 %v2370, %v2366
    %v2423 = vpack.c.b16 %v2371, %v2367
    %v2424 = vpack.c.b16 %v2372, %v2368
    %v2425 = vpack.c.b16 %v2373, %v2369
    %v2426 = vpack.c.b16 %v2378, %v2374
    %v2427 = vpack.c.b16 %v2379, %v2375
    %v2428 = vpack.c.b16 %v2380, %v2376
    %v2429 = vpack.c.b16 %v2381, %v2377
    %v2430 = vpack.c.b16 %v2386, %v2382
    %v2431 = vpack.c.b16 %v2387, %v2383
    %v2432 = vpack.c.b16 %v2388, %v2384
    %v2433 = vpack.c.b16 %v2389, %v2385
    %v2434 = vpack.c.b16 %v2394, %v2390
    %v2435 = vpack.c.b16 %v2395, %v2391
    %v2436 = vpack.c.b16 %v2396, %v2392
    %v2437 = vpack.c.b16 %v2397, %v2393
    %v2438 = vpack.c.b16 %v2402, %v2398
    %v2439 = vpack.c.b16 %v2403, %v2399
    %v2440 = vpack.c.b16 %v2404, %v2400
    %v2441 = vpack.c.b16 %v2405, %v2401
    %v2442 = vpack.c.b16 %v2410, %v2406
    %v2443 = vpack.c.b16 %v2411, %v2407
    %v2444 = vpack.c.b16 %v2412, %v2408
    %v2445 = vpack.c.b16 %v2413, %v2409
    %2478 = vmatprep.subr.bf16.mxu0 %v2443
    %2479 = vmatpush1.bf16.msra.mxu0 %v2442
    %2480 = vmatprep.subr.bf16.mxu0 %v2439
    %2481 = vmatpush1.bf16.msra.mxu0 %v2438
    %2482 = vmatprep.subr.bf16.mxu0 %v2435
    %2483 = vmatpush1.bf16.msra.mxu0 %v2434
    %2484 = vmatprep.subr.bf16.mxu0 %v2431
    %2485 = vmatpush1.bf16.msra.mxu0 %v2430
    %2486 = vmatprep.subr.bf16.mxu0 %v2427
    %2487 = vmatpush1.bf16.msra.mxu0 %v2426
    %2488 = vmatprep.subr.bf16.mxu0 %v2423
    %2489 = vmatpush1.bf16.msra.mxu0 %v2422
    %2490 = vmatprep.subr.bf16.mxu0 %v2419
    %2491 = vmatpush1.bf16.msra.mxu0 %v2418
    %2492 = vmatprep.subr.bf16.mxu0 %v2415
    %2493 = vmatpush1.bf16.msra.mxu0 %v2414
    %2494 = vmatprep.subr.bf16.mxu0 0
    %2495 = vmatpush2.bf16.msra.mxu0 0
    %2496 = vmatprep.subr.bf16.mxu0 0
    %2497 = vmatpush2.bf16.msra.mxu0 0
    %2498 = vmatprep.subr.bf16.mxu0 0
    %2499 = vmatpush2.bf16.msra.mxu0 0
    %2500 = vmatprep.subr.bf16.mxu0 0
    %2501 = vmatpush2.bf16.msra.mxu0 0
    %2502 = vmatprep.subr.bf16.mxu0 0
    %2503 = vmatpush2.bf16.msra.mxu0 0
    %2504 = vmatprep.subr.bf16.mxu0 0
    %2505 = vmatpush2.bf16.msra.mxu0 0
    %2506 = vmatprep.subr.bf16.mxu0 0
    %2507 = vmatpush2.bf16.msra.mxu0 0
    %2508 = vmatprep.subr.bf16.mxu0 0
    %2509 = vmatpush2.bf16.msra.mxu0 0
    %2510 = vmatprep.mubr.bf16.mxu0 0
    %2511 = vmatmul.mubr.bf16.gmra.mxu0 %v2285
    %v2512 = vpop.f32.mrf.mxu0
    %v2513 = vadd.f32 0.0, %v2512
    %v2514 = vpop.f32.mrf.mxu0
    %v2515 = vadd.f32 0.0, %v2514
    %v2516 = vpop.f32.mrf.mxu0
    %v2517 = vpop.f32.mrf.mxu0
    %2518 = vdwg.mxu0
    %2519 = vmatprep.subr.bf16.mxu0 %v2445
    %2520 = vmatpush1.bf16.msra.mxu0 %v2444
    %2521 = vmatprep.subr.bf16.mxu0 %v2441
    %2522 = vmatpush1.bf16.msra.mxu0 %v2440
    %2523 = vmatprep.subr.bf16.mxu0 %v2437
    %2524 = vmatpush1.bf16.msra.mxu0 %v2436
    %2525 = vmatprep.subr.bf16.mxu0 %v2433
    %2526 = vmatpush1.bf16.msra.mxu0 %v2432
    %2527 = vmatprep.subr.bf16.mxu0 %v2429
    %2528 = vmatpush1.bf16.msra.mxu0 %v2428
    %2529 = vmatprep.subr.bf16.mxu0 %v2425
    %2530 = vmatpush1.bf16.msra.mxu0 %v2424
    %2531 = vmatprep.subr.bf16.mxu0 %v2421
    %2532 = vmatpush1.bf16.msra.mxu0 %v2420
    %2533 = vmatprep.subr.bf16.mxu0 %v2417
    %2534 = vmatpush1.bf16.msra.mxu0 %v2416
    %2535 = vmatprep.subr.bf16.mxu0 0
    %2536 = vmatpush2.bf16.msra.mxu0 0
    %2537 = vmatprep.subr.bf16.mxu0 0
    %2538 = vmatpush2.bf16.msra.mxu0 0
    %2539 = vmatprep.subr.bf16.mxu0 0
    %2540 = vmatpush2.bf16.msra.mxu0 0
    %2541 = vmatprep.subr.bf16.mxu0 0
    %2542 = vmatpush2.bf16.msra.mxu0 0
    %2543 = vmatprep.subr.bf16.mxu0 0
    %2544 = vmatpush2.bf16.msra.mxu0 0
    %2545 = vmatprep.subr.bf16.mxu0 0
    %2546 = vmatpush2.bf16.msra.mxu0 0
    %2547 = vmatprep.subr.bf16.mxu0 0
    %2548 = vmatpush2.bf16.msra.mxu0 0
    %2549 = vmatprep.subr.bf16.mxu0 0
    %2550 = vmatpush2.bf16.msra.mxu0 0
    %2551 = vmatprep.mubr.bf16.mxu0 0
    %2552 = vmatmul.mubr.bf16.gmra.mxu0 %v2285
    %v2553 = vpop.f32.mrf.mxu0
    %v2554 = vadd.f32 0.0, %v2553
    %v2555 = vpop.f32.mrf.mxu0
    %v2556 = vadd.f32 0.0, %v2555
    %v2557 = vpop.f32.mrf.mxu0
    %v2558 = vpop.f32.mrf.mxu0
    %2559 = vdwg.mxu0
    %v2560 = vadd.f32 %v2281, %v2513
    %v2561 = vadd.f32 %v2282, %v2515
    %v2562 = vadd.f32 %v2283, %v2554
    %v2563 = vadd.f32 %v2284, %v2556
    %v2564 = vxor.u32 %v2560, 2147483648
    %v2565 = vmul.f32 %v2564, 1.442695
    %v2566 = vpow.pop %v2565
    %v2567 = vadd.f32 %v2566, 1.0
    %v2568 = vrcp.pop %v2567
    %v2569 = vmul.f32 1.0, %v2568
    %v2570 = vxor.u32 %v2561, 2147483648
    %v2571 = vmul.f32 %v2570, 1.442695
    %v2572 = vpow.pop %v2571
    %v2573 = vadd.f32 %v2572, 1.0
    %v2574 = vrcp.pop %v2573
    %v2575 = vmul.f32 1.0, %v2574
    %v2576 = vtanh.pop %v2562
    %v2577 = vxor.u32 %v2563, 2147483648
    %v2578 = vmul.f32 %v2577, 1.442695
    %v2579 = vpow.pop %v2578
    %v2580 = vadd.f32 %v2579, 1.0
    %v2581 = vrcp.pop %v2580
    %v2582 = vmul.f32 1.0, %v2581
    %v2583 = vmul.f32 %v2575, %v2273
    %v2584 = vmul.f32 %v2569, %v2576
    %v2585 = vadd.f32 %v2583, %v2584
    %v2586 = vtanh.pop %v2585
    %v2587 = vmul.f32 %v2582, %v2586
    %s2588 = scalar_lea.vmem [#allocation2], 56
    %2589 = vst [vmem:[%s2588] sm:$0xff] %v2587
    %v2590 = vld [vmem:[#allocation2] sm:$0xff]
    %v2591 = vld [vmem:[#allocation2 + $0x8] sm:$0xff]
    %v2592 = vld [vmem:[#allocation2 + $0x10] sm:$0xff]
    %v2593 = vld [vmem:[#allocation2 + $0x18] sm:$0xff]
    %v2594 = vld [vmem:[#allocation2 + $0x20] sm:$0xff]
    %v2595 = vld [vmem:[#allocation2 + $0x28] sm:$0xff]
    %v2596 = vld [vmem:[#allocation2 + $0x30] sm:$0xff]
    %v2597 = vld [vmem:[#allocation2 + $0x38] sm:$0xff]
    %v2598 = vpack.c.bf16 %v2591, %v2590
    %v2599 = vpack.c.bf16 %v2593, %v2592
    %v2600 = vpack.c.bf16 %v2595, %v2594
    %v2601 = vpack.c.bf16 %v2597, %v2596
    %v2602 = vld [vmem:[#allocation11] sm:$0xf]
    %v2603 = vld [vmem:[#allocation11 + $0x4] sm:$0xf]
    %v2604 = vld [vmem:[#allocation11 + $0x8] sm:$0xf]
    %v2605 = vld [vmem:[#allocation11 + $0xc] sm:$0xf]
    %v2606 = vld [vmem:[#allocation11 + $0x10] sm:$0xf]
    %v2607 = vld [vmem:[#allocation11 + $0x14] sm:$0xf]
    %v2608 = vld [vmem:[#allocation11 + $0x18] sm:$0xf]
    %v2609 = vld [vmem:[#allocation11 + $0x1c] sm:$0xf]
    %v2610 = vld [vmem:[#allocation11 + $0x20] sm:$0xf]
    %v2611 = vld [vmem:[#allocation11 + $0x24] sm:$0xf]
    %v2612 = vld [vmem:[#allocation11 + $0x28] sm:$0xf]
    %v2613 = vld [vmem:[#allocation11 + $0x2c] sm:$0xf]
    %v2614 = vld [vmem:[#allocation11 + $0x30] sm:$0xf]
    %v2615 = vld [vmem:[#allocation11 + $0x34] sm:$0xf]
    %v2616 = vld [vmem:[#allocation11 + $0x38] sm:$0xf]
    %v2617 = vld [vmem:[#allocation11 + $0x3c] sm:$0xf]
    %v2618 = vld [vmem:[%s5] sm:$0x1]
    %v2620 = vlaneseq
    %v2621 = vshrl.u32 %v2620, 7
    %v2622 = vsub.s32 0, %v2621
    %v2623 = vrot.slane %v2618, %v2622
    %v2641 = vunpack.c.l.b16 %v2602
    %v2642 = vunpack.c.l.b16 %v2603
    %v2643 = vunpack.c.l.b16 %v2604
    %v2644 = vunpack.c.l.b16 %v2605
    %v2645 = vunpack.c.l.b16 %v2606
    %v2646 = vunpack.c.l.b16 %v2607
    %v2647 = vunpack.c.l.b16 %v2608
    %v2648 = vunpack.c.l.b16 %v2609
    %v2649 = vunpack.c.l.b16 %v2610
    %v2650 = vunpack.c.l.b16 %v2611
    %v2651 = vunpack.c.l.b16 %v2612
    %v2652 = vunpack.c.l.b16 %v2613
    %v2653 = vunpack.c.l.b16 %v2614
    %v2654 = vunpack.c.l.b16 %v2615
    %v2655 = vunpack.c.l.b16 %v2616
    %v2656 = vunpack.c.l.b16 %v2617
    %v2657 = vpack.c.b16 %v2642, %v2641
    %v2658 = vpack.c.b16 %v2644, %v2643
    %v2659 = vpack.c.b16 %v2646, %v2645
    %v2660 = vpack.c.b16 %v2648, %v2647
    %v2661 = vpack.c.b16 %v2650, %v2649
    %v2662 = vpack.c.b16 %v2652, %v2651
    %v2663 = vpack.c.b16 %v2654, %v2653
    %v2664 = vpack.c.b16 %v2656, %v2655
    %2673 = vmatprep.subr.bf16.mxu0 0
    %2674 = vmatpush1.bf16.msra.mxu0 %v2664
    %2675 = vmatprep.subr.bf16.mxu0 0
    %2676 = vmatpush1.bf16.msra.mxu0 %v2663
    %2677 = vmatprep.subr.bf16.mxu0 0
    %2678 = vmatpush1.bf16.msra.mxu0 %v2662
    %2679 = vmatprep.subr.bf16.mxu0 0
    %2680 = vmatpush1.bf16.msra.mxu0 %v2661
    %2681 = vmatprep.subr.bf16.mxu0 0
    %2682 = vmatpush1.bf16.msra.mxu0 %v2660
    %2683 = vmatprep.subr.bf16.mxu0 0
    %2684 = vmatpush1.bf16.msra.mxu0 %v2659
    %2685 = vmatprep.subr.bf16.mxu0 0
    %2686 = vmatpush1.bf16.msra.mxu0 %v2658
    %2687 = vmatprep.subr.bf16.mxu0 0
    %2688 = vmatpush1.bf16.msra.mxu0 %v2657
    %2689 = vmatprep.subr.bf16.mxu0 0
    %2690 = vmatpush2.bf16.msra.mxu0 0
    %2691 = vmatprep.subr.bf16.mxu0 0
    %2692 = vmatpush2.bf16.msra.mxu0 0
    %2693 = vmatprep.subr.bf16.mxu0 0
    %2694 = vmatpush2.bf16.msra.mxu0 0
    %2695 = vmatprep.subr.bf16.mxu0 0
    %2696 = vmatpush2.bf16.msra.mxu0 0
    %2697 = vmatprep.subr.bf16.mxu0 0
    %2698 = vmatpush2.bf16.msra.mxu0 0
    %2699 = vmatprep.subr.bf16.mxu0 0
    %2700 = vmatpush2.bf16.msra.mxu0 0
    %2701 = vmatprep.subr.bf16.mxu0 0
    %2702 = vmatpush2.bf16.msra.mxu0 0
    %2703 = vmatprep.subr.bf16.mxu0 0
    %2704 = vmatpush2.bf16.msra.mxu0 0
    %2705 = vmatprep.mubr.bf16.mxu0 0
    %2706 = vmatmul.mubr.bf16.gmra.mxu0 %v2598
    %v2707 = vpop.f32.mrf.mxu0
    %v2708 = vadd.f32 %v2623, %v2707
    %v2709 = vpop.f32.mrf.mxu0
    %v2710 = vpop.f32.mrf.mxu0
    %v2711 = vadd.f32 %v2623, %v2710
    %v2712 = vpop.f32.mrf.mxu0
    %2713 = vmatprep.mubr.bf16.mxu0 0
    %2714 = vmatmul.mubr.bf16.gmra.mxu0 %v2599
    %v2715 = vpop.f32.mrf.mxu0
    %v2716 = vadd.f32 %v2623, %v2715
    %v2717 = vpop.f32.mrf.mxu0
    %v2718 = vpop.f32.mrf.mxu0
    %v2719 = vadd.f32 %v2623, %v2718
    %v2720 = vpop.f32.mrf.mxu0
    %2721 = vmatprep.mubr.bf16.mxu0 0
    %2722 = vmatmul.mubr.bf16.gmra.mxu0 %v2600
    %v2723 = vpop.f32.mrf.mxu0
    %v2724 = vadd.f32 %v2623, %v2723
    %v2725 = vpop.f32.mrf.mxu0
    %v2726 = vpop.f32.mrf.mxu0
    %v2727 = vadd.f32 %v2623, %v2726
    %v2728 = vpop.f32.mrf.mxu0
    %2729 = vmatprep.mubr.bf16.mxu0 0
    %2730 = vmatmul.mubr.bf16.gmra.mxu0 %v2601
    %v2731 = vpop.f32.mrf.mxu0
    %v2732 = vadd.f32 %v2623, %v2731
    %v2733 = vpop.f32.mrf.mxu0
    %v2734 = vpop.f32.mrf.mxu0
    %v2735 = vadd.f32 %v2623, %v2734
    %v2736 = vpop.f32.mrf.mxu0
    %2737 = vdwg.mxu0
    %2738 = vst [vmem:[#allocation12] sm:$0xff] %v2708
    %2739 = vst [vmem:[#allocation12 + $0x8] sm:$0xff] %v2711
    %2740 = vst [vmem:[#allocation12 + $0x10] sm:$0xff] %v2716
    %2741 = vst [vmem:[#allocation12 + $0x18] sm:$0xff] %v2719
    %2742 = vst [vmem:[#allocation12 + $0x20] sm:$0xff] %v2724
    %2743 = vst [vmem:[#allocation12 + $0x28] sm:$0xff] %v2727
    %2744 = vst [vmem:[#allocation12 + $0x30] sm:$0xff] %v2732
    %2745 = vst [vmem:[#allocation12 + $0x38] sm:$0xff] %v2735
    %2746 = vst [vmem:[#allocation13] sm:$0xff] %v2587
    %2747 = vst [vmem:[#allocation15] sm:$0xff] %v2585
    // Predicated region
    $region46: #{tpu_custom_call.1} parent=1 // pred_check
      _
    $region47: #{tpu_custom_call.1} parent=1 // pred_check_branch
      %2749 = sbr.rel (0) target = $region49
    $region48: #{tpu_custom_call.1} parent=1 // pred_region
      %s2751 = ssub.s32 1024, 1024
      %2752 = vsyncadd [#allocation5], %s2751
      %s2753 = sshll.u32 [#allocation12], 4
      %s2754 = int_to_ptr.vmem [resolvable:$true] %s2753
      %2759 = dma.vmem_to_hbm [thread:$0]  %s2754, 1024, %s6, [#allocation5], 128, 128, 8
    $region49: #{tpu_custom_call.1} parent=1 // pred_fallthru
      _
    // Predicated region
    $region50: #{tpu_custom_call.1} parent=1 // pred_check
      _
    $region51: #{tpu_custom_call.1} parent=1 // pred_check_branch
      %2761 = sbr.rel (0) target = $region53
    $region52: #{tpu_custom_call.1} parent=1 // pred_region
      %s2763 = ssub.s32 128, 128
      %2764 = vsyncadd [#allocation14], %s2763
      %s2766 = sshll.u32 [#allocation13], 4
      %s2767 = int_to_ptr.vmem [resolvable:$true] %s2766
      %2769 = dma.vmem_to_hbm [thread:$0]  %s2767, 128, %s7, [#allocation14]
    $region53: #{tpu_custom_call.1} parent=1 // pred_fallthru
      _
    // Predicated region
    $region54: #{tpu_custom_call.1} parent=1 // pred_check
      _
    $region55: #{tpu_custom_call.1} parent=1 // pred_check_branch
      %2771 = sbr.rel (0) target = $region57
    $region56: #{tpu_custom_call.1} parent=1 // pred_region
      %s2773 = ssub.s32 128, 128
      %2774 = vsyncadd [#allocation14], %s2773
      %s2776 = sshll.u32 [#allocation15], 4
      %s2777 = int_to_ptr.vmem [resolvable:$true] %s2776
      %2779 = dma.vmem_to_hbm [thread:$0]  %s2777, 128, %s8, [#allocation14]
    $region57: #{tpu_custom_call.1} parent=1 // pred_fallthru
      _
    // Predicated region
    $region58: #{tpu_custom_call.1} parent=1 // pred_check
      _
    $region59: #{tpu_custom_call.1} parent=1 // pred_check_branch
      %2781 = sbr.rel (0) target = $region61
    $region60: #{tpu_custom_call.1} parent=1 // pred_region
      %2782 = dma.done [#allocation5], 1024
    $region61: #{tpu_custom_call.1} parent=1 // pred_fallthru
      _
    // Predicated region
    $region62: #{tpu_custom_call.1} parent=1 // pred_check
      _
    $region63: #{tpu_custom_call.1} parent=1 // pred_check_branch
      %2784 = sbr.rel (0) target = $region65
    $region64: #{tpu_custom_call.1} parent=1 // pred_region
      %2785 = dma.done [#allocation14], 128
    $region65: #{tpu_custom_call.1} parent=1 // pred_fallthru
      _
    // Predicated region
    $region66: #{tpu_custom_call.1} parent=1 // pred_check
      _
    $region67: #{tpu_custom_call.1} parent=1 // pred_check_branch
      %2787 = sbr.rel (0) target = $region69
    $region68: #{tpu_custom_call.1} parent=1 // pred_region
      %2788 = dma.done [#allocation14], 128
    $region69: #{tpu_custom_call.1} parent=1 // pred_fallthru
      _
    %2789 = vsyncpa [#allocation4], 1
    %2790 = vsyncpa [#allocation7], 1
    %2791 = vsyncpa [#allocation10], 1
    %2792 = vsyncpa [#allocation5], 1
    %2793 = vsyncpa [#allocation14], 1

</llo_original>
